<compile_context>
chip_gen: v5e
topology: v5e:2x2
jax: 0.10.0
libtpu: 0.0.40
codegen_flags: <defaults>
</compile_context>

<pallas_src>
import math

import jax
import jax.numpy as jnp
from jax.experimental import pallas as pl
from jax.experimental.pallas import tpu as pltpu

# ----------------------------- hyper-parameters ------------------------------
LMAX = 2
L = (LMAX + 1) ** 2              # 9 spherical-harmonic components
SPHERE_CHANNELS = 16
NUM_HEADS = 2
ATTN_ALPHA = 8                   # attn_alpha_channels
ATTN_VALUE = 8                   # attn_value_channels
FFN_HIDDEN = 32                  # ffn_hidden_channels
NUM_LAYERS = 2
NUM_NODES = 8
NUM_EDGES = 16
NUM_GRAPHS = 4
EPS = 1e-6

LC = L * SPHERE_CHANNELS         # 144 : flat (component, channel) width
LH = L * FFN_HIDDEN              # 288 : flat FFN hidden width
HLC = NUM_HEADS * LC             # 288 : lane-concat of per-head mixed features
HP = NUM_HEADS * 128             # 256 : q/k width, each head 128-lane aligned
WMAX = max(HP, LH, HLC, LC)      # 288 : common lane width of the weight slabs
NBIAS = 1 + NUM_LAYERS * NUM_HEADS   # adj plane + per-(layer,head) dist-bias planes

# degree l of each spherical-harmonic component: [0,1,1,1,2,2,2,2,2]
DEGREE_OF_COMP = [l for l in range(LMAX + 1) for _ in range(2 * l + 1)]

# ----- weight-slab row layout (all offsets are multiples of 8 sublanes) ------
OFF_WQ = 0                       # [LC, HP]
OFF_WK = LC                      # [LC, HP]
OFF_WVO = 2 * LC                 # [HLC, LC]  per-head value->output, row-stacked
OFF_W1 = 2 * LC + HLC            # [LC, LH]
OFF_WG = 3 * LC + HLC            # [LC, LH]
OFF_W2 = 4 * LC + HLC            # [LH, LC]
ROWS_PER_LAYER = 4 * LC + HLC + LH
ROWS_A = NUM_LAYERS * ROWS_PER_LAYER

ROW_N1, ROW_N2, ROW_B1 = 0, 1, 2          # within-layer offsets in slab B (3 rows / layer)
ROW_NF = 3 * NUM_LAYERS
ROW_BAL = ROW_NF + 1
ROWS_B = ROW_BAL + 1                      # 8 rows total


# ---------------------------------- kernel -----------------------------------
def mpflow_kernel(x_ref, graph_ref, wa_ref, wb_ref, out_ref):
    x = x_ref[0]                         # [N, LC]  f32
    gr = graph_ref[0]                    # [NBIAS, N, N]
    adj = gr[0]                          # 1.0 on edges
    n = x.shape[0]
    inv_sqrt_a = 1.0 / math.sqrt(ATTN_ALPHA)

    # hoisted broadcasts (JAX does not CSE broadcast_in_dim)
    bal = jnp.broadcast_to(wb_ref[ROW_BAL:ROW_BAL + 1, :LC], (n, LC))   # pre-scaled by 1/C
    is_l0 = jax.lax.broadcasted_iota(jnp.int32, (n, LH), 1) < FFN_HIDDEN

    def rms_norm(h, w_row):
        """Equivariant RMS norm over spherical harmonics ('rms_norm_sh'), flat layout."""
        fn = jnp.sum(h * h * bal, axis=1, keepdims=True)
        return h * jax.lax.rsqrt(fn + EPS) * w_row

    for layer in range(NUM_LAYERS):      # TransBlockV2 blocks (simplified), unrolled
        base = layer * ROWS_PER_LAYER

        # ---------- equivariant graph attention (pre-norm, residual) ----------
        h = rms_norm(x, wb_ref[3 * layer + ROW_N1:3 * layer + ROW_N1 + 1, :LC])
        # full-width h against zero-row-padded weights -> no 16-lane slice of h
        q = jnp.dot(h, wa_ref[base + OFF_WQ:base + OFF_WQ + LC, :HP],
                    preferred_element_type=jnp.float32)              # [N, HP]
        k = jnp.dot(h, wa_ref[base + OFF_WK:base + OFF_WK + LC, :HP],
                    preferred_element_type=jnp.float32)
        mixed = []
        for hh in range(NUM_HEADS):
            qh = q[:, hh * 128:(hh + 1) * 128]                       # 128-lane aligned slice
            kh = k[:, hh * 128:(hh + 1) * 128]
            logits = jax.lax.dot_general(
                qh, kh, (((1,), (1,)), ((), ())),
                preferred_element_type=jnp.float32) * inv_sqrt_a
            logits = logits + gr[1 + layer * NUM_HEADS + hh]         # distance bias plane
            # max over unmasked logits is safe here (bias magnitudes are small);
            # non-edges are removed by the adj mask below.
            m = jnp.max(logits, axis=1, keepdims=True)
            p = jnp.exp(logits - m) * adj                            # single masking
            denom = jnp.sum(p, axis=1, keepdims=True)
            alpha = p * (1.0 / (denom + 1e-9))                       # exact softmax norm
            # message aggregation: alpha [N,N] @ h [N,LC]
            mixed.append(jnp.dot(alpha, h, preferred_element_type=jnp.float32))
        mixed_all = jnp.concatenate(mixed, axis=1)                   # [N, H*LC]
        # fused per-head value->output projection as ONE matmul (row-stacked heads)
        x = x + jnp.dot(mixed_all,
                        wa_ref[base + OFF_WVO:base + OFF_WVO + HLC, :LC],
                        preferred_element_type=jnp.float32)

        # ---------- feed-forward (pre-norm, separable gated act, residual) ----
        h = rms_norm(x, wb_ref[3 * layer + ROW_N2:3 * layer + ROW_N2 + 1, :LC])
        h1 = jnp.dot(h, wa_ref[base + OFF_W1:base + OFF_W1 + LC, :LH],
                     preferred_element_type=jnp.float32)             # [N, LH]
        gate = jax.nn.sigmoid(
            jnp.dot(h, wa_ref[base + OFF_WG:base + OFF_WG + LC, :LH],
                    preferred_element_type=jnp.float32))             # [N, LH]
        h1b = h1 + wb_ref[3 * layer + ROW_B1:3 * layer + ROW_B1 + 1, :LH]
        silu = h1b * jax.nn.sigmoid(h1b)                             # SiLU (l=0 path)
        h2 = jnp.where(is_l0, silu, h1 * gate)                       # single vselect
        x = x + jnp.dot(h2, wa_ref[base + OFF_W2:base + OFF_W2 + LH, :LC],
                        preferred_element_type=jnp.float32)

    # final equivariant RMS norm (exact 'rms_norm_sh')
    out_ref[0] = rms_norm(x, wb_ref[ROW_NF:ROW_NF + 1, :LC])


# --------------------------------- wrapper -----------------------------------
def make_params(key):
    ks = jax.random.split(key, 8)

    def init(k, shape, fan_in):
        return jax.random.normal(k, shape, jnp.float32) / math.sqrt(fan_in)

    return dict(
        n1=jnp.ones((NUM_LAYERS, LMAX + 1, SPHERE_CHANNELS), jnp.float32),
        n2=jnp.ones((NUM_LAYERS, LMAX + 1, SPHERE_CHANNELS), jnp.float32),
        nf=jnp.ones((LMAX + 1, SPHERE_CHANNELS), jnp.float32),
        wq=init(ks[0], (NUM_LAYERS, SPHERE_CHANNELS, NUM_HEADS * ATTN_ALPHA), SPHERE_CHANNELS),
        wk=init(ks[1], (NUM_LAYERS, SPHERE_CHANNELS, NUM_HEADS * ATTN_ALPHA), SPHERE_CHANNELS),
        wv=init(ks[2], (NUM_LAYERS, LMAX + 1, SPHERE_CHANNELS, NUM_HEADS * ATTN_VALUE), SPHERE_CHANNELS),
        wo=init(ks[3], (NUM_LAYERS, LMAX + 1, NUM_HEADS * ATTN_VALUE, SPHERE_CHANNELS), NUM_HEADS * ATTN_VALUE),
        w1=init(ks[4], (NUM_LAYERS, LMAX + 1, SPHERE_CHANNELS, FFN_HIDDEN), SPHERE_CHANNELS),
        b1=jnp.zeros((NUM_LAYERS, 1, FFN_HIDDEN), jnp.float32),
        wg=init(ks[5], (NUM_LAYERS, SPHERE_CHANNELS, FFN_HIDDEN), SPHERE_CHANNELS),
        w2=init(ks[6], (NUM_LAYERS, LMAX + 1, FFN_HIDDEN, SPHERE_CHANNELS), FFN_HIDDEN),
        edge_scale=0.1 * jax.random.normal(ks[7], (NUM_LAYERS, NUM_HEADS), jnp.float32),
    )


def _block_diag_per_degree(w):
    """w: [LMAX+1, Cin, Cout] -> block-diagonal [L*Cin, L*Cout], block (i,i)=w[deg(i)]."""
    cin, cout = w.shape[1], w.shape[2]
    out = jnp.zeros((L * cin, L * cout), w.dtype)
    for i, d in enumerate(DEGREE_OF_COMP):
        out = out.at[i * cin:(i + 1) * cin, i * cout:(i + 1) * cout].set(w[d])
    return out


def _pad_cols(m):
    return jnp.pad(m, ((0, 0), (0, WMAX - m.shape[1])))


def _prepare_weight_slabs(params):
    """Pack every weight into two slabs: matmul weights (A) and row vectors (B)."""
    exp_idx = jnp.asarray(DEGREE_OF_COMP, jnp.int32)

    layer_slabs = []
    for layer in range(NUM_LAYERS):
        # q/k: zero-padded rows (>= C) and per-head 128-lane-aligned column blocks
        wq_pad = jnp.zeros((LC, HP), jnp.float32)
        wk_pad = jnp.zeros((LC, HP), jnp.float32)
        for hh in range(NUM_HEADS):
            wq_pad = wq_pad.at[:SPHERE_CHANNELS, hh * 128:hh * 128 + ATTN_ALPHA].set(
                params['wq'][layer][:, hh * ATTN_ALPHA:(hh + 1) * ATTN_ALPHA])
            wk_pad = wk_pad.at[:SPHERE_CHANNELS, hh * 128:hh * 128 + ATTN_ALPHA].set(
                params['wk'][layer][:, hh * ATTN_ALPHA:(hh + 1) * ATTN_ALPHA])
        # fused per-head value->output maps, row-stacked -> single [HLC, LC] matmul
        wvo_heads = []
        for hh in range(NUM_HEADS):
            wv_h = params['wv'][layer, :, :, hh * ATTN_VALUE:(hh + 1) * ATTN_VALUE]
            wo_h = params['wo'][layer, :, hh * ATTN_VALUE:(hh + 1) * ATTN_VALUE, :]
            comp = jnp.einsum('dcv,dvo->dco', wv_h, wo_h)            # [LMAX+1, C, C]
            wvo_heads.append(_block_diag_per_degree(comp))
        wvo_stack = jnp.concatenate(wvo_heads, axis=0)               # [HLC, LC]
        w1_bd = _block_diag_per_degree(params['w1'][layer])          # [LC, LH]
        wg_lc = jnp.zeros((LC, LH), jnp.float32).at[:SPHERE_CHANNELS, :].set(
            jnp.tile(params['wg'][layer], (1, L)))                   # zero-row-padded gate
        w2_bd = _block_diag_per_degree(params['w2'][layer])          # [LH, LC]
        layer_slabs.append(jnp.concatenate(
            [_pad_cols(wq_pad), _pad_cols(wk_pad), _pad_cols(wvo_stack),
             _pad_cols(w1_bd), _pad_cols(wg_lc), _pad_cols(w2_bd)], axis=0))
    wa = jnp.concatenate(layer_slabs, axis=0)                        # [ROWS_A, WMAX]

    rows = []
    for layer in range(NUM_LAYERS):
        n1_row = jnp.take(params['n1'][layer], exp_idx, axis=0).reshape(1, LC)
        n2_row = jnp.take(params['n2'][layer], exp_idx, axis=0).reshape(1, LC)
        b1_row = jnp.concatenate(
            [params['b1'][layer], jnp.zeros((1, LH - FFN_HIDDEN), jnp.float32)], axis=1)
        rows += [_pad_cols(n1_row), _pad_cols(n2_row), b1_row]
    nf_row = jnp.take(params['nf'], exp_idx, axis=0).reshape(1, LC)
    # degree-balance weights 1/((2l+1)*(lmax+1)), with the 1/C factor folded in
    bal_row = jnp.asarray(
        [1.0 / ((2 * d + 1) * (LMAX + 1))
         for d in DEGREE_OF_COMP for _ in range(SPHERE_CHANNELS)],
        jnp.float32).reshape(1, LC) / SPHERE_CHANNELS
    rows += [_pad_cols(nf_row), _pad_cols(bal_row)]
    wb = jnp.concatenate(rows, axis=0)                               # [ROWS_B, WMAX]
    return wa, wb


@jax.jit
def equivariant_mpflow_forward_batched(x, edge_distance, edge_index, params):
    """x: [G, N, (lmax+1)^2, C]; edge_distance: [G, E]; edge_index: [G, 2, E]."""
    g_graphs, n = x.shape[0], x.shape[1]

    # Densify graph (glue): adjacency + per-(layer,head) distance-bias planes.
    # TODO(synk): duplicate edges collapse (last-write-wins); isolated nodes get a
    #             zero attention update (residual passthrough).
    es_flat = params['edge_scale'].reshape(NUM_LAYERS * NUM_HEADS, 1, 1)

    def densify(ei, ed):
        src, dst = ei[0], ei[1]
        adj = jnp.zeros((n, n), jnp.float32).at[dst, src].set(1.0)
        dist = jnp.zeros((n, n), jnp.float32).at[dst, src].set(ed.astype(jnp.float32))
        return jnp.concatenate([adj[None], es_flat * dist[None]], axis=0)   # [NBIAS, n, n]

    graph = jax.vmap(densify)(edge_index, edge_distance)             # [G, NBIAS, n, n]
    wa, wb = _prepare_weight_slabs(params)
    x_flat = x.astype(jnp.float32).reshape(g_graphs, n, LC)

    out_flat = pl.pallas_call(
        mpflow_kernel,
        out_shape=jax.ShapeDtypeStruct((g_graphs, n, LC), jnp.float32),
        grid=(g_graphs,),
        in_specs=[
            pl.BlockSpec((1, n, LC), lambda g: (g, 0, 0)),            # x (per-graph)
            pl.BlockSpec((1, NBIAS, n, n), lambda g: (g, 0, 0, 0)),   # adj + bias planes
            pl.BlockSpec((ROWS_A, WMAX), lambda g: (0, 0)),           # weight slab (resident)
            pl.BlockSpec((ROWS_B, WMAX), lambda g: (0, 0)),           # row-vector slab
        ],
        out_specs=pl.BlockSpec((1, n, LC), lambda g: (g, 0, 0)),
        compiler_params=pltpu.CompilerParams(
            dimension_semantics=("parallel",)),                       # both TCs on v7x
    )(x_flat, graph, wa, wb)

    return out_flat.reshape(g_graphs, n, L, SPHERE_CHANNELS)


def equivariant_mpflow_forward(x, atomic_numbers, edge_distance, edge_index, batch, params):
    """Single-graph entry point mirroring the PyTorch forward signature."""
    # TODO(synk): `atomic_numbers` / `batch` accepted to mirror the PyTorch signature
    #             but unused (atom-edge embeddings are part of the omitted internals).
    del atomic_numbers, batch
    return equivariant_mpflow_forward_batched(
        x[None], edge_distance[None], edge_index[None], params)[0]


# ----------------------------------- main -------------------------------------
if __name__ == "__main__":
    key = jax.random.PRNGKey(0)
    kx, ke, kd, kp = jax.random.split(key, 4)

    x = jax.random.normal(kx, (NUM_GRAPHS, NUM_NODES, L, SPHERE_CHANNELS), jnp.float32)
    edge_index = jax.random.randint(ke, (NUM_GRAPHS, 2, NUM_EDGES), 0, NUM_NODES)
    edge_distance = jax.random.uniform(kd, (NUM_GRAPHS, NUM_EDGES), jnp.float32, 0.5, 3.0)

    params = make_params(kp)

    out = equivariant_mpflow_forward_batched(x, edge_distance, edge_index, params)
    out = jax.block_until_ready(out)
    assert out.shape == (NUM_GRAPHS, NUM_NODES, L, SPHERE_CHANNELS)
    assert bool(jnp.all(jnp.isfinite(out)))
    print("KERNEL_OK")
</pallas_src>

<mosaic_0001>
module attributes {stable_mosaic.version = 11 : i64} {
  func.func @mpflow_kernel(%arg0: i32, %arg1: memref<1x8x144xf32, #tpu.memory_space<vmem>>, %arg2: memref<1x5x8x8xf32, #tpu.memory_space<vmem>>, %arg3: memref<2304x288xf32, #tpu.memory_space<vmem>>, %arg4: memref<8x288xf32, #tpu.memory_space<vmem>>, %arg5: memref<1x8x144xf32, #tpu.memory_space<vmem>>) attributes {dimension_semantics = [#tpu.dimension_semantics<parallel>], iteration_bounds = array<i64: 4>, scalar_prefetch = 0 : i64, scratch_operands = 0 : i64, tpu.core_type = #tpu.core_type<tc>, window_params = [{transform_indices = @transform_0, window_bounds = array<i64: 1, 8, 144>}, {transform_indices = @transform_1, window_bounds = array<i64: 1, 5, 8, 8>}, {pipeline_mode = #tpu.pipeline_mode<synchronous>, transform_indices = @transform_2, window_bounds = array<i64: 2304, 288>}, {pipeline_mode = #tpu.pipeline_mode<synchronous>, transform_indices = @transform_3, window_bounds = array<i64: 8, 288>}, {transform_indices = @transform_4, window_bounds = array<i64: 1, 8, 144>}]} {
    %c0 = arith.constant 0 : index
    %c0_0 = arith.constant 0 : index
    %c0_1 = arith.constant 0 : index
    %0 = vector.load %arg1[%c0, %c0_0, %c0_1] : memref<1x8x144xf32, #tpu.memory_space<vmem>>, vector<1x8x144xf32>
    %1 = vector.shape_cast %0 : vector<1x8x144xf32> to vector<8x144xf32>
    %c0_2 = arith.constant 0 : index
    %c0_3 = arith.constant 0 : index
    %c0_4 = arith.constant 0 : index
    %c0_5 = arith.constant 0 : index
    %2 = vector.load %arg2[%c0_2, %c0_3, %c0_4, %c0_5] : memref<1x5x8x8xf32, #tpu.memory_space<vmem>>, vector<1x5x8x8xf32>
    %3 = vector.shape_cast %2 : vector<1x5x8x8xf32> to vector<5x8x8xf32>
    %4 = vector.extract_strided_slice %3 {offsets = [0, 0, 0], sizes = [1, 8, 8], strides = [1, 1, 1]} : vector<5x8x8xf32> to vector<1x8x8xf32>
    %5 = vector.shape_cast %4 : vector<1x8x8xf32> to vector<8x8xf32>
    %c7 = arith.constant 7 : index
    %c0_6 = arith.constant 0 : index
    %6 = vector.load %arg4[%c7, %c0_6] : memref<8x288xf32, #tpu.memory_space<vmem>>, vector<1x144xf32>
    %7 = vector.shape_cast %6 : vector<1x144xf32> to vector<1x144xf32>
    %8 = vector.broadcast %7 : vector<1x144xf32> to vector<8x144xf32>
    %9 = tpu.iota {dimensions = array<i32: 1>} : vector<8x288xi32>
    %c32_i32 = arith.constant 32 : i32
    %10 = vector.broadcast %c32_i32 : i32 to vector<8x288xi32>
    %11 = arith.cmpi slt, %9, %10 : vector<8x288xi32>
    %c0_7 = arith.constant 0 : index
    %c0_8 = arith.constant 0 : index
    %12 = vector.load %arg4[%c0_7, %c0_8] : memref<8x288xf32, #tpu.memory_space<vmem>>, vector<1x144xf32>
    %13 = arith.mulf %1, %1 : vector<8x144xf32>
    %14 = arith.mulf %13, %8 : vector<8x144xf32>
    %cst = arith.constant dense<0.000000e+00> : vector<8xf32>
    %15 = vector.multi_reduction <add>, %14, %cst [1] : vector<8x144xf32> to vector<8xf32>
    %16 = vector.shape_cast %15 : vector<8xf32> to vector<8x1xf32>
    %cst_9 = arith.constant 9.99999997E-7 : f32
    %17 = vector.broadcast %cst_9 : f32 to vector<8x1xf32>
    %18 = arith.addf %16, %17 : vector<8x1xf32>
    %19 = math.rsqrt %18 : vector<8x1xf32>
    %20 = vector.broadcast %19 : vector<8x1xf32> to vector<8x144xf32>
    %21 = arith.mulf %1, %20 : vector<8x144xf32>
    %22 = vector.broadcast %12 : vector<1x144xf32> to vector<8x144xf32>
    %23 = arith.mulf %21, %22 : vector<8x144xf32>
    %c0_10 = arith.constant 0 : index
    %c0_11 = arith.constant 0 : index
    %24 = vector.load %arg3[%c0_10, %c0_11] : memref<2304x288xf32, #tpu.memory_space<vmem>>, vector<144x256xf32>
    %cst_12 = arith.constant dense<0.000000e+00> : vector<8x256xf32>
    %25 = tpu.matmul %23, %24, %cst_12 {dimension_numbers = #tpu.dot_dimension_numbers<[1], [0], [0], [1], [0, 0, 1, 1], [], []>} : vector<8x144xf32>, vector<144x256xf32>, vector<8x256xf32> -> vector<8x256xf32>
    %c144 = arith.constant 144 : index
    %c0_13 = arith.constant 0 : index
    %26 = vector.load %arg3[%c144, %c0_13] : memref<2304x288xf32, #tpu.memory_space<vmem>>, vector<144x256xf32>
    %cst_14 = arith.constant dense<0.000000e+00> : vector<8x256xf32>
    %27 = tpu.matmul %23, %26, %cst_14 {dimension_numbers = #tpu.dot_dimension_numbers<[1], [0], [0], [1], [0, 0, 1, 1], [], []>} : vector<8x144xf32>, vector<144x256xf32>, vector<8x256xf32> -> vector<8x256xf32>
    %28 = vector.extract_strided_slice %25 {offsets = [0, 0], sizes = [8, 128], strides = [1, 1]} : vector<8x256xf32> to vector<8x128xf32>
    %29 = vector.extract_strided_slice %27 {offsets = [0, 0], sizes = [8, 128], strides = [1, 1]} : vector<8x256xf32> to vector<8x128xf32>
    %cst_15 = arith.constant dense<0.000000e+00> : vector<8x8xf32>
    %30 = tpu.matmul %28, %29, %cst_15 {dimension_numbers = #tpu.dot_dimension_numbers<[1], [1], [0], [0], [0, 0, 1, 0], [], []>} : vector<8x128xf32>, vector<8x128xf32>, vector<8x8xf32> -> vector<8x8xf32>
    %cst_16 = arith.constant 0.353553385 : f32
    %31 = vector.broadcast %cst_16 : f32 to vector<8x8xf32>
    %32 = arith.mulf %30, %31 : vector<8x8xf32>
    %33 = vector.extract_strided_slice %3 {offsets = [1, 0, 0], sizes = [1, 8, 8], strides = [1, 1, 1]} : vector<5x8x8xf32> to vector<1x8x8xf32>
    %34 = vector.shape_cast %33 : vector<1x8x8xf32> to vector<8x8xf32>
    %35 = arith.addf %32, %34 : vector<8x8xf32>
    %cst_17 = arith.constant dense<0xFF800000> : vector<8xf32>
    %36 = vector.multi_reduction <maximumf>, %35, %cst_17 [1] : vector<8x8xf32> to vector<8xf32>
    %37 = vector.shape_cast %36 : vector<8xf32> to vector<8x1xf32>
    %38 = vector.broadcast %37 : vector<8x1xf32> to vector<8x8xf32>
    %39 = arith.subf %35, %38 : vector<8x8xf32>
    %40 = math.exp %39 : vector<8x8xf32>
    %41 = arith.mulf %40, %5 : vector<8x8xf32>
    %cst_18 = arith.constant dense<0.000000e+00> : vector<8xf32>
    %42 = vector.multi_reduction <add>, %41, %cst_18 [1] : vector<8x8xf32> to vector<8xf32>
    %43 = vector.shape_cast %42 : vector<8xf32> to vector<8x1xf32>
    %cst_19 = arith.constant 9.99999971E-10 : f32
    %44 = vector.broadcast %cst_19 : f32 to vector<8x1xf32>
    %45 = arith.addf %43, %44 : vector<8x1xf32>
    %cst_20 = arith.constant 1.000000e+00 : f32
    %46 = vector.broadcast %cst_20 : f32 to vector<8x1xf32>
    %47 = arith.divf %46, %45 : vector<8x1xf32>
    %48 = vector.broadcast %47 : vector<8x1xf32> to vector<8x8xf32>
    %49 = arith.mulf %41, %48 : vector<8x8xf32>
    %cst_21 = arith.constant dense<0.000000e+00> : vector<8x144xf32>
    %50 = tpu.matmul %49, %23, %cst_21 {dimension_numbers = #tpu.dot_dimension_numbers<[1], [0], [0], [1], [0, 0, 1, 1], [], []>} : vector<8x8xf32>, vector<8x144xf32>, vector<8x144xf32> -> vector<8x144xf32>
    %51 = vector.extract_strided_slice %25 {offsets = [0, 128], sizes = [8, 128], strides = [1, 1]} : vector<8x256xf32> to vector<8x128xf32>
    %52 = vector.extract_strided_slice %27 {offsets = [0, 128], sizes = [8, 128], strides = [1, 1]} : vector<8x256xf32> to vector<8x128xf32>
    %cst_22 = arith.constant dense<0.000000e+00> : vector<8x8xf32>
    %53 = tpu.matmul %51, %52, %cst_22 {dimension_numbers = #tpu.dot_dimension_numbers<[1], [1], [0], [0], [0, 0, 1, 0], [], []>} : vector<8x128xf32>, vector<8x128xf32>, vector<8x8xf32> -> vector<8x8xf32>
    %cst_23 = arith.constant 0.353553385 : f32
    %54 = vector.broadcast %cst_23 : f32 to vector<8x8xf32>
    %55 = arith.mulf %53, %54 : vector<8x8xf32>
    %56 = vector.extract_strided_slice %3 {offsets = [2, 0, 0], sizes = [1, 8, 8], strides = [1, 1, 1]} : vector<5x8x8xf32> to vector<1x8x8xf32>
    %57 = vector.shape_cast %56 : vector<1x8x8xf32> to vector<8x8xf32>
    %58 = arith.addf %55, %57 : vector<8x8xf32>
    %cst_24 = arith.constant dense<0xFF800000> : vector<8xf32>
    %59 = vector.multi_reduction <maximumf>, %58, %cst_24 [1] : vector<8x8xf32> to vector<8xf32>
    %60 = vector.shape_cast %59 : vector<8xf32> to vector<8x1xf32>
    %61 = vector.broadcast %60 : vector<8x1xf32> to vector<8x8xf32>
    %62 = arith.subf %58, %61 : vector<8x8xf32>
    %63 = math.exp %62 : vector<8x8xf32>
    %64 = arith.mulf %63, %5 : vector<8x8xf32>
    %cst_25 = arith.constant dense<0.000000e+00> : vector<8xf32>
    %65 = vector.multi_reduction <add>, %64, %cst_25 [1] : vector<8x8xf32> to vector<8xf32>
    %66 = vector.shape_cast %65 : vector<8xf32> to vector<8x1xf32>
    %cst_26 = arith.constant 9.99999971E-10 : f32
    %67 = vector.broadcast %cst_26 : f32 to vector<8x1xf32>
    %68 = arith.addf %66, %67 : vector<8x1xf32>
    %cst_27 = arith.constant 1.000000e+00 : f32
    %69 = vector.broadcast %cst_27 : f32 to vector<8x1xf32>
    %70 = arith.divf %69, %68 : vector<8x1xf32>
    %71 = vector.broadcast %70 : vector<8x1xf32> to vector<8x8xf32>
    %72 = arith.mulf %64, %71 : vector<8x8xf32>
    %cst_28 = arith.constant dense<0.000000e+00> : vector<8x144xf32>
    %73 = tpu.matmul %72, %23, %cst_28 {dimension_numbers = #tpu.dot_dimension_numbers<[1], [0], [0], [1], [0, 0, 1, 1], [], []>} : vector<8x8xf32>, vector<8x144xf32>, vector<8x144xf32> -> vector<8x144xf32>
    %74 = tpu.concatenate %50, %73 in 1 : vector<8x144xf32>, vector<8x144xf32> -> vector<8x288xf32>
    %c288 = arith.constant 288 : index
    %c0_29 = arith.constant 0 : index
    %75 = vector.load %arg3[%c288, %c0_29] : memref<2304x288xf32, #tpu.memory_space<vmem>>, vector<288x144xf32>
    %cst_30 = arith.constant dense<0.000000e+00> : vector<8x144xf32>
    %76 = tpu.matmul %74, %75, %cst_30 {dimension_numbers = #tpu.dot_dimension_numbers<[1], [0], [0], [1], [0, 0, 1, 1], [], []>} : vector<8x288xf32>, vector<288x144xf32>, vector<8x144xf32> -> vector<8x144xf32>
    %77 = arith.addf %1, %76 : vector<8x144xf32>
    %c1 = arith.constant 1 : index
    %c0_31 = arith.constant 0 : index
    %78 = vector.load %arg4[%c1, %c0_31] : memref<8x288xf32, #tpu.memory_space<vmem>>, vector<1x144xf32>
    %79 = arith.mulf %77, %77 : vector<8x144xf32>
    %80 = arith.mulf %79, %8 : vector<8x144xf32>
    %cst_32 = arith.constant dense<0.000000e+00> : vector<8xf32>
    %81 = vector.multi_reduction <add>, %80, %cst_32 [1] : vector<8x144xf32> to vector<8xf32>
    %82 = vector.shape_cast %81 : vector<8xf32> to vector<8x1xf32>
    %cst_33 = arith.constant 9.99999997E-7 : f32
    %83 = vector.broadcast %cst_33 : f32 to vector<8x1xf32>
    %84 = arith.addf %82, %83 : vector<8x1xf32>
    %85 = math.rsqrt %84 : vector<8x1xf32>
    %86 = vector.broadcast %85 : vector<8x1xf32> to vector<8x144xf32>
    %87 = arith.mulf %77, %86 : vector<8x144xf32>
    %88 = vector.broadcast %78 : vector<1x144xf32> to vector<8x144xf32>
    %89 = arith.mulf %87, %88 : vector<8x144xf32>
    %c576 = arith.constant 576 : index
    %c0_34 = arith.constant 0 : index
    %90 = vector.load %arg3[%c576, %c0_34] : memref<2304x288xf32, #tpu.memory_space<vmem>>, vector<144x288xf32>
    %cst_35 = arith.constant dense<0.000000e+00> : vector<8x288xf32>
    %91 = tpu.matmul %89, %90, %cst_35 {dimension_numbers = #tpu.dot_dimension_numbers<[1], [0], [0], [1], [0, 0, 1, 1], [], []>} : vector<8x144xf32>, vector<144x288xf32>, vector<8x288xf32> -> vector<8x288xf32>
    %c720 = arith.constant 720 : index
    %c0_36 = arith.constant 0 : index
    %92 = vector.load %arg3[%c720, %c0_36] : memref<2304x288xf32, #tpu.memory_space<vmem>>, vector<144x288xf32>
    %cst_37 = arith.constant dense<0.000000e+00> : vector<8x288xf32>
    %93 = tpu.matmul %89, %92, %cst_37 {dimension_numbers = #tpu.dot_dimension_numbers<[1], [0], [0], [1], [0, 0, 1, 1], [], []>} : vector<8x144xf32>, vector<144x288xf32>, vector<8x288xf32> -> vector<8x288xf32>
    %94 = arith.negf %93 : vector<8x288xf32>
    %95 = math.exp %94 : vector<8x288xf32>
    %cst_38 = arith.constant 1.000000e+00 : f32
    %96 = vector.broadcast %cst_38 : f32 to vector<8x288xf32>
    %97 = arith.addf %96, %95 : vector<8x288xf32>
    %98 = arith.divf %96, %97 : vector<8x288xf32>
    %c2 = arith.constant 2 : index
    %c0_39 = arith.constant 0 : index
    %99 = vector.load %arg4[%c2, %c0_39] : memref<8x288xf32, #tpu.memory_space<vmem>>, vector<1x288xf32>
    %100 = vector.broadcast %99 : vector<1x288xf32> to vector<8x288xf32>
    %101 = arith.addf %91, %100 : vector<8x288xf32>
    %102 = arith.negf %101 : vector<8x288xf32>
    %103 = math.exp %102 : vector<8x288xf32>
    %cst_40 = arith.constant 1.000000e+00 : f32
    %104 = vector.broadcast %cst_40 : f32 to vector<8x288xf32>
    %105 = arith.addf %104, %103 : vector<8x288xf32>
    %106 = arith.divf %104, %105 : vector<8x288xf32>
    %107 = arith.mulf %101, %106 : vector<8x288xf32>
    %108 = arith.mulf %91, %98 : vector<8x288xf32>
    %109 = arith.select %11, %107, %108 : vector<8x288xi1>, vector<8x288xf32>
    %c864 = arith.constant 864 : index
    %c0_41 = arith.constant 0 : index
    %110 = vector.load %arg3[%c864, %c0_41] : memref<2304x288xf32, #tpu.memory_space<vmem>>, vector<288x144xf32>
    %cst_42 = arith.constant dense<0.000000e+00> : vector<8x144xf32>
    %111 = tpu.matmul %109, %110, %cst_42 {dimension_numbers = #tpu.dot_dimension_numbers<[1], [0], [0], [1], [0, 0, 1, 1], [], []>} : vector<8x288xf32>, vector<288x144xf32>, vector<8x144xf32> -> vector<8x144xf32>
    %112 = arith.addf %77, %111 : vector<8x144xf32>
    %c3 = arith.constant 3 : index
    %c0_43 = arith.constant 0 : index
    %113 = vector.load %arg4[%c3, %c0_43] : memref<8x288xf32, #tpu.memory_space<vmem>>, vector<1x144xf32>
    %114 = arith.mulf %112, %112 : vector<8x144xf32>
    %115 = arith.mulf %114, %8 : vector<8x144xf32>
    %cst_44 = arith.constant dense<0.000000e+00> : vector<8xf32>
    %116 = vector.multi_reduction <add>, %115, %cst_44 [1] : vector<8x144xf32> to vector<8xf32>
    %117 = vector.shape_cast %116 : vector<8xf32> to vector<8x1xf32>
    %cst_45 = arith.constant 9.99999997E-7 : f32
    %118 = vector.broadcast %cst_45 : f32 to vector<8x1xf32>
    %119 = arith.addf %117, %118 : vector<8x1xf32>
    %120 = math.rsqrt %119 : vector<8x1xf32>
    %121 = vector.broadcast %120 : vector<8x1xf32> to vector<8x144xf32>
    %122 = arith.mulf %112, %121 : vector<8x144xf32>
    %123 = vector.broadcast %113 : vector<1x144xf32> to vector<8x144xf32>
    %124 = arith.mulf %122, %123 : vector<8x144xf32>
    %c1152 = arith.constant 1152 : index
    %c0_46 = arith.constant 0 : index
    %125 = vector.load %arg3[%c1152, %c0_46] : memref<2304x288xf32, #tpu.memory_space<vmem>>, vector<144x256xf32>
    %cst_47 = arith.constant dense<0.000000e+00> : vector<8x256xf32>
    %126 = tpu.matmul %124, %125, %cst_47 {dimension_numbers = #tpu.dot_dimension_numbers<[1], [0], [0], [1], [0, 0, 1, 1], [], []>} : vector<8x144xf32>, vector<144x256xf32>, vector<8x256xf32> -> vector<8x256xf32>
    %c1296 = arith.constant 1296 : index
    %c0_48 = arith.constant 0 : index
    %127 = vector.load %arg3[%c1296, %c0_48] : memref<2304x288xf32, #tpu.memory_space<vmem>>, vector<144x256xf32>
    %cst_49 = arith.constant dense<0.000000e+00> : vector<8x256xf32>
    %128 = tpu.matmul %124, %127, %cst_49 {dimension_numbers = #tpu.dot_dimension_numbers<[1], [0], [0], [1], [0, 0, 1, 1], [], []>} : vector<8x144xf32>, vector<144x256xf32>, vector<8x256xf32> -> vector<8x256xf32>
    %129 = vector.extract_strided_slice %126 {offsets = [0, 0], sizes = [8, 128], strides = [1, 1]} : vector<8x256xf32> to vector<8x128xf32>
    %130 = vector.extract_strided_slice %128 {offsets = [0, 0], sizes = [8, 128], strides = [1, 1]} : vector<8x256xf32> to vector<8x128xf32>
    %cst_50 = arith.constant dense<0.000000e+00> : vector<8x8xf32>
    %131 = tpu.matmul %129, %130, %cst_50 {dimension_numbers = #tpu.dot_dimension_numbers<[1], [1], [0], [0], [0, 0, 1, 0], [], []>} : vector<8x128xf32>, vector<8x128xf32>, vector<8x8xf32> -> vector<8x8xf32>
    %cst_51 = arith.constant 0.353553385 : f32
    %132 = vector.broadcast %cst_51 : f32 to vector<8x8xf32>
    %133 = arith.mulf %131, %132 : vector<8x8xf32>
    %134 = vector.extract_strided_slice %3 {offsets = [3, 0, 0], sizes = [1, 8, 8], strides = [1, 1, 1]} : vector<5x8x8xf32> to vector<1x8x8xf32>
    %135 = vector.shape_cast %134 : vector<1x8x8xf32> to vector<8x8xf32>
    %136 = arith.addf %133, %135 : vector<8x8xf32>
    %cst_52 = arith.constant dense<0xFF800000> : vector<8xf32>
    %137 = vector.multi_reduction <maximumf>, %136, %cst_52 [1] : vector<8x8xf32> to vector<8xf32>
    %138 = vector.shape_cast %137 : vector<8xf32> to vector<8x1xf32>
    %139 = vector.broadcast %138 : vector<8x1xf32> to vector<8x8xf32>
    %140 = arith.subf %136, %139 : vector<8x8xf32>
    %141 = math.exp %140 : vector<8x8xf32>
    %142 = arith.mulf %141, %5 : vector<8x8xf32>
    %cst_53 = arith.constant dense<0.000000e+00> : vector<8xf32>
    %143 = vector.multi_reduction <add>, %142, %cst_53 [1] : vector<8x8xf32> to vector<8xf32>
    %144 = vector.shape_cast %143 : vector<8xf32> to vector<8x1xf32>
    %cst_54 = arith.constant 9.99999971E-10 : f32
    %145 = vector.broadcast %cst_54 : f32 to vector<8x1xf32>
    %146 = arith.addf %144, %145 : vector<8x1xf32>
    %cst_55 = arith.constant 1.000000e+00 : f32
    %147 = vector.broadcast %cst_55 : f32 to vector<8x1xf32>
    %148 = arith.divf %147, %146 : vector<8x1xf32>
    %149 = vector.broadcast %148 : vector<8x1xf32> to vector<8x8xf32>
    %150 = arith.mulf %142, %149 : vector<8x8xf32>
    %cst_56 = arith.constant dense<0.000000e+00> : vector<8x144xf32>
    %151 = tpu.matmul %150, %124, %cst_56 {dimension_numbers = #tpu.dot_dimension_numbers<[1], [0], [0], [1], [0, 0, 1, 1], [], []>} : vector<8x8xf32>, vector<8x144xf32>, vector<8x144xf32> -> vector<8x144xf32>
    %152 = vector.extract_strided_slice %126 {offsets = [0, 128], sizes = [8, 128], strides = [1, 1]} : vector<8x256xf32> to vector<8x128xf32>
    %153 = vector.extract_strided_slice %128 {offsets = [0, 128], sizes = [8, 128], strides = [1, 1]} : vector<8x256xf32> to vector<8x128xf32>
    %cst_57 = arith.constant dense<0.000000e+00> : vector<8x8xf32>
    %154 = tpu.matmul %152, %153, %cst_57 {dimension_numbers = #tpu.dot_dimension_numbers<[1], [1], [0], [0], [0, 0, 1, 0], [], []>} : vector<8x128xf32>, vector<8x128xf32>, vector<8x8xf32> -> vector<8x8xf32>
    %cst_58 = arith.constant 0.353553385 : f32
    %155 = vector.broadcast %cst_58 : f32 to vector<8x8xf32>
    %156 = arith.mulf %154, %155 : vector<8x8xf32>
    %157 = vector.extract_strided_slice %3 {offsets = [4, 0, 0], sizes = [1, 8, 8], strides = [1, 1, 1]} : vector<5x8x8xf32> to vector<1x8x8xf32>
    %158 = vector.shape_cast %157 : vector<1x8x8xf32> to vector<8x8xf32>
    %159 = arith.addf %156, %158 : vector<8x8xf32>
    %cst_59 = arith.constant dense<0xFF800000> : vector<8xf32>
    %160 = vector.multi_reduction <maximumf>, %159, %cst_59 [1] : vector<8x8xf32> to vector<8xf32>
    %161 = vector.shape_cast %160 : vector<8xf32> to vector<8x1xf32>
    %162 = vector.broadcast %161 : vector<8x1xf32> to vector<8x8xf32>
    %163 = arith.subf %159, %162 : vector<8x8xf32>
    %164 = math.exp %163 : vector<8x8xf32>
    %165 = arith.mulf %164, %5 : vector<8x8xf32>
    %cst_60 = arith.constant dense<0.000000e+00> : vector<8xf32>
    %166 = vector.multi_reduction <add>, %165, %cst_60 [1] : vector<8x8xf32> to vector<8xf32>
    %167 = vector.shape_cast %166 : vector<8xf32> to vector<8x1xf32>
    %cst_61 = arith.constant 9.99999971E-10 : f32
    %168 = vector.broadcast %cst_61 : f32 to vector<8x1xf32>
    %169 = arith.addf %167, %168 : vector<8x1xf32>
    %cst_62 = arith.constant 1.000000e+00 : f32
    %170 = vector.broadcast %cst_62 : f32 to vector<8x1xf32>
    %171 = arith.divf %170, %169 : vector<8x1xf32>
    %172 = vector.broadcast %171 : vector<8x1xf32> to vector<8x8xf32>
    %173 = arith.mulf %165, %172 : vector<8x8xf32>
    %cst_63 = arith.constant dense<0.000000e+00> : vector<8x144xf32>
    %174 = tpu.matmul %173, %124, %cst_63 {dimension_numbers = #tpu.dot_dimension_numbers<[1], [0], [0], [1], [0, 0, 1, 1], [], []>} : vector<8x8xf32>, vector<8x144xf32>, vector<8x144xf32> -> vector<8x144xf32>
    %175 = tpu.concatenate %151, %174 in 1 : vector<8x144xf32>, vector<8x144xf32> -> vector<8x288xf32>
    %c1440 = arith.constant 1440 : index
    %c0_64 = arith.constant 0 : index
    %176 = vector.load %arg3[%c1440, %c0_64] : memref<2304x288xf32, #tpu.memory_space<vmem>>, vector<288x144xf32>
    %cst_65 = arith.constant dense<0.000000e+00> : vector<8x144xf32>
    %177 = tpu.matmul %175, %176, %cst_65 {dimension_numbers = #tpu.dot_dimension_numbers<[1], [0], [0], [1], [0, 0, 1, 1], [], []>} : vector<8x288xf32>, vector<288x144xf32>, vector<8x144xf32> -> vector<8x144xf32>
    %178 = arith.addf %112, %177 : vector<8x144xf32>
    %c4 = arith.constant 4 : index
    %c0_66 = arith.constant 0 : index
    %179 = vector.load %arg4[%c4, %c0_66] : memref<8x288xf32, #tpu.memory_space<vmem>>, vector<1x144xf32>
    %180 = arith.mulf %178, %178 : vector<8x144xf32>
    %181 = arith.mulf %180, %8 : vector<8x144xf32>
    %cst_67 = arith.constant dense<0.000000e+00> : vector<8xf32>
    %182 = vector.multi_reduction <add>, %181, %cst_67 [1] : vector<8x144xf32> to vector<8xf32>
    %183 = vector.shape_cast %182 : vector<8xf32> to vector<8x1xf32>
    %cst_68 = arith.constant 9.99999997E-7 : f32
    %184 = vector.broadcast %cst_68 : f32 to vector<8x1xf32>
    %185 = arith.addf %183, %184 : vector<8x1xf32>
    %186 = math.rsqrt %185 : vector<8x1xf32>
    %187 = vector.broadcast %186 : vector<8x1xf32> to vector<8x144xf32>
    %188 = arith.mulf %178, %187 : vector<8x144xf32>
    %189 = vector.broadcast %179 : vector<1x144xf32> to vector<8x144xf32>
    %190 = arith.mulf %188, %189 : vector<8x144xf32>
    %c1728 = arith.constant 1728 : index
    %c0_69 = arith.constant 0 : index
    %191 = vector.load %arg3[%c1728, %c0_69] : memref<2304x288xf32, #tpu.memory_space<vmem>>, vector<144x288xf32>
    %cst_70 = arith.constant dense<0.000000e+00> : vector<8x288xf32>
    %192 = tpu.matmul %190, %191, %cst_70 {dimension_numbers = #tpu.dot_dimension_numbers<[1], [0], [0], [1], [0, 0, 1, 1], [], []>} : vector<8x144xf32>, vector<144x288xf32>, vector<8x288xf32> -> vector<8x288xf32>
    %c1872 = arith.constant 1872 : index
    %c0_71 = arith.constant 0 : index
    %193 = vector.load %arg3[%c1872, %c0_71] : memref<2304x288xf32, #tpu.memory_space<vmem>>, vector<144x288xf32>
    %cst_72 = arith.constant dense<0.000000e+00> : vector<8x288xf32>
    %194 = tpu.matmul %190, %193, %cst_72 {dimension_numbers = #tpu.dot_dimension_numbers<[1], [0], [0], [1], [0, 0, 1, 1], [], []>} : vector<8x144xf32>, vector<144x288xf32>, vector<8x288xf32> -> vector<8x288xf32>
    %195 = arith.negf %194 : vector<8x288xf32>
    %196 = math.exp %195 : vector<8x288xf32>
    %cst_73 = arith.constant 1.000000e+00 : f32
    %197 = vector.broadcast %cst_73 : f32 to vector<8x288xf32>
    %198 = arith.addf %197, %196 : vector<8x288xf32>
    %199 = arith.divf %197, %198 : vector<8x288xf32>
    %c5 = arith.constant 5 : index
    %c0_74 = arith.constant 0 : index
    %200 = vector.load %arg4[%c5, %c0_74] : memref<8x288xf32, #tpu.memory_space<vmem>>, vector<1x288xf32>
    %201 = vector.broadcast %200 : vector<1x288xf32> to vector<8x288xf32>
    %202 = arith.addf %192, %201 : vector<8x288xf32>
    %203 = arith.negf %202 : vector<8x288xf32>
    %204 = math.exp %203 : vector<8x288xf32>
    %cst_75 = arith.constant 1.000000e+00 : f32
    %205 = vector.broadcast %cst_75 : f32 to vector<8x288xf32>
    %206 = arith.addf %205, %204 : vector<8x288xf32>
    %207 = arith.divf %205, %206 : vector<8x288xf32>
    %208 = arith.mulf %202, %207 : vector<8x288xf32>
    %209 = arith.mulf %192, %199 : vector<8x288xf32>
    %210 = arith.select %11, %208, %209 : vector<8x288xi1>, vector<8x288xf32>
    %c2016 = arith.constant 2016 : index
    %c0_76 = arith.constant 0 : index
    %211 = vector.load %arg3[%c2016, %c0_76] : memref<2304x288xf32, #tpu.memory_space<vmem>>, vector<288x144xf32>
    %cst_77 = arith.constant dense<0.000000e+00> : vector<8x144xf32>
    %212 = tpu.matmul %210, %211, %cst_77 {dimension_numbers = #tpu.dot_dimension_numbers<[1], [0], [0], [1], [0, 0, 1, 1], [], []>} : vector<8x288xf32>, vector<288x144xf32>, vector<8x144xf32> -> vector<8x144xf32>
    %213 = arith.addf %178, %212 : vector<8x144xf32>
    %c6 = arith.constant 6 : index
    %c0_78 = arith.constant 0 : index
    %214 = vector.load %arg4[%c6, %c0_78] : memref<8x288xf32, #tpu.memory_space<vmem>>, vector<1x144xf32>
    %215 = arith.mulf %213, %213 : vector<8x144xf32>
    %216 = arith.mulf %215, %8 : vector<8x144xf32>
    %cst_79 = arith.constant dense<0.000000e+00> : vector<8xf32>
    %217 = vector.multi_reduction <add>, %216, %cst_79 [1] : vector<8x144xf32> to vector<8xf32>
    %218 = vector.shape_cast %217 : vector<8xf32> to vector<8x1xf32>
    %cst_80 = arith.constant 9.99999997E-7 : f32
    %219 = vector.broadcast %cst_80 : f32 to vector<8x1xf32>
    %220 = arith.addf %218, %219 : vector<8x1xf32>
    %221 = math.rsqrt %220 : vector<8x1xf32>
    %222 = vector.broadcast %221 : vector<8x1xf32> to vector<8x144xf32>
    %223 = arith.mulf %213, %222 : vector<8x144xf32>
    %224 = vector.broadcast %214 : vector<1x144xf32> to vector<8x144xf32>
    %225 = arith.mulf %223, %224 : vector<8x144xf32>
    %c0_81 = arith.constant 0 : index
    %c0_82 = arith.constant 0 : index
    %c0_83 = arith.constant 0 : index
    %226 = vector.load %arg5[%c0_81, %c0_82, %c0_83] : memref<1x8x144xf32, #tpu.memory_space<vmem>>, vector<1x8x144xf32>
    %227 = vector.shape_cast %226 : vector<1x8x144xf32> to vector<8x144xf32>
    %228 = vector.shape_cast %225 : vector<8x144xf32> to vector<1x8x144xf32>
    tpu.vector_store %arg5[%c0_81, %c0_82, %c0_83], %228 {strides = array<i32>} : memref<1x8x144xf32, #tpu.memory_space<vmem>>, vector<1x8x144xf32>,
    return
  }
  func.func @transform_0(%arg0: i32) -> (i32, i32, i32) {
    %c0_i32 = arith.constant 0 : i32
    %c0_i32_0 = arith.constant 0 : i32
    %c0_i32_1 = arith.constant 0 : i32
    return %arg0, %c0_i32, %c0_i32_0 : i32, i32, i32
  }
  func.func @transform_1(%arg0: i32) -> (i32, i32, i32, i32) {
    %c0_i32 = arith.constant 0 : i32
    %c0_i32_0 = arith.constant 0 : i32
    %c0_i32_1 = arith.constant 0 : i32
    %c0_i32_2 = arith.constant 0 : i32
    return %arg0, %c0_i32, %c0_i32_0, %c0_i32_1 : i32, i32, i32, i32
  }
  func.func @transform_2(%arg0: i32) -> (i32, i32) {
    %c0_i32 = arith.constant 0 : i32
    %c0_i32_0 = arith.constant 0 : i32
    %c0_i32_1 = arith.constant 0 : i32
    return %c0_i32, %c0_i32_0 : i32, i32
  }
  func.func @transform_3(%arg0: i32) -> (i32, i32) {
    %c0_i32 = arith.constant 0 : i32
    %c0_i32_0 = arith.constant 0 : i32
    %c0_i32_1 = arith.constant 0 : i32
    return %c0_i32, %c0_i32_0 : i32, i32
  }
  func.func @transform_4(%arg0: i32) -> (i32, i32, i32) {
    %c0_i32 = arith.constant 0 : i32
    %c0_i32_0 = arith.constant 0 : i32
    %c0_i32_1 = arith.constant 0 : i32
    return %arg0, %c0_i32, %c0_i32_0 : i32, i32, i32
  }
}

</mosaic_0001>

<llo_original>
// kernel: mul.8
$region0: #{mul.8}
  %s0 = inlined_call_operand.vmem [shape: f32[2,2], index: 0, kind: input, shape index: {}]
  %s1 = inlined_call_operand.vmem [shape: f32[4], index: 1, kind: output, shape index: {}]
  $region1: #{mul.8} parent=0
    #allocation0 [shape = 'u8[4096]{0}', space=vmem, size = 0x1000, scoped, tag = 'scoped mem for output reshape']
    #allocation1 [shape = 'u8[4096]{0}', space=vmem, size = 0x1000, scoped, tag = 'scoped mem for input reshape']
    %s3 = ssub.s32 4, 1
    %v4 = vld [vmem:[%s0] sm:%s3]
    %5 = vst [vmem:[#allocation1] sm:%s3] %v4
    %v6 = vld [vmem:[#allocation1] sm:$0x1]
    %vm7 = vcmask 15360
    %8 = vst.msk [vmem:[#allocation0] sm:$0x1] %vm7, %v6
    %s9 = scalar_lea.vmem [#allocation1], 1
    %v10 = vld [vmem:[%s9] sm:$0x1]
    %11 = vrot.lane.b32.xlu0 %v10, 2
    %v12 = vpop.permute.xlu0 %11
    %vm13 = vcmask 31760
    %14 = vst.msk [vmem:[#allocation0] sm:$0x1] %vm13, %v12
    %s16 = ssub.s32 2, 1
    %v17 = vld [vmem:[#allocation0] sm:%s16]
    %s19 = ssub.s32 2, 1
    %20 = vst [vmem:[%s1] sm:%s19] %v17

// kernel: equivariant_mpflow_forward_batched.1
$region0: #{equivariant_mpflow_forward_batched.1}
  #allocation0 [shape = 'u32[]', space=smem, size = 0x4, offset = 0x4, fixed_abs, tag = 'smem constant byte address 0x4 - core index']
  #allocation1 [shape = 'u32[72,128]{1,0:T(1,128)}', space=vmem, size = 0x9000, scoped, tag = 'internal scratch']
  %s0 = inlined_call_operand.vmem [shape: f32[4,8,144], index: 0, kind: input, shape index: {}]
  %s1 = inlined_call_operand.vmem [shape: f32[4,5,8,8], index: 1, kind: input, shape index: {}]
  %s2 = inlined_call_operand.vmem [shape: f32[2304,288], index: 2, kind: input, shape index: {}]
  %s3 = inlined_call_operand.vmem [shape: f32[8,288], index: 3, kind: input, shape index: {}]
  %s4 = inlined_call_operand.vmem [shape: f32[4,8,144], index: 4, kind: output, shape index: {}]
  %s5 = sld [smem:[#allocation0]]
  $region49: #{equivariant_mpflow_forward_batched.1} parent=0
    _
  %s7 = ssub.s32 1, %s5
  %s8 = scalar_select 0, %s7, %s5
  loop: start=0, step=1, limit=6
  $region2: #{equivariant_mpflow_forward_batched.1} parent=0 // loop_pre_header
    _
  $region3: #{equivariant_mpflow_forward_batched.1} parent=0 // loop_header
    %s10 = sphi 0, %s14
    %p11 = scmp.ge.s32.totalorder %s10, 6
    %s20 = sphi 0, %s22
    %s23 = sphi 0, %s20
    %s24 = sphi 0, %s23
    %s40 = sphi 0, %s24
    %s46 = sphi 0, %s48
    %s49 = sphi 0, %s46
    %s50 = sphi 0, %s49
    %s66 = sphi 0, %s50
    %s70 = sphi 0, %s70
    %s72 = sphi 0, %s70
    %s73 = sphi 0, %s72
    %s87 = sphi 0, %s73
    %s91 = sphi 0, %s91
    %s93 = sphi 0, %s91
    %s94 = sphi 0, %s93
    %s108 = sphi 0, %s94
    %s114 = sphi 0, %s116
    %s117 = sphi 0, %s114
    %s118 = sphi 0, %s117
    %s134 = sphi 0, %s118
  $region4: #{equivariant_mpflow_forward_batched.1} parent=0 // loop_header_branch
    %13 = sbr.rel (%p11) target = $region8
  $region5: #{equivariant_mpflow_forward_batched.1} parent=0 // loop_body
    %s15 = ssub.s32 %s10, 1
    %s16 = ssub.s32 %s10, 2
    %s17 = sadd.s32 %s10, 1
    %s18 = ssub.s32 %s10, %s17
    %p19 = scmp.eq.s32.totalorder %s18, 0
    %s21 = sadd.s32 %s20, 1
    %s22 = scalar_select %p19, %s20, %s21
    %p25 = pneg %p19
    %p26 = scmp.eq.s32.totalorder %s10, 3
    %p27 = por %p25, %p26
    %p28 = scmp.ne.s32.totalorder %s20, %s23
    %p29 = scmp.eq.s32.totalorder %s10, 0
    %p30 = por %p28, %p29
    %p31 = scmp.ne.s32.totalorder %s20, %s23
    %p32 = scmp.eq.s32.totalorder %s15, 3
    %p33 = por %p31, %p32
    %p34 = scmp.ne.s32.totalorder %s23, %s24
    %p35 = scmp.eq.s32.totalorder %s15, 0
    %p36 = por %p34, %p35
    %p37 = scmp.ne.s32.totalorder %s23, %s24
    %p38 = scmp.eq.s32.totalorder %s16, 3
    %p39 = por %p37, %p38
    %p41 = scmp.ne.s32.totalorder %s24, %s40
    %p42 = scmp.eq.s32.totalorder %s16, 0
    %p43 = por %p41, %p42
    %s44 = ssub.s32 %s10, %s17
    %p45 = scmp.eq.s32.totalorder %s44, 0
    %s47 = sadd.s32 %s46, 1
    %s48 = scalar_select %p45, %s46, %s47
    %p51 = pneg %p45
    %p52 = scmp.eq.s32.totalorder %s10, 3
    %p53 = por %p51, %p52
    %p54 = scmp.ne.s32.totalorder %s46, %s49
    %p55 = scmp.eq.s32.totalorder %s10, 0
    %p56 = por %p54, %p55
    %p57 = scmp.ne.s32.totalorder %s46, %s49
    %p58 = scmp.eq.s32.totalorder %s15, 3
    %p59 = por %p57, %p58
    %p60 = scmp.ne.s32.totalorder %s49, %s50
    %p61 = scmp.eq.s32.totalorder %s15, 0
    %p62 = por %p60, %p61
    %p63 = scmp.ne.s32.totalorder %s49, %s50
    %p64 = scmp.eq.s32.totalorder %s16, 3
    %p65 = por %p63, %p64
    %p67 = scmp.ne.s32.totalorder %s50, %s66
    %p68 = scmp.eq.s32.totalorder %s16, 0
    %p69 = por %p67, %p68
    %s71 = sadd.s32 %s70, 1
    %p74 = scmp.eq.s32.totalorder %s10, 3
    %p75 = scmp.ne.s32.totalorder %s70, %s72
    %p76 = scmp.eq.s32.totalorder %s10, 0
    %p77 = por %p75, %p76
    %p78 = scmp.ne.s32.totalorder %s70, %s72
    %p79 = scmp.eq.s32.totalorder %s15, 3
    %p80 = por %p78, %p79
    %p81 = scmp.ne.s32.totalorder %s72, %s73
    %p82 = scmp.eq.s32.totalorder %s15, 0
    %p83 = por %p81, %p82
    %p84 = scmp.ne.s32.totalorder %s72, %s73
    %p85 = scmp.eq.s32.totalorder %s16, 3
    %p86 = por %p84, %p85
    %p88 = scmp.ne.s32.totalorder %s73, %s87
    %p89 = scmp.eq.s32.totalorder %s16, 0
    %p90 = por %p88, %p89
    %s92 = sadd.s32 %s91, 1
    %p95 = scmp.eq.s32.totalorder %s10, 3
    %p96 = scmp.ne.s32.totalorder %s91, %s93
    %p97 = scmp.eq.s32.totalorder %s10, 0
    %p98 = por %p96, %p97
    %p99 = scmp.ne.s32.totalorder %s91, %s93
    %p100 = scmp.eq.s32.totalorder %s15, 3
    %p101 = por %p99, %p100
    %p102 = scmp.ne.s32.totalorder %s93, %s94
    %p103 = scmp.eq.s32.totalorder %s15, 0
    %p104 = por %p102, %p103
    %p105 = scmp.ne.s32.totalorder %s93, %s94
    %p106 = scmp.eq.s32.totalorder %s16, 3
    %p107 = por %p105, %p106
    %p109 = scmp.ne.s32.totalorder %s94, %s108
    %p110 = scmp.eq.s32.totalorder %s16, 0
    %p111 = por %p109, %p110
    %s112 = ssub.s32 %s10, %s17
    %p113 = scmp.eq.s32.totalorder %s112, 0
    %s115 = sadd.s32 %s114, 1
    %s116 = scalar_select %p113, %s114, %s115
    %p119 = pneg %p113
    %p120 = scmp.eq.s32.totalorder %s10, 3
    %p121 = por %p119, %p120
    %p122 = scmp.ne.s32.totalorder %s114, %s117
    %p123 = scmp.eq.s32.totalorder %s10, 0
    %p124 = por %p122, %p123
    %p125 = scmp.ne.s32.totalorder %s114, %s117
    %p126 = scmp.eq.s32.totalorder %s15, 3
    %p127 = por %p125, %p126
    %p128 = scmp.ne.s32.totalorder %s117, %s118
    %p129 = scmp.eq.s32.totalorder %s15, 0
    %p130 = por %p128, %p129
    %p131 = scmp.ne.s32.totalorder %s117, %s118
    %p132 = scmp.eq.s32.totalorder %s16, 3
    %p133 = por %p131, %p132
    %p135 = scmp.ne.s32.totalorder %s118, %s134
    %p136 = scmp.eq.s32.totalorder %s16, 0
    %p137 = por %p135, %p136
    %p138 = scmp.le.s32.totalorder 1, %s10
    %p139 = scmp.lt.s32.totalorder %s10, 5
    %p140 = pnand %p138, %p139
    %p141 = pneg %p140
    // Predicated region
    $region9: #{equivariant_mpflow_forward_batched.1} parent=5 // pred_check
      _
    $region10: #{equivariant_mpflow_forward_batched.1} parent=5 // pred_check_branch
      %143 = sbr.rel (%p140) target = $region12
    $region11: #{equivariant_mpflow_forward_batched.1} parent=5 // pred_region
      %s144 = ssub.s32 %s10, 1
      // Predicated region
      $region13: #{equivariant_mpflow_forward_batched.1} parent=11 // pred_check
        %p145 = pneg %p83
      $region14: #{equivariant_mpflow_forward_batched.1} parent=11 // pred_check_branch
        %147 = sbr.rel (%p145) target = $region16
      $region15: #{equivariant_mpflow_forward_batched.1} parent=11 // pred_region
        _
      $region16: #{equivariant_mpflow_forward_batched.1} parent=11 // pred_fallthru
        _
      // Predicated region
      $region17: #{equivariant_mpflow_forward_batched.1} parent=11 // pred_check
        %p148 = pneg %p104
      $region18: #{equivariant_mpflow_forward_batched.1} parent=11 // pred_check_branch
        %150 = sbr.rel (%p148) target = $region20
      $region19: #{equivariant_mpflow_forward_batched.1} parent=11 // pred_region
        _
      $region20: #{equivariant_mpflow_forward_batched.1} parent=11 // pred_fallthru
        _
    $region12: #{equivariant_mpflow_forward_batched.1} parent=5 // pred_fallthru
      _
    %p151 = scmp.lt.s32.totalorder %s10, 4
    // Predicated region
    $region21: #{equivariant_mpflow_forward_batched.1} parent=5 // pred_check
      %p152 = pneg %p151
    $region22: #{equivariant_mpflow_forward_batched.1} parent=5 // pred_check_branch
      %154 = sbr.rel (%p152) target = $region24
    $region23: #{equivariant_mpflow_forward_batched.1} parent=5 // pred_region
      // Predicated region
      $region25: #{equivariant_mpflow_forward_batched.1} parent=23 // pred_check
        %p155 = pneg %p30
      $region26: #{equivariant_mpflow_forward_batched.1} parent=23 // pred_check_branch
        %157 = sbr.rel (%p155) target = $region28
      $region27: #{equivariant_mpflow_forward_batched.1} parent=23 // pred_region
        %p158 = scmp.lt.s32.totalorder %s10, 3
        %s159 = scalar_select %p158, %s10, 3
        %s160 = smul.addr %s159, 2
        %s161 = smul.addr %s160, 8
        %s162 = scalar_lea.vmem %s0, %s161
      $region28: #{equivariant_mpflow_forward_batched.1} parent=23 // pred_fallthru
        _
      // Predicated region
      $region29: #{equivariant_mpflow_forward_batched.1} parent=23 // pred_check
        %p163 = pneg %p56
      $region30: #{equivariant_mpflow_forward_batched.1} parent=23 // pred_check_branch
        %165 = sbr.rel (%p163) target = $region32
      $region31: #{equivariant_mpflow_forward_batched.1} parent=23 // pred_region
        %p166 = scmp.lt.s32.totalorder %s10, 3
        %s167 = scalar_select %p166, %s10, 3
        %s168 = smul.addr %s167, 5
        %s169 = smul.addr %s168, 8
        %s170 = scalar_lea.vmem %s1, %s169
      $region32: #{equivariant_mpflow_forward_batched.1} parent=23 // pred_fallthru
        _
    $region24: #{equivariant_mpflow_forward_batched.1} parent=5 // pred_fallthru
      _
    %p171 = scmp.le.s32.totalorder 1, %s10
    %p172 = scmp.lt.s32.totalorder %s10, 5
    %p173 = pnand %p171, %p172
    %p174 = pneg %p173
    // Predicated region
    $region33: #{equivariant_mpflow_forward_batched.1} parent=5 // pred_check
      _
    $region34: #{equivariant_mpflow_forward_batched.1} parent=5 // pred_check_branch
      %176 = sbr.rel (%p173) target = $region36
    $region35: #{equivariant_mpflow_forward_batched.1} parent=5 // pred_region
      %s177 = ssub.s32 %s10, 1
      %p178 = scmp.lt.s32.totalorder %s15, 3
      %s179 = scalar_select %p178, %s15, 3
      %s180 = smul.addr %s179, 2
      %s181 = smul.addr %s180, 8
      %s182 = scalar_lea.vmem %s0, %s181
      %p183 = pneg %p36
      %p184 = pneg %p33
      %p185 = scmp.lt.s32.totalorder %s15, 3
      %s186 = scalar_select %p185, %s15, 3
      %s187 = smul.addr %s186, 5
      %s188 = smul.addr %s187, 8
      %s189 = scalar_lea.vmem %s1, %s188
      %p190 = pneg %p62
      %p191 = pneg %p59
      %p192 = pneg %p83
      %p193 = pneg %p80
      %p194 = pneg %p104
      %p195 = pneg %p101
      %p196 = pneg %p130
      %p197 = pneg %p127
      %p198 = scmp.lt.s32.totalorder %s15, 3
      %s199 = scalar_select %p198, %s15, 3
      %s200 = smul.addr %s199, 2
      %s201 = smul.addr %s200, 8
      %s202 = scalar_lea.vmem %s4, %s201
      %p203 = scmp.lt.s32.totalorder %s15, 3
      %s204 = scalar_select %p203, %s15, 3
      %s205 = smul.addr %s204, 2
      %s206 = smul.addr %s205, 8
      %s207 = scalar_lea.vmem %s0, %s206
      %p208 = scmp.lt.s32.totalorder %s15, 3
      %s209 = scalar_select %p208, %s15, 3
      %s210 = smul.addr %s209, 5
      %s211 = smul.addr %s210, 8
      %s212 = scalar_lea.vmem %s1, %s211
      %p213 = scmp.lt.s32.totalorder %s15, 3
      %s214 = scalar_select %p213, %s15, 3
      %s215 = smul.addr %s214, 2
      %s216 = smul.addr %s215, 8
      %s217 = scalar_lea.vmem %s4, %s216
      %v218 = vld [vmem:[%s207] sm:$0xff]
      %v219 = vld [vmem:[%s207 + $0x8] sm:$0xff]
      %v220 = vld [vmem:[%s212] sm:$0xff]
      %v221 = vld [vmem:[%s212 + $0x8] sm:$0xff]
      %v222 = vld [vmem:[%s212 + $0x10] sm:$0xff]
      %v223 = vld [vmem:[%s212 + $0x18] sm:$0xff]
      %v224 = vld [vmem:[%s212 + $0x20] sm:$0xff]
      %s225 = scalar_lea.vmem %s3, 7
      %v226 = vld [vmem:[%s225] ss:$8 sm:$0x3]
      %v228 = vperm.slane %v226, 0
      %v229 = vperm.slane %v226, 1
      %v232 = vlaneseq
      %v233 = vand.u32 %v232, 127
      %v234 = vadd.s32 %v233, 128
      %v235 = vadd.s32 %v233, 256
      %vm236 = vcmp.lt.s32.totalorder %v233, 32
      %vm237 = vcmp.lt.s32.totalorder %v234, 32
      %vm238 = vcmp.lt.s32.totalorder %v235, 32
      %v239 = vld [vmem:[%s3] ss:$8 sm:$0x3]
      %v240 = vmul.f32 %v218, %v218
      %v241 = vmul.f32 %v219, %v219
      %v242 = vmul.f32 %v240, %v228
      %v243 = vmul.f32 %v241, %v229
      %vm244 = vcmask 130048
      %v245 = vsel %vm244, %v243, 0.0
      %v246 = vadd.f32 %v242, %v245
      %247 = vadd.xlane.f32.xlu0 %v246
      %v248 = vpop.xlane.xlu0 %247
      %v249 = vadd.f32 %v248, 1e-06
      %v250 = vrsqrt.pop %v249
      %v251 = vmul.f32 %v250, %v249
      %v252 = vmul.f32 %v251, %v250
      %v253 = vmul.f32 0.5, %v252
      %v254 = vsub.f32 1.5, %v253
      %v255 = vmul.f32 %v250, %v254
      %vm256 = vweird.f32 %v249
      %vm257 = vweird.f32 %v250
      %vm258 = vmor %vm256, %vm257
      %v259 = vsel %vm258, %v250, %v255
      %v260 = vmul.f32 %v218, %v259
      %v261 = vmul.f32 %v219, %v259
      %v263 = vperm.slane %v239, 0
      %v264 = vperm.slane %v239, 1
      %v267 = vmul.f32 %v260, %v263
      %v268 = vmul.f32 %v261, %v264
      %v269 = vld [vmem:[%s2] sm:$0xff]
      %v270 = vld [vmem:[%s2 + $0x8] sm:$0xff]
      %v271 = vld [vmem:[%s2 + $0x18] sm:$0xff]
      %v272 = vld [vmem:[%s2 + $0x20] sm:$0xff]
      %v273 = vld [vmem:[%s2 + $0x30] sm:$0xff]
      %v274 = vld [vmem:[%s2 + $0x38] sm:$0xff]
      %v275 = vld [vmem:[%s2 + $0x48] sm:$0xff]
      %v276 = vld [vmem:[%s2 + $0x50] sm:$0xff]
      %v277 = vld [vmem:[%s2 + $0x60] sm:$0xff]
      %v278 = vld [vmem:[%s2 + $0x68] sm:$0xff]
      %v279 = vld [vmem:[%s2 + $0x78] sm:$0xff]
      %v280 = vld [vmem:[%s2 + $0x80] sm:$0xff]
      %v281 = vld [vmem:[%s2 + $0x90] sm:$0xff]
      %v282 = vld [vmem:[%s2 + $0x98] sm:$0xff]
      %v283 = vld [vmem:[%s2 + $0xa8] sm:$0xff]
      %v284 = vld [vmem:[%s2 + $0xb0] sm:$0xff]
      %v285 = vld [vmem:[%s2 + $0xc0] sm:$0xff]
      %v286 = vld [vmem:[%s2 + $0xc8] sm:$0xff]
      %v287 = vld [vmem:[%s2 + $0xd8] sm:$0xff]
      %v288 = vld [vmem:[%s2 + $0xe0] sm:$0xff]
      %v289 = vld [vmem:[%s2 + $0xf0] sm:$0xff]
      %v290 = vld [vmem:[%s2 + $0xf8] sm:$0xff]
      %v291 = vld [vmem:[%s2 + $0x108] sm:$0xff]
      %v292 = vld [vmem:[%s2 + $0x110] sm:$0xff]
      %v293 = vld [vmem:[%s2 + $0x120] sm:$0xff]
      %v294 = vld [vmem:[%s2 + $0x128] sm:$0xff]
      %v295 = vld [vmem:[%s2 + $0x138] sm:$0xff]
      %v296 = vld [vmem:[%s2 + $0x140] sm:$0xff]
      %v297 = vld [vmem:[%s2 + $0x150] sm:$0xff]
      %v298 = vld [vmem:[%s2 + $0x158] sm:$0xff]
      %v299 = vld [vmem:[%s2 + $0x168] sm:$0xff]
      %v300 = vld [vmem:[%s2 + $0x170] sm:$0xff]
      %v301 = vld [vmem:[%s2 + $0x180] sm:$0xff]
      %v302 = vld [vmem:[%s2 + $0x188] sm:$0xff]
      %v303 = vld [vmem:[%s2 + $0x198] sm:$0xff]
      %v304 = vld [vmem:[%s2 + $0x1a0] sm:$0xff]
      %v306 = vsel %vm244, %v268, 0
      %308 = vmatpush.msra.mxu0 %v299
      %309 = vmatpush.msra.mxu0 %v297
      %310 = vmatpush.msra.mxu0 %v295
      %311 = vmatpush.msra.mxu0 %v293
      %312 = vmatpush.msra.mxu0 %v291
      %313 = vmatpush.msra.mxu0 %v289
      %314 = vmatpush.msra.mxu0 %v287
      %315 = vmatpush.msra.mxu0 %v285
      %316 = vmatpush.msra.mxu0 %v283
      %317 = vmatpush.msra.mxu0 %v281
      %318 = vmatpush.msra.mxu0 %v279
      %319 = vmatpush.msra.mxu0 %v277
      %320 = vmatpush.msra.mxu0 %v275
      %321 = vmatpush.msra.mxu0 %v273
      %322 = vmatpush.msra.mxu0 %v271
      %323 = vmatpush.msra.mxu0 %v269
      %324 = vmatmul.f32.gmra.mxu0 %v267
      %v325 = vpop.f32.mrf.mxu0
      %v326 = vadd.f32 0.0, %v325
      %327 = vdwg.mxu0
      %328 = vmatpush.msra.mxu0 0.0
      %329 = vmatpush.msra.mxu0 0.0
      %330 = vmatpush.msra.mxu0 0.0
      %331 = vmatpush.msra.mxu0 0.0
      %332 = vmatpush.msra.mxu0 0.0
      %333 = vmatpush.msra.mxu0 0.0
      %334 = vmatpush.msra.mxu0 0.0
      %335 = vmatpush.msra.mxu0 0.0
      %336 = vmatpush.msra.mxu0 0.0
      %337 = vmatpush.msra.mxu0 0.0
      %338 = vmatpush.msra.mxu0 0.0
      %339 = vmatpush.msra.mxu0 0.0
      %340 = vmatpush.msra.mxu0 0.0
      %341 = vmatpush.msra.mxu0 0.0
      %342 = vmatpush.msra.mxu0 %v303
      %343 = vmatpush.msra.mxu0 %v301
      %344 = vmatmul.f32.gmra.mxu0 %v306
      %v345 = vpop.f32.mrf.mxu0
      %v346 = vadd.f32 %v326, %v345
      %347 = vdwg.mxu0
      %348 = vmatpush.msra.mxu0 %v300
      %349 = vmatpush.msra.mxu0 %v298
      %350 = vmatpush.msra.mxu0 %v296
      %351 = vmatpush.msra.mxu0 %v294
      %352 = vmatpush.msra.mxu0 %v292
      %353 = vmatpush.msra.mxu0 %v290
      %354 = vmatpush.msra.mxu0 %v288
      %355 = vmatpush.msra.mxu0 %v286
      %356 = vmatpush.msra.mxu0 %v284
      %357 = vmatpush.msra.mxu0 %v282
      %358 = vmatpush.msra.mxu0 %v280
      %359 = vmatpush.msra.mxu0 %v278
      %360 = vmatpush.msra.mxu0 %v276
      %361 = vmatpush.msra.mxu0 %v274
      %362 = vmatpush.msra.mxu0 %v272
      %363 = vmatpush.msra.mxu0 %v270
      %364 = vmatmul.f32.gmra.mxu0 %v267
      %v365 = vpop.f32.mrf.mxu0
      %v366 = vadd.f32 0.0, %v365
      %367 = vdwg.mxu0
      %368 = vmatpush.msra.mxu0 0.0
      %369 = vmatpush.msra.mxu0 0.0
      %370 = vmatpush.msra.mxu0 0.0
      %371 = vmatpush.msra.mxu0 0.0
      %372 = vmatpush.msra.mxu0 0.0
      %373 = vmatpush.msra.mxu0 0.0
      %374 = vmatpush.msra.mxu0 0.0
      %375 = vmatpush.msra.mxu0 0.0
      %376 = vmatpush.msra.mxu0 0.0
      %377 = vmatpush.msra.mxu0 0.0
      %378 = vmatpush.msra.mxu0 0.0
      %379 = vmatpush.msra.mxu0 0.0
      %380 = vmatpush.msra.mxu0 0.0
      %381 = vmatpush.msra.mxu0 0.0
      %382 = vmatpush.msra.mxu0 %v304
      %383 = vmatpush.msra.mxu0 %v302
      %384 = vmatmul.f32.gmra.mxu0 %v306
      %v385 = vpop.f32.mrf.mxu0
      %v386 = vadd.f32 %v366, %v385
      %387 = vdwg.mxu0
      %v388 = vld [vmem:[%s2 + $0x1b0] sm:$0xff]
      %v389 = vld [vmem:[%s2 + $0x1b8] sm:$0xff]
      %v390 = vld [vmem:[%s2 + $0x1c8] sm:$0xff]
      %v391 = vld [vmem:[%s2 + $0x1d0] sm:$0xff]
      %v392 = vld [vmem:[%s2 + $0x1e0] sm:$0xff]
      %v393 = vld [vmem:[%s2 + $0x1e8] sm:$0xff]
      %v394 = vld [vmem:[%s2 + $0x1f8] sm:$0xff]
      %v395 = vld [vmem:[%s2 + $0x200] sm:$0xff]
      %v396 = vld [vmem:[%s2 + $0x210] sm:$0xff]
      %v397 = vld [vmem:[%s2 + $0x218] sm:$0xff]
      %v398 = vld [vmem:[%s2 + $0x228] sm:$0xff]
      %v399 = vld [vmem:[%s2 + $0x230] sm:$0xff]
      %v400 = vld [vmem:[%s2 + $0x240] sm:$0xff]
      %v401 = vld [vmem:[%s2 + $0x248] sm:$0xff]
      %v402 = vld [vmem:[%s2 + $0x258] sm:$0xff]
      %v403 = vld [vmem:[%s2 + $0x260] sm:$0xff]
      %v404 = vld [vmem:[%s2 + $0x270] sm:$0xff]
      %v405 = vld [vmem:[%s2 + $0x278] sm:$0xff]
      %v406 = vld [vmem:[%s2 + $0x288] sm:$0xff]
      %v407 = vld [vmem:[%s2 + $0x290] sm:$0xff]
      %v408 = vld [vmem:[%s2 + $0x2a0] sm:$0xff]
      %v409 = vld [vmem:[%s2 + $0x2a8] sm:$0xff]
      %v410 = vld [vmem:[%s2 + $0x2b8] sm:$0xff]
      %v411 = vld [vmem:[%s2 + $0x2c0] sm:$0xff]
      %v412 = vld [vmem:[%s2 + $0x2d0] sm:$0xff]
      %v413 = vld [vmem:[%s2 + $0x2d8] sm:$0xff]
      %v414 = vld [vmem:[%s2 + $0x2e8] sm:$0xff]
      %v415 = vld [vmem:[%s2 + $0x2f0] sm:$0xff]
      %v416 = vld [vmem:[%s2 + $0x300] sm:$0xff]
      %v417 = vld [vmem:[%s2 + $0x308] sm:$0xff]
      %v418 = vld [vmem:[%s2 + $0x318] sm:$0xff]
      %v419 = vld [vmem:[%s2 + $0x320] sm:$0xff]
      %v420 = vld [vmem:[%s2 + $0x330] sm:$0xff]
      %v421 = vld [vmem:[%s2 + $0x338] sm:$0xff]
      %v422 = vld [vmem:[%s2 + $0x348] sm:$0xff]
      %v423 = vld [vmem:[%s2 + $0x350] sm:$0xff]
      %424 = vmatpush.msra.mxu0 %v418
      %425 = vmatpush.msra.mxu0 %v416
      %426 = vmatpush.msra.mxu0 %v414
      %427 = vmatpush.msra.mxu0 %v412
      %428 = vmatpush.msra.mxu0 %v410
      %429 = vmatpush.msra.mxu0 %v408
      %430 = vmatpush.msra.mxu0 %v406
      %431 = vmatpush.msra.mxu0 %v404
      %432 = vmatpush.msra.mxu0 %v402
      %433 = vmatpush.msra.mxu0 %v400
      %434 = vmatpush.msra.mxu0 %v398
      %435 = vmatpush.msra.mxu0 %v396
      %436 = vmatpush.msra.mxu0 %v394
      %437 = vmatpush.msra.mxu0 %v392
      %438 = vmatpush.msra.mxu0 %v390
      %439 = vmatpush.msra.mxu0 %v388
      %440 = vmatmul.f32.gmra.mxu0 %v267
      %v441 = vpop.f32.mrf.mxu0
      %v442 = vadd.f32 0.0, %v441
      %443 = vdwg.mxu0
      %444 = vmatpush.msra.mxu0 0.0
      %445 = vmatpush.msra.mxu0 0.0
      %446 = vmatpush.msra.mxu0 0.0
      %447 = vmatpush.msra.mxu0 0.0
      %448 = vmatpush.msra.mxu0 0.0
      %449 = vmatpush.msra.mxu0 0.0
      %450 = vmatpush.msra.mxu0 0.0
      %451 = vmatpush.msra.mxu0 0.0
      %452 = vmatpush.msra.mxu0 0.0
      %453 = vmatpush.msra.mxu0 0.0
      %454 = vmatpush.msra.mxu0 0.0
      %455 = vmatpush.msra.mxu0 0.0
      %456 = vmatpush.msra.mxu0 0.0
      %457 = vmatpush.msra.mxu0 0.0
      %458 = vmatpush.msra.mxu0 %v422
      %459 = vmatpush.msra.mxu0 %v420
      %460 = vmatmul.f32.gmra.mxu0 %v306
      %v461 = vpop.f32.mrf.mxu0
      %v462 = vadd.f32 %v442, %v461
      %463 = vdwg.mxu0
      %464 = vmatpush.msra.mxu0 %v419
      %465 = vmatpush.msra.mxu0 %v417
      %466 = vmatpush.msra.mxu0 %v415
      %467 = vmatpush.msra.mxu0 %v413
      %468 = vmatpush.msra.mxu0 %v411
      %469 = vmatpush.msra.mxu0 %v409
      %470 = vmatpush.msra.mxu0 %v407
      %471 = vmatpush.msra.mxu0 %v405
      %472 = vmatpush.msra.mxu0 %v403
      %473 = vmatpush.msra.mxu0 %v401
      %474 = vmatpush.msra.mxu0 %v399
      %475 = vmatpush.msra.mxu0 %v397
      %476 = vmatpush.msra.mxu0 %v395
      %477 = vmatpush.msra.mxu0 %v393
      %478 = vmatpush.msra.mxu0 %v391
      %479 = vmatpush.msra.mxu0 %v389
      %480 = vmatmul.f32.gmra.mxu0 %v267
      %v481 = vpop.f32.mrf.mxu0
      %v482 = vadd.f32 0.0, %v481
      %483 = vdwg.mxu0
      %484 = vmatpush.msra.mxu0 0.0
      %485 = vmatpush.msra.mxu0 0.0
      %486 = vmatpush.msra.mxu0 0.0
      %487 = vmatpush.msra.mxu0 0.0
      %488 = vmatpush.msra.mxu0 0.0
      %489 = vmatpush.msra.mxu0 0.0
      %490 = vmatpush.msra.mxu0 0.0
      %491 = vmatpush.msra.mxu0 0.0
      %492 = vmatpush.msra.mxu0 0.0
      %493 = vmatpush.msra.mxu0 0.0
      %494 = vmatpush.msra.mxu0 0.0
      %495 = vmatpush.msra.mxu0 0.0
      %496 = vmatpush.msra.mxu0 0.0
      %497 = vmatpush.msra.mxu0 0.0
      %498 = vmatpush.msra.mxu0 %v423
      %499 = vmatpush.msra.mxu0 %v421
      %500 = vmatmul.f32.gmra.mxu0 %v306
      %v501 = vpop.f32.mrf.mxu0
      %v502 = vadd.f32 %v482, %v501
      %503 = vdwg.mxu0
      %504 = vmatpush.xpose.msra.mxu0 0.0
      %505 = vmatpush.xpose.msra.mxu0 0.0
      %506 = vmatpush.xpose.msra.mxu0 0.0
      %507 = vmatpush.xpose.msra.mxu0 0.0
      %508 = vmatpush.xpose.msra.mxu0 0.0
      %509 = vmatpush.xpose.msra.mxu0 0.0
      %510 = vmatpush.xpose.msra.mxu0 0.0
      %511 = vmatpush.xpose.msra.mxu0 0.0
      %512 = vmatpush.xpose.msra.mxu0 0.0
      %513 = vmatpush.xpose.msra.mxu0 0.0
      %514 = vmatpush.xpose.msra.mxu0 0.0
      %515 = vmatpush.xpose.msra.mxu0 0.0
      %516 = vmatpush.xpose.msra.mxu0 0.0
      %517 = vmatpush.xpose.msra.mxu0 0.0
      %518 = vmatpush.xpose.msra.mxu0 0.0
      %519 = vmatpush.xpose.msra.mxu0 %v462
      %520 = vmatmul.f32.gmra.mxu0 %v346
      %v521 = vpop.f32.mrf.mxu0
      %v522 = vadd.f32 0.0, %v521
      %523 = vdwg.mxu0
      %v524 = vmul.f32 %v522, 0.35355338
      %v525 = vadd.f32 %v524, %v221
      %vm526 = vcmask 64512
      %v527 = vsel %vm526, %v525, -inf
      %528 = vmax.xlane.f32.xlu0 %v527
      %v529 = vpop.xlane.xlu0 %528
      %v530 = vsub.f32 %v525, %v529
      %v531 = vmul.f32 %v530, 1.442695
      %v532 = vpow.pop %v531
      %v533 = vmul.f32 %v532, %v220
      %v534 = vsel %vm526, %v533, 0.0
      %535 = vadd.xlane.f32.xlu0 %v534
      %v536 = vpop.xlane.xlu0 %535
      %v537 = vadd.f32 %v536, 1e-09
      %v538 = vrcp.pop %v537
      %v539 = vmul.f32 %v537, %v538
      %v540 = vsub.f32 1.0, %v539
      %v541 = vmul.f32 %v538, %v540
      %v542 = vadd.f32 %v538, %v541
      %vm543 = vweird.f32 %v537
      %vm544 = vweird.f32 %v538
      %vm545 = vmor %vm543, %vm544
      %v546 = vsel %vm545, %v538, %v542
      %v547 = vand.u32 2147483647, %v537
      %vm548 = vcmp.eq.f32.partialorder %v547, 8.507059e+37
      %v549 = vand.u32 %v537, 2147483648
      %v550 = vor.u32 1.1754944e-38, %v549
      %v551 = vsel %vm548, %v550, %v546
      %v552 = vmul.f32 1.0, %v551
      %v553 = vmul.f32 %v533, %v552
      %v555 = vsel %vm526, %v553, 0
      %557 = vmatpush.msra.mxu0 0.0
      %558 = vmatpush.msra.mxu0 0.0
      %559 = vmatpush.msra.mxu0 0.0
      %560 = vmatpush.msra.mxu0 0.0
      %561 = vmatpush.msra.mxu0 0.0
      %562 = vmatpush.msra.mxu0 0.0
      %563 = vmatpush.msra.mxu0 0.0
      %564 = vmatpush.msra.mxu0 0.0
      %565 = vmatpush.msra.mxu0 0.0
      %566 = vmatpush.msra.mxu0 0.0
      %567 = vmatpush.msra.mxu0 0.0
      %568 = vmatpush.msra.mxu0 0.0
      %569 = vmatpush.msra.mxu0 0.0
      %570 = vmatpush.msra.mxu0 0.0
      %571 = vmatpush.msra.mxu0 0.0
      %572 = vmatpush.msra.mxu0 %v267
      %573 = vmatmul.f32.gmra.mxu0 %v555
      %v574 = vpop.f32.mrf.mxu0
      %v575 = vadd.f32 0.0, %v574
      %576 = vdwg.mxu0
      %577 = vmatpush.msra.mxu0 0.0
      %578 = vmatpush.msra.mxu0 0.0
      %579 = vmatpush.msra.mxu0 0.0
      %580 = vmatpush.msra.mxu0 0.0
      %581 = vmatpush.msra.mxu0 0.0
      %582 = vmatpush.msra.mxu0 0.0
      %583 = vmatpush.msra.mxu0 0.0
      %584 = vmatpush.msra.mxu0 0.0
      %585 = vmatpush.msra.mxu0 0.0
      %586 = vmatpush.msra.mxu0 0.0
      %587 = vmatpush.msra.mxu0 0.0
      %588 = vmatpush.msra.mxu0 0.0
      %589 = vmatpush.msra.mxu0 0.0
      %590 = vmatpush.msra.mxu0 0.0
      %591 = vmatpush.msra.mxu0 0.0
      %592 = vmatpush.msra.mxu0 %v268
      %593 = vmatmul.f32.gmra.mxu0 %v555
      %v594 = vpop.f32.mrf.mxu0
      %v595 = vadd.f32 0.0, %v594
      %596 = vdwg.mxu0
      %597 = vmatpush.xpose.msra.mxu0 0.0
      %598 = vmatpush.xpose.msra.mxu0 0.0
      %599 = vmatpush.xpose.msra.mxu0 0.0
      %600 = vmatpush.xpose.msra.mxu0 0.0
      %601 = vmatpush.xpose.msra.mxu0 0.0
      %602 = vmatpush.xpose.msra.mxu0 0.0
      %603 = vmatpush.xpose.msra.mxu0 0.0
      %604 = vmatpush.xpose.msra.mxu0 0.0
      %605 = vmatpush.xpose.msra.mxu0 0.0
      %606 = vmatpush.xpose.msra.mxu0 0.0
      %607 = vmatpush.xpose.msra.mxu0 0.0
      %608 = vmatpush.xpose.msra.mxu0 0.0
      %609 = vmatpush.xpose.msra.mxu0 0.0
      %610 = vmatpush.xpose.msra.mxu0 0.0
      %611 = vmatpush.xpose.msra.mxu0 0.0
      %612 = vmatpush.xpose.msra.mxu0 %v502
      %613 = vmatmul.f32.gmra.mxu0 %v386
      %v614 = vpop.f32.mrf.mxu0
      %v615 = vadd.f32 0.0, %v614
      %616 = vdwg.mxu0
      %v617 = vmul.f32 %v615, 0.35355338
      %v618 = vadd.f32 %v617, %v222
      %v619 = vsel %vm526, %v618, -inf
      %620 = vmax.xlane.f32.xlu0 %v619
      %v621 = vpop.xlane.xlu0 %620
      %v622 = vsub.f32 %v618, %v621
      %v623 = vmul.f32 %v622, 1.442695
      %v624 = vpow.pop %v623
      %v625 = vmul.f32 %v624, %v220
      %v626 = vsel %vm526, %v625, 0.0
      %627 = vadd.xlane.f32.xlu0 %v626
      %v628 = vpop.xlane.xlu0 %627
      %v629 = vadd.f32 %v628, 1e-09
      %v630 = vrcp.pop %v629
      %v631 = vmul.f32 %v629, %v630
      %v632 = vsub.f32 1.0, %v631
      %v633 = vmul.f32 %v630, %v632
      %v634 = vadd.f32 %v630, %v633
      %vm635 = vweird.f32 %v629
      %vm636 = vweird.f32 %v630
      %vm637 = vmor %vm635, %vm636
      %v638 = vsel %vm637, %v630, %v634
      %v639 = vand.u32 2147483647, %v629
      %vm640 = vcmp.eq.f32.partialorder %v639, 8.507059e+37
      %v641 = vand.u32 %v629, 2147483648
      %v642 = vor.u32 1.1754944e-38, %v641
      %v643 = vsel %vm640, %v642, %v638
      %v644 = vmul.f32 1.0, %v643
      %v645 = vmul.f32 %v625, %v644
      %v647 = vsel %vm526, %v645, 0
      %649 = vmatpush.msra.mxu0 0.0
      %650 = vmatpush.msra.mxu0 0.0
      %651 = vmatpush.msra.mxu0 0.0
      %652 = vmatpush.msra.mxu0 0.0
      %653 = vmatpush.msra.mxu0 0.0
      %654 = vmatpush.msra.mxu0 0.0
      %655 = vmatpush.msra.mxu0 0.0
      %656 = vmatpush.msra.mxu0 0.0
      %657 = vmatpush.msra.mxu0 0.0
      %658 = vmatpush.msra.mxu0 0.0
      %659 = vmatpush.msra.mxu0 0.0
      %660 = vmatpush.msra.mxu0 0.0
      %661 = vmatpush.msra.mxu0 0.0
      %662 = vmatpush.msra.mxu0 0.0
      %663 = vmatpush.msra.mxu0 0.0
      %664 = vmatpush.msra.mxu0 %v267
      %665 = vmatmul.f32.gmra.mxu0 %v647
      %v666 = vpop.f32.mrf.mxu0
      %v667 = vadd.f32 0.0, %v666
      %668 = vdwg.mxu0
      %669 = vmatpush.msra.mxu0 0.0
      %670 = vmatpush.msra.mxu0 0.0
      %671 = vmatpush.msra.mxu0 0.0
      %672 = vmatpush.msra.mxu0 0.0
      %673 = vmatpush.msra.mxu0 0.0
      %674 = vmatpush.msra.mxu0 0.0
      %675 = vmatpush.msra.mxu0 0.0
      %676 = vmatpush.msra.mxu0 0.0
      %677 = vmatpush.msra.mxu0 0.0
      %678 = vmatpush.msra.mxu0 0.0
      %679 = vmatpush.msra.mxu0 0.0
      %680 = vmatpush.msra.mxu0 0.0
      %681 = vmatpush.msra.mxu0 0.0
      %682 = vmatpush.msra.mxu0 0.0
      %683 = vmatpush.msra.mxu0 0.0
      %684 = vmatpush.msra.mxu0 %v268
      %685 = vmatmul.f32.gmra.mxu0 %v647
      %v686 = vpop.f32.mrf.mxu0
      %v687 = vadd.f32 0.0, %v686
      %688 = vdwg.mxu0
      %691 = vrot.lane.b32.xlu0 %v667, 16
      %v692 = vpop.permute.xlu0 %691
      %693 = vrot.lane.b32.xlu0 %v687, 16
      %v694 = vpop.permute.xlu0 %693
      %v695 = vsel %vm244, %v692, %v694
      %v697 = vsel %vm244, %v595, %v692
      %v698 = vld [vmem:[%s2 + $0x360] sm:$0xff]
      %v699 = vld [vmem:[%s2 + $0x368] sm:$0xff]
      %v700 = vld [vmem:[%s2 + $0x378] sm:$0xff]
      %v701 = vld [vmem:[%s2 + $0x380] sm:$0xff]
      %v702 = vld [vmem:[%s2 + $0x390] sm:$0xff]
      %v703 = vld [vmem:[%s2 + $0x398] sm:$0xff]
      %v704 = vld [vmem:[%s2 + $0x3a8] sm:$0xff]
      %v705 = vld [vmem:[%s2 + $0x3b0] sm:$0xff]
      %v706 = vld [vmem:[%s2 + $0x3c0] sm:$0xff]
      %v707 = vld [vmem:[%s2 + $0x3c8] sm:$0xff]
      %v708 = vld [vmem:[%s2 + $0x3d8] sm:$0xff]
      %v709 = vld [vmem:[%s2 + $0x3e0] sm:$0xff]
      %v710 = vld [vmem:[%s2 + $0x3f0] sm:$0xff]
      %v711 = vld [vmem:[%s2 + $0x3f8] sm:$0xff]
      %v712 = vld [vmem:[%s2 + $0x408] sm:$0xff]
      %v713 = vld [vmem:[%s2 + $0x410] sm:$0xff]
      %v714 = vld [vmem:[%s2 + $0x420] sm:$0xff]
      %v715 = vld [vmem:[%s2 + $0x428] sm:$0xff]
      %v716 = vld [vmem:[%s2 + $0x438] sm:$0xff]
      %v717 = vld [vmem:[%s2 + $0x440] sm:$0xff]
      %v718 = vld [vmem:[%s2 + $0x450] sm:$0xff]
      %v719 = vld [vmem:[%s2 + $0x458] sm:$0xff]
      %v720 = vld [vmem:[%s2 + $0x468] sm:$0xff]
      %v721 = vld [vmem:[%s2 + $0x470] sm:$0xff]
      %v722 = vld [vmem:[%s2 + $0x480] sm:$0xff]
      %v723 = vld [vmem:[%s2 + $0x488] sm:$0xff]
      %v724 = vld [vmem:[%s2 + $0x498] sm:$0xff]
      %v725 = vld [vmem:[%s2 + $0x4a0] sm:$0xff]
      %v726 = vld [vmem:[%s2 + $0x4b0] sm:$0xff]
      %v727 = vld [vmem:[%s2 + $0x4b8] sm:$0xff]
      %v728 = vld [vmem:[%s2 + $0x4c8] sm:$0xff]
      %v729 = vld [vmem:[%s2 + $0x4d0] sm:$0xff]
      %v730 = vld [vmem:[%s2 + $0x4e0] sm:$0xff]
      %v731 = vld [vmem:[%s2 + $0x4e8] sm:$0xff]
      %v732 = vld [vmem:[%s2 + $0x4f8] sm:$0xff]
      %v733 = vld [vmem:[%s2 + $0x500] sm:$0xff]
      %v734 = vld [vmem:[%s2 + $0x510] sm:$0xff]
      %v735 = vld [vmem:[%s2 + $0x518] sm:$0xff]
      %v736 = vld [vmem:[%s2 + $0x528] sm:$0xff]
      %v737 = vld [vmem:[%s2 + $0x530] sm:$0xff]
      %v738 = vld [vmem:[%s2 + $0x540] sm:$0xff]
      %v739 = vld [vmem:[%s2 + $0x548] sm:$0xff]
      %v740 = vld [vmem:[%s2 + $0x558] sm:$0xff]
      %v741 = vld [vmem:[%s2 + $0x560] sm:$0xff]
      %v742 = vld [vmem:[%s2 + $0x570] sm:$0xff]
      %v743 = vld [vmem:[%s2 + $0x578] sm:$0xff]
      %v744 = vld [vmem:[%s2 + $0x588] sm:$0xff]
      %v745 = vld [vmem:[%s2 + $0x590] sm:$0xff]
      %v746 = vld [vmem:[%s2 + $0x5a0] sm:$0xff]
      %v747 = vld [vmem:[%s2 + $0x5a8] sm:$0xff]
      %v748 = vld [vmem:[%s2 + $0x5b8] sm:$0xff]
      %v749 = vld [vmem:[%s2 + $0x5c0] sm:$0xff]
      %v750 = vld [vmem:[%s2 + $0x5d0] sm:$0xff]
      %v751 = vld [vmem:[%s2 + $0x5d8] sm:$0xff]
      %v752 = vld [vmem:[%s2 + $0x5e8] sm:$0xff]
      %v753 = vld [vmem:[%s2 + $0x5f0] sm:$0xff]
      %v754 = vld [vmem:[%s2 + $0x600] sm:$0xff]
      %v755 = vld [vmem:[%s2 + $0x608] sm:$0xff]
      %v756 = vld [vmem:[%s2 + $0x618] sm:$0xff]
      %v757 = vld [vmem:[%s2 + $0x620] sm:$0xff]
      %v758 = vld [vmem:[%s2 + $0x630] sm:$0xff]
      %v759 = vld [vmem:[%s2 + $0x638] sm:$0xff]
      %v760 = vld [vmem:[%s2 + $0x648] sm:$0xff]
      %v761 = vld [vmem:[%s2 + $0x650] sm:$0xff]
      %v762 = vld [vmem:[%s2 + $0x660] sm:$0xff]
      %v763 = vld [vmem:[%s2 + $0x668] sm:$0xff]
      %v764 = vld [vmem:[%s2 + $0x678] sm:$0xff]
      %v765 = vld [vmem:[%s2 + $0x680] sm:$0xff]
      %v766 = vld [vmem:[%s2 + $0x690] sm:$0xff]
      %v767 = vld [vmem:[%s2 + $0x698] sm:$0xff]
      %v768 = vld [vmem:[%s2 + $0x6a8] sm:$0xff]
      %v769 = vld [vmem:[%s2 + $0x6b0] sm:$0xff]
      %vm770 = vcmask 261120
      %v771 = vsel %vm770, %v695, 0
      %773 = vmatpush.msra.mxu0 %v728
      %774 = vmatpush.msra.mxu0 %v726
      %775 = vmatpush.msra.mxu0 %v724
      %776 = vmatpush.msra.mxu0 %v722
      %777 = vmatpush.msra.mxu0 %v720
      %778 = vmatpush.msra.mxu0 %v718
      %779 = vmatpush.msra.mxu0 %v716
      %780 = vmatpush.msra.mxu0 %v714
      %781 = vmatpush.msra.mxu0 %v712
      %782 = vmatpush.msra.mxu0 %v710
      %783 = vmatpush.msra.mxu0 %v708
      %784 = vmatpush.msra.mxu0 %v706
      %785 = vmatpush.msra.mxu0 %v704
      %786 = vmatpush.msra.mxu0 %v702
      %787 = vmatpush.msra.mxu0 %v700
      %788 = vmatpush.msra.mxu0 %v698
      %789 = vmatmul.f32.gmra.mxu0 %v575
      %v790 = vpop.f32.mrf.mxu0
      %v791 = vadd.f32 0.0, %v790
      %792 = vdwg.mxu0
      %793 = vmatpush.msra.mxu0 %v760
      %794 = vmatpush.msra.mxu0 %v758
      %795 = vmatpush.msra.mxu0 %v756
      %796 = vmatpush.msra.mxu0 %v754
      %797 = vmatpush.msra.mxu0 %v752
      %798 = vmatpush.msra.mxu0 %v750
      %799 = vmatpush.msra.mxu0 %v748
      %800 = vmatpush.msra.mxu0 %v746
      %801 = vmatpush.msra.mxu0 %v744
      %802 = vmatpush.msra.mxu0 %v742
      %803 = vmatpush.msra.mxu0 %v740
      %804 = vmatpush.msra.mxu0 %v738
      %805 = vmatpush.msra.mxu0 %v736
      %806 = vmatpush.msra.mxu0 %v734
      %807 = vmatpush.msra.mxu0 %v732
      %808 = vmatpush.msra.mxu0 %v730
      %809 = vmatmul.f32.gmra.mxu0 %v697
      %v810 = vpop.f32.mrf.mxu0
      %v811 = vadd.f32 %v791, %v810
      %812 = vdwg.mxu0
      %813 = vmatpush.msra.mxu0 0.0
      %814 = vmatpush.msra.mxu0 0.0
      %815 = vmatpush.msra.mxu0 0.0
      %816 = vmatpush.msra.mxu0 0.0
      %817 = vmatpush.msra.mxu0 0.0
      %818 = vmatpush.msra.mxu0 0.0
      %819 = vmatpush.msra.mxu0 0.0
      %820 = vmatpush.msra.mxu0 0.0
      %821 = vmatpush.msra.mxu0 0.0
      %822 = vmatpush.msra.mxu0 0.0
      %823 = vmatpush.msra.mxu0 0.0
      %824 = vmatpush.msra.mxu0 0.0
      %825 = vmatpush.msra.mxu0 %v768
      %826 = vmatpush.msra.mxu0 %v766
      %827 = vmatpush.msra.mxu0 %v764
      %828 = vmatpush.msra.mxu0 %v762
      %829 = vmatmul.f32.gmra.mxu0 %v771
      %v830 = vpop.f32.mrf.mxu0
      %v831 = vadd.f32 %v811, %v830
      %832 = vdwg.mxu0
      %833 = vmatpush.msra.mxu0 %v729
      %834 = vmatpush.msra.mxu0 %v727
      %835 = vmatpush.msra.mxu0 %v725
      %836 = vmatpush.msra.mxu0 %v723
      %837 = vmatpush.msra.mxu0 %v721
      %838 = vmatpush.msra.mxu0 %v719
      %839 = vmatpush.msra.mxu0 %v717
      %840 = vmatpush.msra.mxu0 %v715
      %841 = vmatpush.msra.mxu0 %v713
      %842 = vmatpush.msra.mxu0 %v711
      %843 = vmatpush.msra.mxu0 %v709
      %844 = vmatpush.msra.mxu0 %v707
      %845 = vmatpush.msra.mxu0 %v705
      %846 = vmatpush.msra.mxu0 %v703
      %847 = vmatpush.msra.mxu0 %v701
      %848 = vmatpush.msra.mxu0 %v699
      %849 = vmatmul.f32.gmra.mxu0 %v575
      %v850 = vpop.f32.mrf.mxu0
      %v851 = vadd.f32 0.0, %v850
      %852 = vdwg.mxu0
      %853 = vmatpush.msra.mxu0 %v761
      %854 = vmatpush.msra.mxu0 %v759
      %855 = vmatpush.msra.mxu0 %v757
      %856 = vmatpush.msra.mxu0 %v755
      %857 = vmatpush.msra.mxu0 %v753
      %858 = vmatpush.msra.mxu0 %v751
      %859 = vmatpush.msra.mxu0 %v749
      %860 = vmatpush.msra.mxu0 %v747
      %861 = vmatpush.msra.mxu0 %v745
      %862 = vmatpush.msra.mxu0 %v743
      %863 = vmatpush.msra.mxu0 %v741
      %864 = vmatpush.msra.mxu0 %v739
      %865 = vmatpush.msra.mxu0 %v737
      %866 = vmatpush.msra.mxu0 %v735
      %867 = vmatpush.msra.mxu0 %v733
      %868 = vmatpush.msra.mxu0 %v731
      %869 = vmatmul.f32.gmra.mxu0 %v697
      %v870 = vpop.f32.mrf.mxu0
      %v871 = vadd.f32 %v851, %v870
      %872 = vdwg.mxu0
      %873 = vmatpush.msra.mxu0 0.0
      %874 = vmatpush.msra.mxu0 0.0
      %875 = vmatpush.msra.mxu0 0.0
      %876 = vmatpush.msra.mxu0 0.0
      %877 = vmatpush.msra.mxu0 0.0
      %878 = vmatpush.msra.mxu0 0.0
      %879 = vmatpush.msra.mxu0 0.0
      %880 = vmatpush.msra.mxu0 0.0
      %881 = vmatpush.msra.mxu0 0.0
      %882 = vmatpush.msra.mxu0 0.0
      %883 = vmatpush.msra.mxu0 0.0
      %884 = vmatpush.msra.mxu0 0.0
      %885 = vmatpush.msra.mxu0 %v769
      %886 = vmatpush.msra.mxu0 %v767
      %887 = vmatpush.msra.mxu0 %v765
      %888 = vmatpush.msra.mxu0 %v763
      %889 = vmatmul.f32.gmra.mxu0 %v771
      %v890 = vpop.f32.mrf.mxu0
      %v891 = vadd.f32 %v871, %v890
      %892 = vdwg.mxu0
      %v893 = vadd.f32 %v218, %v831
      %v894 = vadd.f32 %v219, %v891
      %s895 = scalar_lea.vmem %s3, 1
      %v896 = vld [vmem:[%s895] ss:$8 sm:$0x3]
      %v897 = vmul.f32 %v893, %v893
      %v898 = vmul.f32 %v894, %v894
      %v899 = vmul.f32 %v897, %v228
      %v900 = vmul.f32 %v898, %v229
      %v901 = vsel %vm244, %v900, 0.0
      %v902 = vadd.f32 %v899, %v901
      %903 = vadd.xlane.f32.xlu0 %v902
      %v904 = vpop.xlane.xlu0 %903
      %v905 = vadd.f32 %v904, 1e-06
      %v906 = vrsqrt.pop %v905
      %v907 = vmul.f32 %v906, %v905
      %v908 = vmul.f32 %v907, %v906
      %v909 = vmul.f32 0.5, %v908
      %v910 = vsub.f32 1.5, %v909
      %v911 = vmul.f32 %v906, %v910
      %vm912 = vweird.f32 %v905
      %vm913 = vweird.f32 %v906
      %vm914 = vmor %vm912, %vm913
      %v915 = vsel %vm914, %v906, %v911
      %v916 = vmul.f32 %v893, %v915
      %v917 = vmul.f32 %v894, %v915
      %v919 = vperm.slane %v896, 0
      %v920 = vperm.slane %v896, 1
      %v923 = vmul.f32 %v916, %v919
      %v924 = vmul.f32 %v917, %v920
      %v925 = vld [vmem:[%s2 + $0x6c0] sm:$0xff]
      %v926 = vld [vmem:[%s2 + $0x6c8] sm:$0xff]
      %v927 = vld [vmem:[%s2 + $0x6d0] sm:$0xff]
      %v928 = vld [vmem:[%s2 + $0x6d8] sm:$0xff]
      %v929 = vld [vmem:[%s2 + $0x6e0] sm:$0xff]
      %v930 = vld [vmem:[%s2 + $0x6e8] sm:$0xff]
      %v931 = vld [vmem:[%s2 + $0x6f0] sm:$0xff]
      %v932 = vld [vmem:[%s2 + $0x6f8] sm:$0xff]
      %v933 = vld [vmem:[%s2 + $0x700] sm:$0xff]
      %v934 = vld [vmem:[%s2 + $0x708] sm:$0xff]
      %v935 = vld [vmem:[%s2 + $0x710] sm:$0xff]
      %v936 = vld [vmem:[%s2 + $0x718] sm:$0xff]
      %v937 = vld [vmem:[%s2 + $0x720] sm:$0xff]
      %v938 = vld [vmem:[%s2 + $0x728] sm:$0xff]
      %v939 = vld [vmem:[%s2 + $0x730] sm:$0xff]
      %v940 = vld [vmem:[%s2 + $0x738] sm:$0xff]
      %v941 = vld [vmem:[%s2 + $0x740] sm:$0xff]
      %v942 = vld [vmem:[%s2 + $0x748] sm:$0xff]
      %v943 = vld [vmem:[%s2 + $0x750] sm:$0xff]
      %v944 = vld [vmem:[%s2 + $0x758] sm:$0xff]
      %v945 = vld [vmem:[%s2 + $0x760] sm:$0xff]
      %v946 = vld [vmem:[%s2 + $0x768] sm:$0xff]
      %v947 = vld [vmem:[%s2 + $0x770] sm:$0xff]
      %v948 = vld [vmem:[%s2 + $0x778] sm:$0xff]
      %v949 = vld [vmem:[%s2 + $0x780] sm:$0xff]
      %v950 = vld [vmem:[%s2 + $0x788] sm:$0xff]
      %v951 = vld [vmem:[%s2 + $0x790] sm:$0xff]
      %v952 = vld [vmem:[%s2 + $0x798] sm:$0xff]
      %v953 = vld [vmem:[%s2 + $0x7a0] sm:$0xff]
      %v954 = vld [vmem:[%s2 + $0x7a8] sm:$0xff]
      %v955 = vld [vmem:[%s2 + $0x7b0] sm:$0xff]
      %v956 = vld [vmem:[%s2 + $0x7b8] sm:$0xff]
      %v957 = vld [vmem:[%s2 + $0x7c0] sm:$0xff]
      %v958 = vld [vmem:[%s2 + $0x7c8] sm:$0xff]
      %v959 = vld [vmem:[%s2 + $0x7d0] sm:$0xff]
      %v960 = vld [vmem:[%s2 + $0x7d8] sm:$0xff]
      %v961 = vld [vmem:[%s2 + $0x7e0] sm:$0xff]
      %v962 = vld [vmem:[%s2 + $0x7e8] sm:$0xff]
      %v963 = vld [vmem:[%s2 + $0x7f0] sm:$0xff]
      %v964 = vld [vmem:[%s2 + $0x7f8] sm:$0xff]
      %v965 = vld [vmem:[%s2 + $0x800] sm:$0xff]
      %v966 = vld [vmem:[%s2 + $0x808] sm:$0xff]
      %v967 = vld [vmem:[%s2 + $0x810] sm:$0xff]
      %v968 = vld [vmem:[%s2 + $0x818] sm:$0xff]
      %v969 = vld [vmem:[%s2 + $0x820] sm:$0xff]
      %v970 = vld [vmem:[%s2 + $0x828] sm:$0xff]
      %v971 = vld [vmem:[%s2 + $0x830] sm:$0xff]
      %v972 = vld [vmem:[%s2 + $0x838] sm:$0xff]
      %v973 = vld [vmem:[%s2 + $0x840] sm:$0xff]
      %v974 = vld [vmem:[%s2 + $0x848] sm:$0xff]
      %v975 = vld [vmem:[%s2 + $0x850] sm:$0xff]
      %v976 = vld [vmem:[%s2 + $0x858] sm:$0xff]
      %v977 = vld [vmem:[%s2 + $0x860] sm:$0xff]
      %v978 = vld [vmem:[%s2 + $0x868] sm:$0xff]
      %v980 = vsel %vm244, %v924, 0
      %982 = vmatpush.msra.mxu0 %v970
      %983 = vmatpush.msra.mxu0 %v967
      %984 = vmatpush.msra.mxu0 %v964
      %985 = vmatpush.msra.mxu0 %v961
      %986 = vmatpush.msra.mxu0 %v958
      %987 = vmatpush.msra.mxu0 %v955
      %988 = vmatpush.msra.mxu0 %v952
      %989 = vmatpush.msra.mxu0 %v949
      %990 = vmatpush.msra.mxu0 %v946
      %991 = vmatpush.msra.mxu0 %v943
      %992 = vmatpush.msra.mxu0 %v940
      %993 = vmatpush.msra.mxu0 %v937
      %994 = vmatpush.msra.mxu0 %v934
      %995 = vmatpush.msra.mxu0 %v931
      %996 = vmatpush.msra.mxu0 %v928
      %997 = vmatpush.msra.mxu0 %v925
      %998 = vmatmul.f32.gmra.mxu0 %v923
      %v999 = vpop.f32.mrf.mxu0
      %v1000 = vadd.f32 0.0, %v999
      %1001 = vdwg.mxu0
      %1002 = vmatpush.msra.mxu0 0.0
      %1003 = vmatpush.msra.mxu0 0.0
      %1004 = vmatpush.msra.mxu0 0.0
      %1005 = vmatpush.msra.mxu0 0.0
      %1006 = vmatpush.msra.mxu0 0.0
      %1007 = vmatpush.msra.mxu0 0.0
      %1008 = vmatpush.msra.mxu0 0.0
      %1009 = vmatpush.msra.mxu0 0.0
      %1010 = vmatpush.msra.mxu0 0.0
      %1011 = vmatpush.msra.mxu0 0.0
      %1012 = vmatpush.msra.mxu0 0.0
      %1013 = vmatpush.msra.mxu0 0.0
      %1014 = vmatpush.msra.mxu0 0.0
      %1015 = vmatpush.msra.mxu0 0.0
      %1016 = vmatpush.msra.mxu0 %v976
      %1017 = vmatpush.msra.mxu0 %v973
      %1018 = vmatmul.f32.gmra.mxu0 %v980
      %v1019 = vpop.f32.mrf.mxu0
      %v1020 = vadd.f32 %v1000, %v1019
      %1021 = vdwg.mxu0
      %1022 = vmatpush.msra.mxu0 %v971
      %1023 = vmatpush.msra.mxu0 %v968
      %1024 = vmatpush.msra.mxu0 %v965
      %1025 = vmatpush.msra.mxu0 %v962
      %1026 = vmatpush.msra.mxu0 %v959
      %1027 = vmatpush.msra.mxu0 %v956
      %1028 = vmatpush.msra.mxu0 %v953
      %1029 = vmatpush.msra.mxu0 %v950
      %1030 = vmatpush.msra.mxu0 %v947
      %1031 = vmatpush.msra.mxu0 %v944
      %1032 = vmatpush.msra.mxu0 %v941
      %1033 = vmatpush.msra.mxu0 %v938
      %1034 = vmatpush.msra.mxu0 %v935
      %1035 = vmatpush.msra.mxu0 %v932
      %1036 = vmatpush.msra.mxu0 %v929
      %1037 = vmatpush.msra.mxu0 %v926
      %1038 = vmatmul.f32.gmra.mxu0 %v923
      %v1039 = vpop.f32.mrf.mxu0
      %v1040 = vadd.f32 0.0, %v1039
      %1041 = vdwg.mxu0
      %1042 = vmatpush.msra.mxu0 0.0
      %1043 = vmatpush.msra.mxu0 0.0
      %1044 = vmatpush.msra.mxu0 0.0
      %1045 = vmatpush.msra.mxu0 0.0
      %1046 = vmatpush.msra.mxu0 0.0
      %1047 = vmatpush.msra.mxu0 0.0
      %1048 = vmatpush.msra.mxu0 0.0
      %1049 = vmatpush.msra.mxu0 0.0
      %1050 = vmatpush.msra.mxu0 0.0
      %1051 = vmatpush.msra.mxu0 0.0
      %1052 = vmatpush.msra.mxu0 0.0
      %1053 = vmatpush.msra.mxu0 0.0
      %1054 = vmatpush.msra.mxu0 0.0
      %1055 = vmatpush.msra.mxu0 0.0
      %1056 = vmatpush.msra.mxu0 %v977
      %1057 = vmatpush.msra.mxu0 %v974
      %1058 = vmatmul.f32.gmra.mxu0 %v980
      %v1059 = vpop.f32.mrf.mxu0
      %v1060 = vadd.f32 %v1040, %v1059
      %1061 = vdwg.mxu0
      %1062 = vmatpush.msra.mxu0 %v972
      %1063 = vmatpush.msra.mxu0 %v969
      %1064 = vmatpush.msra.mxu0 %v966
      %1065 = vmatpush.msra.mxu0 %v963
      %1066 = vmatpush.msra.mxu0 %v960
      %1067 = vmatpush.msra.mxu0 %v957
      %1068 = vmatpush.msra.mxu0 %v954
      %1069 = vmatpush.msra.mxu0 %v951
      %1070 = vmatpush.msra.mxu0 %v948
      %1071 = vmatpush.msra.mxu0 %v945
      %1072 = vmatpush.msra.mxu0 %v942
      %1073 = vmatpush.msra.mxu0 %v939
      %1074 = vmatpush.msra.mxu0 %v936
      %1075 = vmatpush.msra.mxu0 %v933
      %1076 = vmatpush.msra.mxu0 %v930
      %1077 = vmatpush.msra.mxu0 %v927
      %1078 = vmatmul.f32.gmra.mxu0 %v923
      %v1079 = vpop.f32.mrf.mxu0
      %v1080 = vadd.f32 0.0, %v1079
      %1081 = vdwg.mxu0
      %1082 = vmatpush.msra.mxu0 0.0
      %1083 = vmatpush.msra.mxu0 0.0
      %1084 = vmatpush.msra.mxu0 0.0
      %1085 = vmatpush.msra.mxu0 0.0
      %1086 = vmatpush.msra.mxu0 0.0
      %1087 = vmatpush.msra.mxu0 0.0
      %1088 = vmatpush.msra.mxu0 0.0
      %1089 = vmatpush.msra.mxu0 0.0
      %1090 = vmatpush.msra.mxu0 0.0
      %1091 = vmatpush.msra.mxu0 0.0
      %1092 = vmatpush.msra.mxu0 0.0
      %1093 = vmatpush.msra.mxu0 0.0
      %1094 = vmatpush.msra.mxu0 0.0
      %1095 = vmatpush.msra.mxu0 0.0
      %1096 = vmatpush.msra.mxu0 %v978
      %1097 = vmatpush.msra.mxu0 %v975
      %1098 = vmatmul.f32.gmra.mxu0 %v980
      %v1099 = vpop.f32.mrf.mxu0
      %v1100 = vadd.f32 %v1080, %v1099
      %1101 = vdwg.mxu0
      %v1102 = vld [vmem:[%s2 + $0x870] sm:$0xff]
      %v1103 = vld [vmem:[%s2 + $0x878] sm:$0xff]
      %v1104 = vld [vmem:[%s2 + $0x880] sm:$0xff]
      %v1105 = vld [vmem:[%s2 + $0x888] sm:$0xff]
      %v1106 = vld [vmem:[%s2 + $0x890] sm:$0xff]
      %v1107 = vld [vmem:[%s2 + $0x898] sm:$0xff]
      %v1108 = vld [vmem:[%s2 + $0x8a0] sm:$0xff]
      %v1109 = vld [vmem:[%s2 + $0x8a8] sm:$0xff]
      %v1110 = vld [vmem:[%s2 + $0x8b0] sm:$0xff]
      %v1111 = vld [vmem:[%s2 + $0x8b8] sm:$0xff]
      %v1112 = vld [vmem:[%s2 + $0x8c0] sm:$0xff]
      %v1113 = vld [vmem:[%s2 + $0x8c8] sm:$0xff]
      %v1114 = vld [vmem:[%s2 + $0x8d0] sm:$0xff]
      %v1115 = vld [vmem:[%s2 + $0x8d8] sm:$0xff]
      %v1116 = vld [vmem:[%s2 + $0x8e0] sm:$0xff]
      %v1117 = vld [vmem:[%s2 + $0x8e8] sm:$0xff]
      %v1118 = vld [vmem:[%s2 + $0x8f0] sm:$0xff]
      %v1119 = vld [vmem:[%s2 + $0x8f8] sm:$0xff]
      %v1120 = vld [vmem:[%s2 + $0x900] sm:$0xff]
      %v1121 = vld [vmem:[%s2 + $0x908] sm:$0xff]
      %v1122 = vld [vmem:[%s2 + $0x910] sm:$0xff]
      %v1123 = vld [vmem:[%s2 + $0x918] sm:$0xff]
      %v1124 = vld [vmem:[%s2 + $0x920] sm:$0xff]
      %v1125 = vld [vmem:[%s2 + $0x928] sm:$0xff]
      %v1126 = vld [vmem:[%s2 + $0x930] sm:$0xff]
      %v1127 = vld [vmem:[%s2 + $0x938] sm:$0xff]
      %v1128 = vld [vmem:[%s2 + $0x940] sm:$0xff]
      %v1129 = vld [vmem:[%s2 + $0x948] sm:$0xff]
      %v1130 = vld [vmem:[%s2 + $0x950] sm:$0xff]
      %v1131 = vld [vmem:[%s2 + $0x958] sm:$0xff]
      %v1132 = vld [vmem:[%s2 + $0x960] sm:$0xff]
      %v1133 = vld [vmem:[%s2 + $0x968] sm:$0xff]
      %v1134 = vld [vmem:[%s2 + $0x970] sm:$0xff]
      %v1135 = vld [vmem:[%s2 + $0x978] sm:$0xff]
      %v1136 = vld [vmem:[%s2 + $0x980] sm:$0xff]
      %v1137 = vld [vmem:[%s2 + $0x988] sm:$0xff]
      %v1138 = vld [vmem:[%s2 + $0x990] sm:$0xff]
      %v1139 = vld [vmem:[%s2 + $0x998] sm:$0xff]
      %v1140 = vld [vmem:[%s2 + $0x9a0] sm:$0xff]
      %v1141 = vld [vmem:[%s2 + $0x9a8] sm:$0xff]
      %v1142 = vld [vmem:[%s2 + $0x9b0] sm:$0xff]
      %v1143 = vld [vmem:[%s2 + $0x9b8] sm:$0xff]
      %v1144 = vld [vmem:[%s2 + $0x9c0] sm:$0xff]
      %v1145 = vld [vmem:[%s2 + $0x9c8] sm:$0xff]
      %v1146 = vld [vmem:[%s2 + $0x9d0] sm:$0xff]
      %v1147 = vld [vmem:[%s2 + $0x9d8] sm:$0xff]
      %v1148 = vld [vmem:[%s2 + $0x9e0] sm:$0xff]
      %v1149 = vld [vmem:[%s2 + $0x9e8] sm:$0xff]
      %v1150 = vld [vmem:[%s2 + $0x9f0] sm:$0xff]
      %v1151 = vld [vmem:[%s2 + $0x9f8] sm:$0xff]
      %v1152 = vld [vmem:[%s2 + $0xa00] sm:$0xff]
      %v1153 = vld [vmem:[%s2 + $0xa08] sm:$0xff]
      %v1154 = vld [vmem:[%s2 + $0xa10] sm:$0xff]
      %v1155 = vld [vmem:[%s2 + $0xa18] sm:$0xff]
      %1156 = vmatpush.msra.mxu0 %v1147
      %1157 = vmatpush.msra.mxu0 %v1144
      %1158 = vmatpush.msra.mxu0 %v1141
      %1159 = vmatpush.msra.mxu0 %v1138
      %1160 = vmatpush.msra.mxu0 %v1135
      %1161 = vmatpush.msra.mxu0 %v1132
      %1162 = vmatpush.msra.mxu0 %v1129
      %1163 = vmatpush.msra.mxu0 %v1126
      %1164 = vmatpush.msra.mxu0 %v1123
      %1165 = vmatpush.msra.mxu0 %v1120
      %1166 = vmatpush.msra.mxu0 %v1117
      %1167 = vmatpush.msra.mxu0 %v1114
      %1168 = vmatpush.msra.mxu0 %v1111
      %1169 = vmatpush.msra.mxu0 %v1108
      %1170 = vmatpush.msra.mxu0 %v1105
      %1171 = vmatpush.msra.mxu0 %v1102
      %1172 = vmatmul.f32.gmra.mxu0 %v923
      %v1173 = vpop.f32.mrf.mxu0
      %v1174 = vadd.f32 0.0, %v1173
      %1175 = vdwg.mxu0
      %1176 = vmatpush.msra.mxu0 0.0
      %1177 = vmatpush.msra.mxu0 0.0
      %1178 = vmatpush.msra.mxu0 0.0
      %1179 = vmatpush.msra.mxu0 0.0
      %1180 = vmatpush.msra.mxu0 0.0
      %1181 = vmatpush.msra.mxu0 0.0
      %1182 = vmatpush.msra.mxu0 0.0
      %1183 = vmatpush.msra.mxu0 0.0
      %1184 = vmatpush.msra.mxu0 0.0
      %1185 = vmatpush.msra.mxu0 0.0
      %1186 = vmatpush.msra.mxu0 0.0
      %1187 = vmatpush.msra.mxu0 0.0
      %1188 = vmatpush.msra.mxu0 0.0
      %1189 = vmatpush.msra.mxu0 0.0
      %1190 = vmatpush.msra.mxu0 %v1153
      %1191 = vmatpush.msra.mxu0 %v1150
      %1192 = vmatmul.f32.gmra.mxu0 %v980
      %v1193 = vpop.f32.mrf.mxu0
      %v1194 = vadd.f32 %v1174, %v1193
      %1195 = vdwg.mxu0
      %1196 = vmatpush.msra.mxu0 %v1148
      %1197 = vmatpush.msra.mxu0 %v1145
      %1198 = vmatpush.msra.mxu0 %v1142
      %1199 = vmatpush.msra.mxu0 %v1139
      %1200 = vmatpush.msra.mxu0 %v1136
      %1201 = vmatpush.msra.mxu0 %v1133
      %1202 = vmatpush.msra.mxu0 %v1130
      %1203 = vmatpush.msra.mxu0 %v1127
      %1204 = vmatpush.msra.mxu0 %v1124
      %1205 = vmatpush.msra.mxu0 %v1121
      %1206 = vmatpush.msra.mxu0 %v1118
      %1207 = vmatpush.msra.mxu0 %v1115
      %1208 = vmatpush.msra.mxu0 %v1112
      %1209 = vmatpush.msra.mxu0 %v1109
      %1210 = vmatpush.msra.mxu0 %v1106
      %1211 = vmatpush.msra.mxu0 %v1103
      %1212 = vmatmul.f32.gmra.mxu0 %v923
      %v1213 = vpop.f32.mrf.mxu0
      %v1214 = vadd.f32 0.0, %v1213
      %1215 = vdwg.mxu0
      %1216 = vmatpush.msra.mxu0 0.0
      %1217 = vmatpush.msra.mxu0 0.0
      %1218 = vmatpush.msra.mxu0 0.0
      %1219 = vmatpush.msra.mxu0 0.0
      %1220 = vmatpush.msra.mxu0 0.0
      %1221 = vmatpush.msra.mxu0 0.0
      %1222 = vmatpush.msra.mxu0 0.0
      %1223 = vmatpush.msra.mxu0 0.0
      %1224 = vmatpush.msra.mxu0 0.0
      %1225 = vmatpush.msra.mxu0 0.0
      %1226 = vmatpush.msra.mxu0 0.0
      %1227 = vmatpush.msra.mxu0 0.0
      %1228 = vmatpush.msra.mxu0 0.0
      %1229 = vmatpush.msra.mxu0 0.0
      %1230 = vmatpush.msra.mxu0 %v1154
      %1231 = vmatpush.msra.mxu0 %v1151
      %1232 = vmatmul.f32.gmra.mxu0 %v980
      %v1233 = vpop.f32.mrf.mxu0
      %v1234 = vadd.f32 %v1214, %v1233
      %1235 = vdwg.mxu0
      %1236 = vmatpush.msra.mxu0 %v1149
      %1237 = vmatpush.msra.mxu0 %v1146
      %1238 = vmatpush.msra.mxu0 %v1143
      %1239 = vmatpush.msra.mxu0 %v1140
      %1240 = vmatpush.msra.mxu0 %v1137
      %1241 = vmatpush.msra.mxu0 %v1134
      %1242 = vmatpush.msra.mxu0 %v1131
      %1243 = vmatpush.msra.mxu0 %v1128
      %1244 = vmatpush.msra.mxu0 %v1125
      %1245 = vmatpush.msra.mxu0 %v1122
      %1246 = vmatpush.msra.mxu0 %v1119
      %1247 = vmatpush.msra.mxu0 %v1116
      %1248 = vmatpush.msra.mxu0 %v1113
      %1249 = vmatpush.msra.mxu0 %v1110
      %1250 = vmatpush.msra.mxu0 %v1107
      %1251 = vmatpush.msra.mxu0 %v1104
      %1252 = vmatmul.f32.gmra.mxu0 %v923
      %v1253 = vpop.f32.mrf.mxu0
      %v1254 = vadd.f32 0.0, %v1253
      %1255 = vdwg.mxu0
      %1256 = vmatpush.msra.mxu0 0.0
      %1257 = vmatpush.msra.mxu0 0.0
      %1258 = vmatpush.msra.mxu0 0.0
      %1259 = vmatpush.msra.mxu0 0.0
      %1260 = vmatpush.msra.mxu0 0.0
      %1261 = vmatpush.msra.mxu0 0.0
      %1262 = vmatpush.msra.mxu0 0.0
      %1263 = vmatpush.msra.mxu0 0.0
      %1264 = vmatpush.msra.mxu0 0.0
      %1265 = vmatpush.msra.mxu0 0.0
      %1266 = vmatpush.msra.mxu0 0.0
      %1267 = vmatpush.msra.mxu0 0.0
      %1268 = vmatpush.msra.mxu0 0.0
      %1269 = vmatpush.msra.mxu0 0.0
      %1270 = vmatpush.msra.mxu0 %v1155
      %1271 = vmatpush.msra.mxu0 %v1152
      %1272 = vmatmul.f32.gmra.mxu0 %v980
      %v1273 = vpop.f32.mrf.mxu0
      %v1274 = vadd.f32 %v1254, %v1273
      %1275 = vdwg.mxu0
      %v1276 = vxor.u32 %v1194, 2147483648
      %v1277 = vxor.u32 %v1234, 2147483648
      %v1278 = vxor.u32 %v1274, 2147483648
      %v1279 = vmul.f32 %v1276, 1.442695
      %v1280 = vpow.pop %v1279
      %v1281 = vmul.f32 %v1277, 1.442695
      %v1282 = vpow.pop %v1281
      %v1283 = vmul.f32 %v1278, 1.442695
      %v1284 = vpow.pop %v1283
      %v1285 = vadd.f32 %v1280, 1.0
      %v1286 = vadd.f32 %v1282, 1.0
      %v1287 = vadd.f32 %v1284, 1.0
      %v1288 = vrcp.pop %v1285
      %v1289 = vmul.f32 %v1285, %v1288
      %v1290 = vsub.f32 1.0, %v1289
      %v1291 = vmul.f32 %v1288, %v1290
      %v1292 = vadd.f32 %v1288, %v1291
      %vm1293 = vweird.f32 %v1285
      %vm1294 = vweird.f32 %v1288
      %vm1295 = vmor %vm1293, %vm1294
      %v1296 = vsel %vm1295, %v1288, %v1292
      %v1297 = vand.u32 2147483647, %v1285
      %vm1298 = vcmp.eq.f32.partialorder %v1297, 8.507059e+37
      %v1299 = vand.u32 %v1285, 2147483648
      %v1300 = vor.u32 1.1754944e-38, %v1299
      %v1301 = vsel %vm1298, %v1300, %v1296
      %v1302 = vmul.f32 1.0, %v1301
      %v1303 = vrcp.pop %v1286
      %v1304 = vmul.f32 %v1286, %v1303
      %v1305 = vsub.f32 1.0, %v1304
      %v1306 = vmul.f32 %v1303, %v1305
      %v1307 = vadd.f32 %v1303, %v1306
      %vm1308 = vweird.f32 %v1286
      %vm1309 = vweird.f32 %v1303
      %vm1310 = vmor %vm1308, %vm1309
      %v1311 = vsel %vm1310, %v1303, %v1307
      %v1312 = vand.u32 2147483647, %v1286
      %vm1313 = vcmp.eq.f32.partialorder %v1312, 8.507059e+37
      %v1314 = vand.u32 %v1286, 2147483648
      %v1315 = vor.u32 1.1754944e-38, %v1314
      %v1316 = vsel %vm1313, %v1315, %v1311
      %v1317 = vmul.f32 1.0, %v1316
      %v1318 = vrcp.pop %v1287
      %v1319 = vmul.f32 %v1287, %v1318
      %v1320 = vsub.f32 1.0, %v1319
      %v1321 = vmul.f32 %v1318, %v1320
      %v1322 = vadd.f32 %v1318, %v1321
      %vm1323 = vweird.f32 %v1287
      %vm1324 = vweird.f32 %v1318
      %vm1325 = vmor %vm1323, %vm1324
      %v1326 = vsel %vm1325, %v1318, %v1322
      %v1327 = vand.u32 2147483647, %v1287
      %vm1328 = vcmp.eq.f32.partialorder %v1327, 8.507059e+37
      %v1329 = vand.u32 %v1287, 2147483648
      %v1330 = vor.u32 1.1754944e-38, %v1329
      %v1331 = vsel %vm1328, %v1330, %v1326
      %v1332 = vmul.f32 1.0, %v1331
      %s1333 = scalar_lea.vmem %s3, 2
      %v1334 = vld [vmem:[%s1333] ss:$8 sm:$0x7]
      %v1336 = vperm.slane %v1334, 0
      %v1337 = vperm.slane %v1334, 1
      %v1338 = vperm.slane %v1334, 2
      %v1342 = vadd.f32 %v1020, %v1336
      %v1343 = vadd.f32 %v1060, %v1337
      %v1344 = vadd.f32 %v1100, %v1338
      %v1345 = vxor.u32 %v1342, 2147483648
      %v1346 = vxor.u32 %v1343, 2147483648
      %v1347 = vxor.u32 %v1344, 2147483648
      %v1348 = vmul.f32 %v1345, 1.442695
      %v1349 = vpow.pop %v1348
      %v1350 = vmul.f32 %v1346, 1.442695
      %v1351 = vpow.pop %v1350
      %v1352 = vmul.f32 %v1347, 1.442695
      %v1353 = vpow.pop %v1352
      %v1354 = vadd.f32 %v1349, 1.0
      %v1355 = vadd.f32 %v1351, 1.0
      %v1356 = vadd.f32 %v1353, 1.0
      %v1357 = vrcp.pop %v1354
      %v1358 = vmul.f32 %v1354, %v1357
      %v1359 = vsub.f32 1.0, %v1358
      %v1360 = vmul.f32 %v1357, %v1359
      %v1361 = vadd.f32 %v1357, %v1360
      %vm1362 = vweird.f32 %v1354
      %vm1363 = vweird.f32 %v1357
      %vm1364 = vmor %vm1362, %vm1363
      %v1365 = vsel %vm1364, %v1357, %v1361
      %v1366 = vand.u32 2147483647, %v1354
      %vm1367 = vcmp.eq.f32.partialorder %v1366, 8.507059e+37
      %v1368 = vand.u32 %v1354, 2147483648
      %v1369 = vor.u32 1.1754944e-38, %v1368
      %v1370 = vsel %vm1367, %v1369, %v1365
      %v1371 = vmul.f32 1.0, %v1370
      %v1372 = vrcp.pop %v1355
      %v1373 = vmul.f32 %v1355, %v1372
      %v1374 = vsub.f32 1.0, %v1373
      %v1375 = vmul.f32 %v1372, %v1374
      %v1376 = vadd.f32 %v1372, %v1375
      %vm1377 = vweird.f32 %v1355
      %vm1378 = vweird.f32 %v1372
      %vm1379 = vmor %vm1377, %vm1378
      %v1380 = vsel %vm1379, %v1372, %v1376
      %v1381 = vand.u32 2147483647, %v1355
      %vm1382 = vcmp.eq.f32.partialorder %v1381, 8.507059e+37
      %v1383 = vand.u32 %v1355, 2147483648
      %v1384 = vor.u32 1.1754944e-38, %v1383
      %v1385 = vsel %vm1382, %v1384, %v1380
      %v1386 = vmul.f32 1.0, %v1385
      %v1387 = vrcp.pop %v1356
      %v1388 = vmul.f32 %v1356, %v1387
      %v1389 = vsub.f32 1.0, %v1388
      %v1390 = vmul.f32 %v1387, %v1389
      %v1391 = vadd.f32 %v1387, %v1390
      %vm1392 = vweird.f32 %v1356
      %vm1393 = vweird.f32 %v1387
      %vm1394 = vmor %vm1392, %vm1393
      %v1395 = vsel %vm1394, %v1387, %v1391
      %v1396 = vand.u32 2147483647, %v1356
      %vm1397 = vcmp.eq.f32.partialorder %v1396, 8.507059e+37
      %v1398 = vand.u32 %v1356, 2147483648
      %v1399 = vor.u32 1.1754944e-38, %v1398
      %v1400 = vsel %vm1397, %v1399, %v1395
      %v1401 = vmul.f32 1.0, %v1400
      %v1402 = vmul.f32 %v1342, %v1371
      %v1403 = vmul.f32 %v1343, %v1386
      %v1404 = vmul.f32 %v1344, %v1401
      %v1405 = vmul.f32 %v1020, %v1302
      %v1406 = vmul.f32 %v1060, %v1317
      %v1407 = vmul.f32 %v1100, %v1332
      %v1408 = vsel %vm236, %v1402, %v1405
      %v1409 = vsel %vm237, %v1403, %v1406
      %v1410 = vsel %vm238, %v1404, %v1407
      %v1411 = vld [vmem:[%s2 + $0xa20] sm:$0xff]
      %v1412 = vld [vmem:[%s2 + $0xa28] sm:$0xff]
      %v1413 = vld [vmem:[%s2 + $0xa38] sm:$0xff]
      %v1414 = vld [vmem:[%s2 + $0xa40] sm:$0xff]
      %v1415 = vld [vmem:[%s2 + $0xa50] sm:$0xff]
      %v1416 = vld [vmem:[%s2 + $0xa58] sm:$0xff]
      %v1417 = vld [vmem:[%s2 + $0xa68] sm:$0xff]
      %v1418 = vld [vmem:[%s2 + $0xa70] sm:$0xff]
      %v1419 = vld [vmem:[%s2 + $0xa80] sm:$0xff]
      %v1420 = vld [vmem:[%s2 + $0xa88] sm:$0xff]
      %v1421 = vld [vmem:[%s2 + $0xa98] sm:$0xff]
      %v1422 = vld [vmem:[%s2 + $0xaa0] sm:$0xff]
      %v1423 = vld [vmem:[%s2 + $0xab0] sm:$0xff]
      %v1424 = vld [vmem:[%s2 + $0xab8] sm:$0xff]
      %v1425 = vld [vmem:[%s2 + $0xac8] sm:$0xff]
      %v1426 = vld [vmem:[%s2 + $0xad0] sm:$0xff]
      %v1427 = vld [vmem:[%s2 + $0xae0] sm:$0xff]
      %v1428 = vld [vmem:[%s2 + $0xae8] sm:$0xff]
      %v1429 = vld [vmem:[%s2 + $0xaf8] sm:$0xff]
      %v1430 = vld [vmem:[%s2 + $0xb00] sm:$0xff]
      %v1431 = vld [vmem:[%s2 + $0xb10] sm:$0xff]
      %v1432 = vld [vmem:[%s2 + $0xb18] sm:$0xff]
      %v1433 = vld [vmem:[%s2 + $0xb28] sm:$0xff]
      %v1434 = vld [vmem:[%s2 + $0xb30] sm:$0xff]
      %v1435 = vld [vmem:[%s2 + $0xb40] sm:$0xff]
      %v1436 = vld [vmem:[%s2 + $0xb48] sm:$0xff]
      %v1437 = vld [vmem:[%s2 + $0xb58] sm:$0xff]
      %v1438 = vld [vmem:[%s2 + $0xb60] sm:$0xff]
      %v1439 = vld [vmem:[%s2 + $0xb70] sm:$0xff]
      %v1440 = vld [vmem:[%s2 + $0xb78] sm:$0xff]
      %v1441 = vld [vmem:[%s2 + $0xb88] sm:$0xff]
      %v1442 = vld [vmem:[%s2 + $0xb90] sm:$0xff]
      %v1443 = vld [vmem:[%s2 + $0xba0] sm:$0xff]
      %v1444 = vld [vmem:[%s2 + $0xba8] sm:$0xff]
      %v1445 = vld [vmem:[%s2 + $0xbb8] sm:$0xff]
      %v1446 = vld [vmem:[%s2 + $0xbc0] sm:$0xff]
      %v1447 = vld [vmem:[%s2 + $0xbd0] sm:$0xff]
      %v1448 = vld [vmem:[%s2 + $0xbd8] sm:$0xff]
      %v1449 = vld [vmem:[%s2 + $0xbe8] sm:$0xff]
      %v1450 = vld [vmem:[%s2 + $0xbf0] sm:$0xff]
      %v1451 = vld [vmem:[%s2 + $0xc00] sm:$0xff]
      %v1452 = vld [vmem:[%s2 + $0xc08] sm:$0xff]
      %v1453 = vld [vmem:[%s2 + $0xc18] sm:$0xff]
      %v1454 = vld [vmem:[%s2 + $0xc20] sm:$0xff]
      %v1455 = vld [vmem:[%s2 + $0xc30] sm:$0xff]
      %v1456 = vld [vmem:[%s2 + $0xc38] sm:$0xff]
      %v1457 = vld [vmem:[%s2 + $0xc48] sm:$0xff]
      %v1458 = vld [vmem:[%s2 + $0xc50] sm:$0xff]
      %v1459 = vld [vmem:[%s2 + $0xc60] sm:$0xff]
      %v1460 = vld [vmem:[%s2 + $0xc68] sm:$0xff]
      %v1461 = vld [vmem:[%s2 + $0xc78] sm:$0xff]
      %v1462 = vld [vmem:[%s2 + $0xc80] sm:$0xff]
      %v1463 = vld [vmem:[%s2 + $0xc90] sm:$0xff]
      %v1464 = vld [vmem:[%s2 + $0xc98] sm:$0xff]
      %v1465 = vld [vmem:[%s2 + $0xca8] sm:$0xff]
      %v1466 = vld [vmem:[%s2 + $0xcb0] sm:$0xff]
      %v1467 = vld [vmem:[%s2 + $0xcc0] sm:$0xff]
      %v1468 = vld [vmem:[%s2 + $0xcc8] sm:$0xff]
      %v1469 = vld [vmem:[%s2 + $0xcd8] sm:$0xff]
      %v1470 = vld [vmem:[%s2 + $0xce0] sm:$0xff]
      %v1471 = vld [vmem:[%s2 + $0xcf0] sm:$0xff]
      %v1472 = vld [vmem:[%s2 + $0xcf8] sm:$0xff]
      %v1473 = vld [vmem:[%s2 + $0xd08] sm:$0xff]
      %v1474 = vld [vmem:[%s2 + $0xd10] sm:$0xff]
      %v1475 = vld [vmem:[%s2 + $0xd20] sm:$0xff]
      %v1476 = vld [vmem:[%s2 + $0xd28] sm:$0xff]
      %v1477 = vld [vmem:[%s2 + $0xd38] sm:$0xff]
      %v1478 = vld [vmem:[%s2 + $0xd40] sm:$0xff]
      %v1479 = vld [vmem:[%s2 + $0xd50] sm:$0xff]
      %v1480 = vld [vmem:[%s2 + $0xd58] sm:$0xff]
      %v1481 = vld [vmem:[%s2 + $0xd68] sm:$0xff]
      %v1482 = vld [vmem:[%s2 + $0xd70] sm:$0xff]
      %v1484 = vsel %vm770, %v1410, 0
      %1486 = vmatpush.msra.mxu0 %v1441
      %1487 = vmatpush.msra.mxu0 %v1439
      %1488 = vmatpush.msra.mxu0 %v1437
      %1489 = vmatpush.msra.mxu0 %v1435
      %1490 = vmatpush.msra.mxu0 %v1433
      %1491 = vmatpush.msra.mxu0 %v1431
      %1492 = vmatpush.msra.mxu0 %v1429
      %1493 = vmatpush.msra.mxu0 %v1427
      %1494 = vmatpush.msra.mxu0 %v1425
      %1495 = vmatpush.msra.mxu0 %v1423
      %1496 = vmatpush.msra.mxu0 %v1421
      %1497 = vmatpush.msra.mxu0 %v1419
      %1498 = vmatpush.msra.mxu0 %v1417
      %1499 = vmatpush.msra.mxu0 %v1415
      %1500 = vmatpush.msra.mxu0 %v1413
      %1501 = vmatpush.msra.mxu0 %v1411
      %1502 = vmatmul.f32.gmra.mxu0 %v1408
      %v1503 = vpop.f32.mrf.mxu0
      %v1504 = vadd.f32 0.0, %v1503
      %1505 = vdwg.mxu0
      %1506 = vmatpush.msra.mxu0 %v1473
      %1507 = vmatpush.msra.mxu0 %v1471
      %1508 = vmatpush.msra.mxu0 %v1469
      %1509 = vmatpush.msra.mxu0 %v1467
      %1510 = vmatpush.msra.mxu0 %v1465
      %1511 = vmatpush.msra.mxu0 %v1463
      %1512 = vmatpush.msra.mxu0 %v1461
      %1513 = vmatpush.msra.mxu0 %v1459
      %1514 = vmatpush.msra.mxu0 %v1457
      %1515 = vmatpush.msra.mxu0 %v1455
      %1516 = vmatpush.msra.mxu0 %v1453
      %1517 = vmatpush.msra.mxu0 %v1451
      %1518 = vmatpush.msra.mxu0 %v1449
      %1519 = vmatpush.msra.mxu0 %v1447
      %1520 = vmatpush.msra.mxu0 %v1445
      %1521 = vmatpush.msra.mxu0 %v1443
      %1522 = vmatmul.f32.gmra.mxu0 %v1409
      %v1523 = vpop.f32.mrf.mxu0
      %v1524 = vadd.f32 %v1504, %v1523
      %1525 = vdwg.mxu0
      %1526 = vmatpush.msra.mxu0 0.0
      %1527 = vmatpush.msra.mxu0 0.0
      %1528 = vmatpush.msra.mxu0 0.0
      %1529 = vmatpush.msra.mxu0 0.0
      %1530 = vmatpush.msra.mxu0 0.0
      %1531 = vmatpush.msra.mxu0 0.0
      %1532 = vmatpush.msra.mxu0 0.0
      %1533 = vmatpush.msra.mxu0 0.0
      %1534 = vmatpush.msra.mxu0 0.0
      %1535 = vmatpush.msra.mxu0 0.0
      %1536 = vmatpush.msra.mxu0 0.0
      %1537 = vmatpush.msra.mxu0 0.0
      %1538 = vmatpush.msra.mxu0 %v1481
      %1539 = vmatpush.msra.mxu0 %v1479
      %1540 = vmatpush.msra.mxu0 %v1477
      %1541 = vmatpush.msra.mxu0 %v1475
      %1542 = vmatmul.f32.gmra.mxu0 %v1484
      %v1543 = vpop.f32.mrf.mxu0
      %v1544 = vadd.f32 %v1524, %v1543
      %1545 = vdwg.mxu0
      %1546 = vmatpush.msra.mxu0 %v1442
      %1547 = vmatpush.msra.mxu0 %v1440
      %1548 = vmatpush.msra.mxu0 %v1438
      %1549 = vmatpush.msra.mxu0 %v1436
      %1550 = vmatpush.msra.mxu0 %v1434
      %1551 = vmatpush.msra.mxu0 %v1432
      %1552 = vmatpush.msra.mxu0 %v1430
      %1553 = vmatpush.msra.mxu0 %v1428
      %1554 = vmatpush.msra.mxu0 %v1426
      %1555 = vmatpush.msra.mxu0 %v1424
      %1556 = vmatpush.msra.mxu0 %v1422
      %1557 = vmatpush.msra.mxu0 %v1420
      %1558 = vmatpush.msra.mxu0 %v1418
      %1559 = vmatpush.msra.mxu0 %v1416
      %1560 = vmatpush.msra.mxu0 %v1414
      %1561 = vmatpush.msra.mxu0 %v1412
      %1562 = vmatmul.f32.gmra.mxu0 %v1408
      %v1563 = vpop.f32.mrf.mxu0
      %v1564 = vadd.f32 0.0, %v1563
      %1565 = vdwg.mxu0
      %1566 = vmatpush.msra.mxu0 %v1474
      %1567 = vmatpush.msra.mxu0 %v1472
      %1568 = vmatpush.msra.mxu0 %v1470
      %1569 = vmatpush.msra.mxu0 %v1468
      %1570 = vmatpush.msra.mxu0 %v1466
      %1571 = vmatpush.msra.mxu0 %v1464
      %1572 = vmatpush.msra.mxu0 %v1462
      %1573 = vmatpush.msra.mxu0 %v1460
      %1574 = vmatpush.msra.mxu0 %v1458
      %1575 = vmatpush.msra.mxu0 %v1456
      %1576 = vmatpush.msra.mxu0 %v1454
      %1577 = vmatpush.msra.mxu0 %v1452
      %1578 = vmatpush.msra.mxu0 %v1450
      %1579 = vmatpush.msra.mxu0 %v1448
      %1580 = vmatpush.msra.mxu0 %v1446
      %1581 = vmatpush.msra.mxu0 %v1444
      %1582 = vmatmul.f32.gmra.mxu0 %v1409
      %v1583 = vpop.f32.mrf.mxu0
      %v1584 = vadd.f32 %v1564, %v1583
      %1585 = vdwg.mxu0
      %1586 = vmatpush.msra.mxu0 0.0
      %1587 = vmatpush.msra.mxu0 0.0
      %1588 = vmatpush.msra.mxu0 0.0
      %1589 = vmatpush.msra.mxu0 0.0
      %1590 = vmatpush.msra.mxu0 0.0
      %1591 = vmatpush.msra.mxu0 0.0
      %1592 = vmatpush.msra.mxu0 0.0
      %1593 = vmatpush.msra.mxu0 0.0
      %1594 = vmatpush.msra.mxu0 0.0
      %1595 = vmatpush.msra.mxu0 0.0
      %1596 = vmatpush.msra.mxu0 0.0
      %1597 = vmatpush.msra.mxu0 0.0
      %1598 = vmatpush.msra.mxu0 %v1482
      %1599 = vmatpush.msra.mxu0 %v1480
      %1600 = vmatpush.msra.mxu0 %v1478
      %1601 = vmatpush.msra.mxu0 %v1476
      %1602 = vmatmul.f32.gmra.mxu0 %v1484
      %v1603 = vpop.f32.mrf.mxu0
      %v1604 = vadd.f32 %v1584, %v1603
      %1605 = vdwg.mxu0
      %v1606 = vadd.f32 %v893, %v1544
      %v1607 = vadd.f32 %v894, %v1604
      %s1608 = scalar_lea.vmem %s3, 3
      %v1609 = vld [vmem:[%s1608] ss:$8 sm:$0x3]
      %v1610 = vmul.f32 %v1606, %v1606
      %v1611 = vmul.f32 %v1607, %v1607
      %v1612 = vmul.f32 %v1610, %v228
      %v1613 = vmul.f32 %v1611, %v229
      %v1614 = vsel %vm244, %v1613, 0.0
      %v1615 = vadd.f32 %v1612, %v1614
      %1616 = vadd.xlane.f32.xlu0 %v1615
      %v1617 = vpop.xlane.xlu0 %1616
      %v1618 = vadd.f32 %v1617, 1e-06
      %v1619 = vrsqrt.pop %v1618
      %v1620 = vmul.f32 %v1619, %v1618
      %v1621 = vmul.f32 %v1620, %v1619
      %v1622 = vmul.f32 0.5, %v1621
      %v1623 = vsub.f32 1.5, %v1622
      %v1624 = vmul.f32 %v1619, %v1623
      %vm1625 = vweird.f32 %v1618
      %vm1626 = vweird.f32 %v1619
      %vm1627 = vmor %vm1625, %vm1626
      %v1628 = vsel %vm1627, %v1619, %v1624
      %v1629 = vmul.f32 %v1606, %v1628
      %v1630 = vmul.f32 %v1607, %v1628
      %v1632 = vperm.slane %v1609, 0
      %v1633 = vperm.slane %v1609, 1
      %v1636 = vmul.f32 %v1629, %v1632
      %v1637 = vmul.f32 %v1630, %v1633
      %v1638 = vld [vmem:[%s2 + $0xd80] sm:$0xff]
      %v1639 = vld [vmem:[%s2 + $0xd88] sm:$0xff]
      %v1640 = vld [vmem:[%s2 + $0xd98] sm:$0xff]
      %v1641 = vld [vmem:[%s2 + $0xda0] sm:$0xff]
      %v1642 = vld [vmem:[%s2 + $0xdb0] sm:$0xff]
      %v1643 = vld [vmem:[%s2 + $0xdb8] sm:$0xff]
      %v1644 = vld [vmem:[%s2 + $0xdc8] sm:$0xff]
      %v1645 = vld [vmem:[%s2 + $0xdd0] sm:$0xff]
      %v1646 = vld [vmem:[%s2 + $0xde0] sm:$0xff]
      %v1647 = vld [vmem:[%s2 + $0xde8] sm:$0xff]
      %v1648 = vld [vmem:[%s2 + $0xdf8] sm:$0xff]
      %v1649 = vld [vmem:[%s2 + $0xe00] sm:$0xff]
      %v1650 = vld [vmem:[%s2 + $0xe10] sm:$0xff]
      %v1651 = vld [vmem:[%s2 + $0xe18] sm:$0xff]
      %v1652 = vld [vmem:[%s2 + $0xe28] sm:$0xff]
      %v1653 = vld [vmem:[%s2 + $0xe30] sm:$0xff]
      %v1654 = vld [vmem:[%s2 + $0xe40] sm:$0xff]
      %v1655 = vld [vmem:[%s2 + $0xe48] sm:$0xff]
      %v1656 = vld [vmem:[%s2 + $0xe58] sm:$0xff]
      %v1657 = vld [vmem:[%s2 + $0xe60] sm:$0xff]
      %v1658 = vld [vmem:[%s2 + $0xe70] sm:$0xff]
      %v1659 = vld [vmem:[%s2 + $0xe78] sm:$0xff]
      %v1660 = vld [vmem:[%s2 + $0xe88] sm:$0xff]
      %v1661 = vld [vmem:[%s2 + $0xe90] sm:$0xff]
      %v1662 = vld [vmem:[%s2 + $0xea0] sm:$0xff]
      %v1663 = vld [vmem:[%s2 + $0xea8] sm:$0xff]
      %v1664 = vld [vmem:[%s2 + $0xeb8] sm:$0xff]
      %v1665 = vld [vmem:[%s2 + $0xec0] sm:$0xff]
      %v1666 = vld [vmem:[%s2 + $0xed0] sm:$0xff]
      %v1667 = vld [vmem:[%s2 + $0xed8] sm:$0xff]
      %v1668 = vld [vmem:[%s2 + $0xee8] sm:$0xff]
      %v1669 = vld [vmem:[%s2 + $0xef0] sm:$0xff]
      %v1670 = vld [vmem:[%s2 + $0xf00] sm:$0xff]
      %v1671 = vld [vmem:[%s2 + $0xf08] sm:$0xff]
      %v1672 = vld [vmem:[%s2 + $0xf18] sm:$0xff]
      %v1673 = vld [vmem:[%s2 + $0xf20] sm:$0xff]
      %v1675 = vsel %vm244, %v1637, 0
      %1677 = vmatpush.msra.mxu0 %v1668
      %1678 = vmatpush.msra.mxu0 %v1666
      %1679 = vmatpush.msra.mxu0 %v1664
      %1680 = vmatpush.msra.mxu0 %v1662
      %1681 = vmatpush.msra.mxu0 %v1660
      %1682 = vmatpush.msra.mxu0 %v1658
      %1683 = vmatpush.msra.mxu0 %v1656
      %1684 = vmatpush.msra.mxu0 %v1654
      %1685 = vmatpush.msra.mxu0 %v1652
      %1686 = vmatpush.msra.mxu0 %v1650
      %1687 = vmatpush.msra.mxu0 %v1648
      %1688 = vmatpush.msra.mxu0 %v1646
      %1689 = vmatpush.msra.mxu0 %v1644
      %1690 = vmatpush.msra.mxu0 %v1642
      %1691 = vmatpush.msra.mxu0 %v1640
      %1692 = vmatpush.msra.mxu0 %v1638
      %1693 = vmatmul.f32.gmra.mxu0 %v1636
      %v1694 = vpop.f32.mrf.mxu0
      %v1695 = vadd.f32 0.0, %v1694
      %1696 = vdwg.mxu0
      %1697 = vmatpush.msra.mxu0 0.0
      %1698 = vmatpush.msra.mxu0 0.0
      %1699 = vmatpush.msra.mxu0 0.0
      %1700 = vmatpush.msra.mxu0 0.0
      %1701 = vmatpush.msra.mxu0 0.0
      %1702 = vmatpush.msra.mxu0 0.0
      %1703 = vmatpush.msra.mxu0 0.0
      %1704 = vmatpush.msra.mxu0 0.0
      %1705 = vmatpush.msra.mxu0 0.0
      %1706 = vmatpush.msra.mxu0 0.0
      %1707 = vmatpush.msra.mxu0 0.0
      %1708 = vmatpush.msra.mxu0 0.0
      %1709 = vmatpush.msra.mxu0 0.0
      %1710 = vmatpush.msra.mxu0 0.0
      %1711 = vmatpush.msra.mxu0 %v1672
      %1712 = vmatpush.msra.mxu0 %v1670
      %1713 = vmatmul.f32.gmra.mxu0 %v1675
      %v1714 = vpop.f32.mrf.mxu0
      %v1715 = vadd.f32 %v1695, %v1714
      %1716 = vdwg.mxu0
      %1717 = vmatpush.msra.mxu0 %v1669
      %1718 = vmatpush.msra.mxu0 %v1667
      %1719 = vmatpush.msra.mxu0 %v1665
      %1720 = vmatpush.msra.mxu0 %v1663
      %1721 = vmatpush.msra.mxu0 %v1661
      %1722 = vmatpush.msra.mxu0 %v1659
      %1723 = vmatpush.msra.mxu0 %v1657
      %1724 = vmatpush.msra.mxu0 %v1655
      %1725 = vmatpush.msra.mxu0 %v1653
      %1726 = vmatpush.msra.mxu0 %v1651
      %1727 = vmatpush.msra.mxu0 %v1649
      %1728 = vmatpush.msra.mxu0 %v1647
      %1729 = vmatpush.msra.mxu0 %v1645
      %1730 = vmatpush.msra.mxu0 %v1643
      %1731 = vmatpush.msra.mxu0 %v1641
      %1732 = vmatpush.msra.mxu0 %v1639
      %1733 = vmatmul.f32.gmra.mxu0 %v1636
      %v1734 = vpop.f32.mrf.mxu0
      %v1735 = vadd.f32 0.0, %v1734
      %1736 = vdwg.mxu0
      %1737 = vmatpush.msra.mxu0 0.0
      %1738 = vmatpush.msra.mxu0 0.0
      %1739 = vmatpush.msra.mxu0 0.0
      %1740 = vmatpush.msra.mxu0 0.0
      %1741 = vmatpush.msra.mxu0 0.0
      %1742 = vmatpush.msra.mxu0 0.0
      %1743 = vmatpush.msra.mxu0 0.0
      %1744 = vmatpush.msra.mxu0 0.0
      %1745 = vmatpush.msra.mxu0 0.0
      %1746 = vmatpush.msra.mxu0 0.0
      %1747 = vmatpush.msra.mxu0 0.0
      %1748 = vmatpush.msra.mxu0 0.0
      %1749 = vmatpush.msra.mxu0 0.0
      %1750 = vmatpush.msra.mxu0 0.0
      %1751 = vmatpush.msra.mxu0 %v1673
      %1752 = vmatpush.msra.mxu0 %v1671
      %1753 = vmatmul.f32.gmra.mxu0 %v1675
      %v1754 = vpop.f32.mrf.mxu0
      %v1755 = vadd.f32 %v1735, %v1754
      %1756 = vdwg.mxu0
      %v1757 = vld [vmem:[%s2 + $0xf30] sm:$0xff]
      %v1758 = vld [vmem:[%s2 + $0xf38] sm:$0xff]
      %v1759 = vld [vmem:[%s2 + $0xf48] sm:$0xff]
      %v1760 = vld [vmem:[%s2 + $0xf50] sm:$0xff]
      %v1761 = vld [vmem:[%s2 + $0xf60] sm:$0xff]
      %v1762 = vld [vmem:[%s2 + $0xf68] sm:$0xff]
      %v1763 = vld [vmem:[%s2 + $0xf78] sm:$0xff]
      %v1764 = vld [vmem:[%s2 + $0xf80] sm:$0xff]
      %v1765 = vld [vmem:[%s2 + $0xf90] sm:$0xff]
      %v1766 = vld [vmem:[%s2 + $0xf98] sm:$0xff]
      %v1767 = vld [vmem:[%s2 + $0xfa8] sm:$0xff]
      %v1768 = vld [vmem:[%s2 + $0xfb0] sm:$0xff]
      %v1769 = vld [vmem:[%s2 + $0xfc0] sm:$0xff]
      %v1770 = vld [vmem:[%s2 + $0xfc8] sm:$0xff]
      %v1771 = vld [vmem:[%s2 + $0xfd8] sm:$0xff]
      %v1772 = vld [vmem:[%s2 + $0xfe0] sm:$0xff]
      %v1773 = vld [vmem:[%s2 + $0xff0] sm:$0xff]
      %v1774 = vld [vmem:[%s2 + $0xff8] sm:$0xff]
      %v1775 = vld [vmem:[%s2 + $0x1008] sm:$0xff]
      %v1776 = vld [vmem:[%s2 + $0x1010] sm:$0xff]
      %v1777 = vld [vmem:[%s2 + $0x1020] sm:$0xff]
      %v1778 = vld [vmem:[%s2 + $0x1028] sm:$0xff]
      %v1779 = vld [vmem:[%s2 + $0x1038] sm:$0xff]
      %v1780 = vld [vmem:[%s2 + $0x1040] sm:$0xff]
      %v1781 = vld [vmem:[%s2 + $0x1050] sm:$0xff]
      %v1782 = vld [vmem:[%s2 + $0x1058] sm:$0xff]
      %v1783 = vld [vmem:[%s2 + $0x1068] sm:$0xff]
      %v1784 = vld [vmem:[%s2 + $0x1070] sm:$0xff]
      %v1785 = vld [vmem:[%s2 + $0x1080] sm:$0xff]
      %v1786 = vld [vmem:[%s2 + $0x1088] sm:$0xff]
      %v1787 = vld [vmem:[%s2 + $0x1098] sm:$0xff]
      %v1788 = vld [vmem:[%s2 + $0x10a0] sm:$0xff]
      %v1789 = vld [vmem:[%s2 + $0x10b0] sm:$0xff]
      %v1790 = vld [vmem:[%s2 + $0x10b8] sm:$0xff]
      %v1791 = vld [vmem:[%s2 + $0x10c8] sm:$0xff]
      %v1792 = vld [vmem:[%s2 + $0x10d0] sm:$0xff]
      %1793 = vmatpush.msra.mxu0 %v1787
      %1794 = vmatpush.msra.mxu0 %v1785
      %1795 = vmatpush.msra.mxu0 %v1783
      %1796 = vmatpush.msra.mxu0 %v1781
      %1797 = vmatpush.msra.mxu0 %v1779
      %1798 = vmatpush.msra.mxu0 %v1777
      %1799 = vmatpush.msra.mxu0 %v1775
      %1800 = vmatpush.msra.mxu0 %v1773
      %1801 = vmatpush.msra.mxu0 %v1771
      %1802 = vmatpush.msra.mxu0 %v1769
      %1803 = vmatpush.msra.mxu0 %v1767
      %1804 = vmatpush.msra.mxu0 %v1765
      %1805 = vmatpush.msra.mxu0 %v1763
      %1806 = vmatpush.msra.mxu0 %v1761
      %1807 = vmatpush.msra.mxu0 %v1759
      %1808 = vmatpush.msra.mxu0 %v1757
      %1809 = vmatmul.f32.gmra.mxu0 %v1636
      %v1810 = vpop.f32.mrf.mxu0
      %v1811 = vadd.f32 0.0, %v1810
      %1812 = vdwg.mxu0
      %1813 = vmatpush.msra.mxu0 0.0
      %1814 = vmatpush.msra.mxu0 0.0
      %1815 = vmatpush.msra.mxu0 0.0
      %1816 = vmatpush.msra.mxu0 0.0
      %1817 = vmatpush.msra.mxu0 0.0
      %1818 = vmatpush.msra.mxu0 0.0
      %1819 = vmatpush.msra.mxu0 0.0
      %1820 = vmatpush.msra.mxu0 0.0
      %1821 = vmatpush.msra.mxu0 0.0
      %1822 = vmatpush.msra.mxu0 0.0
      %1823 = vmatpush.msra.mxu0 0.0
      %1824 = vmatpush.msra.mxu0 0.0
      %1825 = vmatpush.msra.mxu0 0.0
      %1826 = vmatpush.msra.mxu0 0.0
      %1827 = vmatpush.msra.mxu0 %v1791
      %1828 = vmatpush.msra.mxu0 %v1789
      %1829 = vmatmul.f32.gmra.mxu0 %v1675
      %v1830 = vpop.f32.mrf.mxu0
      %v1831 = vadd.f32 %v1811, %v1830
      %1832 = vdwg.mxu0
      %1833 = vmatpush.msra.mxu0 %v1788
      %1834 = vmatpush.msra.mxu0 %v1786
      %1835 = vmatpush.msra.mxu0 %v1784
      %1836 = vmatpush.msra.mxu0 %v1782
      %1837 = vmatpush.msra.mxu0 %v1780
      %1838 = vmatpush.msra.mxu0 %v1778
      %1839 = vmatpush.msra.mxu0 %v1776
      %1840 = vmatpush.msra.mxu0 %v1774
      %1841 = vmatpush.msra.mxu0 %v1772
      %1842 = vmatpush.msra.mxu0 %v1770
      %1843 = vmatpush.msra.mxu0 %v1768
      %1844 = vmatpush.msra.mxu0 %v1766
      %1845 = vmatpush.msra.mxu0 %v1764
      %1846 = vmatpush.msra.mxu0 %v1762
      %1847 = vmatpush.msra.mxu0 %v1760
      %1848 = vmatpush.msra.mxu0 %v1758
      %1849 = vmatmul.f32.gmra.mxu0 %v1636
      %v1850 = vpop.f32.mrf.mxu0
      %v1851 = vadd.f32 0.0, %v1850
      %1852 = vdwg.mxu0
      %1853 = vmatpush.msra.mxu0 0.0
      %1854 = vmatpush.msra.mxu0 0.0
      %1855 = vmatpush.msra.mxu0 0.0
      %1856 = vmatpush.msra.mxu0 0.0
      %1857 = vmatpush.msra.mxu0 0.0
      %1858 = vmatpush.msra.mxu0 0.0
      %1859 = vmatpush.msra.mxu0 0.0
      %1860 = vmatpush.msra.mxu0 0.0
      %1861 = vmatpush.msra.mxu0 0.0
      %1862 = vmatpush.msra.mxu0 0.0
      %1863 = vmatpush.msra.mxu0 0.0
      %1864 = vmatpush.msra.mxu0 0.0
      %1865 = vmatpush.msra.mxu0 0.0
      %1866 = vmatpush.msra.mxu0 0.0
      %1867 = vmatpush.msra.mxu0 %v1792
      %1868 = vmatpush.msra.mxu0 %v1790
      %1869 = vmatmul.f32.gmra.mxu0 %v1675
      %v1870 = vpop.f32.mrf.mxu0
      %v1871 = vadd.f32 %v1851, %v1870
      %1872 = vdwg.mxu0
      %1873 = vmatpush.xpose.msra.mxu0 0.0
      %1874 = vmatpush.xpose.msra.mxu0 0.0
      %1875 = vmatpush.xpose.msra.mxu0 0.0
      %1876 = vmatpush.xpose.msra.mxu0 0.0
      %1877 = vmatpush.xpose.msra.mxu0 0.0
      %1878 = vmatpush.xpose.msra.mxu0 0.0
      %1879 = vmatpush.xpose.msra.mxu0 0.0
      %1880 = vmatpush.xpose.msra.mxu0 0.0
      %1881 = vmatpush.xpose.msra.mxu0 0.0
      %1882 = vmatpush.xpose.msra.mxu0 0.0
      %1883 = vmatpush.xpose.msra.mxu0 0.0
      %1884 = vmatpush.xpose.msra.mxu0 0.0
      %1885 = vmatpush.xpose.msra.mxu0 0.0
      %1886 = vmatpush.xpose.msra.mxu0 0.0
      %1887 = vmatpush.xpose.msra.mxu0 0.0
      %1888 = vmatpush.xpose.msra.mxu0 %v1831
      %1889 = vmatmul.f32.gmra.mxu0 %v1715
      %v1890 = vpop.f32.mrf.mxu0
      %v1891 = vadd.f32 0.0, %v1890
      %1892 = vdwg.mxu0
      %v1893 = vmul.f32 %v1891, 0.35355338
      %v1894 = vadd.f32 %v1893, %v223
      %v1895 = vsel %vm526, %v1894, -inf
      %1896 = vmax.xlane.f32.xlu0 %v1895
      %v1897 = vpop.xlane.xlu0 %1896
      %v1898 = vsub.f32 %v1894, %v1897
      %v1899 = vmul.f32 %v1898, 1.442695
      %v1900 = vpow.pop %v1899
      %v1901 = vmul.f32 %v1900, %v220
      %v1902 = vsel %vm526, %v1901, 0.0
      %1903 = vadd.xlane.f32.xlu0 %v1902
      %v1904 = vpop.xlane.xlu0 %1903
      %v1905 = vadd.f32 %v1904, 1e-09
      %v1906 = vrcp.pop %v1905
      %v1907 = vmul.f32 %v1905, %v1906
      %v1908 = vsub.f32 1.0, %v1907
      %v1909 = vmul.f32 %v1906, %v1908
      %v1910 = vadd.f32 %v1906, %v1909
      %vm1911 = vweird.f32 %v1905
      %vm1912 = vweird.f32 %v1906
      %vm1913 = vmor %vm1911, %vm1912
      %v1914 = vsel %vm1913, %v1906, %v1910
      %v1915 = vand.u32 2147483647, %v1905
      %vm1916 = vcmp.eq.f32.partialorder %v1915, 8.507059e+37
      %v1917 = vand.u32 %v1905, 2147483648
      %v1918 = vor.u32 1.1754944e-38, %v1917
      %v1919 = vsel %vm1916, %v1918, %v1914
      %v1920 = vmul.f32 1.0, %v1919
      %v1921 = vmul.f32 %v1901, %v1920
      %v1923 = vsel %vm526, %v1921, 0
      %1925 = vmatpush.msra.mxu0 0.0
      %1926 = vmatpush.msra.mxu0 0.0
      %1927 = vmatpush.msra.mxu0 0.0
      %1928 = vmatpush.msra.mxu0 0.0
      %1929 = vmatpush.msra.mxu0 0.0
      %1930 = vmatpush.msra.mxu0 0.0
      %1931 = vmatpush.msra.mxu0 0.0
      %1932 = vmatpush.msra.mxu0 0.0
      %1933 = vmatpush.msra.mxu0 0.0
      %1934 = vmatpush.msra.mxu0 0.0
      %1935 = vmatpush.msra.mxu0 0.0
      %1936 = vmatpush.msra.mxu0 0.0
      %1937 = vmatpush.msra.mxu0 0.0
      %1938 = vmatpush.msra.mxu0 0.0
      %1939 = vmatpush.msra.mxu0 0.0
      %1940 = vmatpush.msra.mxu0 %v1636
      %1941 = vmatmul.f32.gmra.mxu0 %v1923
      %v1942 = vpop.f32.mrf.mxu0
      %v1943 = vadd.f32 0.0, %v1942
      %1944 = vdwg.mxu0
      %1945 = vmatpush.msra.mxu0 0.0
      %1946 = vmatpush.msra.mxu0 0.0
      %1947 = vmatpush.msra.mxu0 0.0
      %1948 = vmatpush.msra.mxu0 0.0
      %1949 = vmatpush.msra.mxu0 0.0
      %1950 = vmatpush.msra.mxu0 0.0
      %1951 = vmatpush.msra.mxu0 0.0
      %1952 = vmatpush.msra.mxu0 0.0
      %1953 = vmatpush.msra.mxu0 0.0
      %1954 = vmatpush.msra.mxu0 0.0
      %1955 = vmatpush.msra.mxu0 0.0
      %1956 = vmatpush.msra.mxu0 0.0
      %1957 = vmatpush.msra.mxu0 0.0
      %1958 = vmatpush.msra.mxu0 0.0
      %1959 = vmatpush.msra.mxu0 0.0
      %1960 = vmatpush.msra.mxu0 %v1637
      %1961 = vmatmul.f32.gmra.mxu0 %v1923
      %v1962 = vpop.f32.mrf.mxu0
      %v1963 = vadd.f32 0.0, %v1962
      %1964 = vdwg.mxu0
      %1965 = vmatpush.xpose.msra.mxu0 0.0
      %1966 = vmatpush.xpose.msra.mxu0 0.0
      %1967 = vmatpush.xpose.msra.mxu0 0.0
      %1968 = vmatpush.xpose.msra.mxu0 0.0
      %1969 = vmatpush.xpose.msra.mxu0 0.0
      %1970 = vmatpush.xpose.msra.mxu0 0.0
      %1971 = vmatpush.xpose.msra.mxu0 0.0
      %1972 = vmatpush.xpose.msra.mxu0 0.0
      %1973 = vmatpush.xpose.msra.mxu0 0.0
      %1974 = vmatpush.xpose.msra.mxu0 0.0
      %1975 = vmatpush.xpose.msra.mxu0 0.0
      %1976 = vmatpush.xpose.msra.mxu0 0.0
      %1977 = vmatpush.xpose.msra.mxu0 0.0
      %1978 = vmatpush.xpose.msra.mxu0 0.0
      %1979 = vmatpush.xpose.msra.mxu0 0.0
      %1980 = vmatpush.xpose.msra.mxu0 %v1871
      %1981 = vmatmul.f32.gmra.mxu0 %v1755
      %v1982 = vpop.f32.mrf.mxu0
      %v1983 = vadd.f32 0.0, %v1982
      %1984 = vdwg.mxu0
      %v1985 = vmul.f32 %v1983, 0.35355338
      %v1986 = vadd.f32 %v1985, %v224
      %v1987 = vsel %vm526, %v1986, -inf
      %1988 = vmax.xlane.f32.xlu0 %v1987
      %v1989 = vpop.xlane.xlu0 %1988
      %v1990 = vsub.f32 %v1986, %v1989
      %v1991 = vmul.f32 %v1990, 1.442695
      %v1992 = vpow.pop %v1991
      %v1993 = vmul.f32 %v1992, %v220
      %v1994 = vsel %vm526, %v1993, 0.0
      %1995 = vadd.xlane.f32.xlu0 %v1994
      %v1996 = vpop.xlane.xlu0 %1995
      %v1997 = vadd.f32 %v1996, 1e-09
      %v1998 = vrcp.pop %v1997
      %v1999 = vmul.f32 %v1997, %v1998
      %v2000 = vsub.f32 1.0, %v1999
      %v2001 = vmul.f32 %v1998, %v2000
      %v2002 = vadd.f32 %v1998, %v2001
      %vm2003 = vweird.f32 %v1997
      %vm2004 = vweird.f32 %v1998
      %vm2005 = vmor %vm2003, %vm2004
      %v2006 = vsel %vm2005, %v1998, %v2002
      %v2007 = vand.u32 2147483647, %v1997
      %vm2008 = vcmp.eq.f32.partialorder %v2007, 8.507059e+37
      %v2009 = vand.u32 %v1997, 2147483648
      %v2010 = vor.u32 1.1754944e-38, %v2009
      %v2011 = vsel %vm2008, %v2010, %v2006
      %v2012 = vmul.f32 1.0, %v2011
      %v2013 = vmul.f32 %v1993, %v2012
      %v2015 = vsel %vm526, %v2013, 0
      %2017 = vmatpush.msra.mxu0 0.0
      %2018 = vmatpush.msra.mxu0 0.0
      %2019 = vmatpush.msra.mxu0 0.0
      %2020 = vmatpush.msra.mxu0 0.0
      %2021 = vmatpush.msra.mxu0 0.0
      %2022 = vmatpush.msra.mxu0 0.0
      %2023 = vmatpush.msra.mxu0 0.0
      %2024 = vmatpush.msra.mxu0 0.0
      %2025 = vmatpush.msra.mxu0 0.0
      %2026 = vmatpush.msra.mxu0 0.0
      %2027 = vmatpush.msra.mxu0 0.0
      %2028 = vmatpush.msra.mxu0 0.0
      %2029 = vmatpush.msra.mxu0 0.0
      %2030 = vmatpush.msra.mxu0 0.0
      %2031 = vmatpush.msra.mxu0 0.0
      %2032 = vmatpush.msra.mxu0 %v1636
      %2033 = vmatmul.f32.gmra.mxu0 %v2015
      %v2034 = vpop.f32.mrf.mxu0
      %v2035 = vadd.f32 0.0, %v2034
      %2036 = vdwg.mxu0
      %2037 = vmatpush.msra.mxu0 0.0
      %2038 = vmatpush.msra.mxu0 0.0
      %2039 = vmatpush.msra.mxu0 0.0
      %2040 = vmatpush.msra.mxu0 0.0
      %2041 = vmatpush.msra.mxu0 0.0
      %2042 = vmatpush.msra.mxu0 0.0
      %2043 = vmatpush.msra.mxu0 0.0
      %2044 = vmatpush.msra.mxu0 0.0
      %2045 = vmatpush.msra.mxu0 0.0
      %2046 = vmatpush.msra.mxu0 0.0
      %2047 = vmatpush.msra.mxu0 0.0
      %2048 = vmatpush.msra.mxu0 0.0
      %2049 = vmatpush.msra.mxu0 0.0
      %2050 = vmatpush.msra.mxu0 0.0
      %2051 = vmatpush.msra.mxu0 0.0
      %2052 = vmatpush.msra.mxu0 %v1637
      %2053 = vmatmul.f32.gmra.mxu0 %v2015
      %v2054 = vpop.f32.mrf.mxu0
      %v2055 = vadd.f32 0.0, %v2054
      %2056 = vdwg.mxu0
      %2059 = vrot.lane.b32.xlu0 %v2035, 16
      %v2060 = vpop.permute.xlu0 %2059
      %2061 = vrot.lane.b32.xlu0 %v2055, 16
      %v2062 = vpop.permute.xlu0 %2061
      %v2063 = vsel %vm244, %v2060, %v2062
      %v2065 = vsel %vm244, %v1963, %v2060
      %v2066 = vld [vmem:[%s2 + $0x10e0] sm:$0xff]
      %v2067 = vld [vmem:[%s2 + $0x10e8] sm:$0xff]
      %v2068 = vld [vmem:[%s2 + $0x10f8] sm:$0xff]
      %v2069 = vld [vmem:[%s2 + $0x1100] sm:$0xff]
      %v2070 = vld [vmem:[%s2 + $0x1110] sm:$0xff]
      %v2071 = vld [vmem:[%s2 + $0x1118] sm:$0xff]
      %v2072 = vld [vmem:[%s2 + $0x1128] sm:$0xff]
      %v2073 = vld [vmem:[%s2 + $0x1130] sm:$0xff]
      %v2074 = vld [vmem:[%s2 + $0x1140] sm:$0xff]
      %v2075 = vld [vmem:[%s2 + $0x1148] sm:$0xff]
      %v2076 = vld [vmem:[%s2 + $0x1158] sm:$0xff]
      %v2077 = vld [vmem:[%s2 + $0x1160] sm:$0xff]
      %v2078 = vld [vmem:[%s2 + $0x1170] sm:$0xff]
      %v2079 = vld [vmem:[%s2 + $0x1178] sm:$0xff]
      %v2080 = vld [vmem:[%s2 + $0x1188] sm:$0xff]
      %v2081 = vld [vmem:[%s2 + $0x1190] sm:$0xff]
      %v2082 = vld [vmem:[%s2 + $0x11a0] sm:$0xff]
      %v2083 = vld [vmem:[%s2 + $0x11a8] sm:$0xff]
      %v2084 = vld [vmem:[%s2 + $0x11b8] sm:$0xff]
      %v2085 = vld [vmem:[%s2 + $0x11c0] sm:$0xff]
      %v2086 = vld [vmem:[%s2 + $0x11d0] sm:$0xff]
      %v2087 = vld [vmem:[%s2 + $0x11d8] sm:$0xff]
      %v2088 = vld [vmem:[%s2 + $0x11e8] sm:$0xff]
      %v2089 = vld [vmem:[%s2 + $0x11f0] sm:$0xff]
      %v2090 = vld [vmem:[%s2 + $0x1200] sm:$0xff]
      %v2091 = vld [vmem:[%s2 + $0x1208] sm:$0xff]
      %v2092 = vld [vmem:[%s2 + $0x1218] sm:$0xff]
      %v2093 = vld [vmem:[%s2 + $0x1220] sm:$0xff]
      %v2094 = vld [vmem:[%s2 + $0x1230] sm:$0xff]
      %v2095 = vld [vmem:[%s2 + $0x1238] sm:$0xff]
      %v2096 = vld [vmem:[%s2 + $0x1248] sm:$0xff]
      %v2097 = vld [vmem:[%s2 + $0x1250] sm:$0xff]
      %v2098 = vld [vmem:[%s2 + $0x1260] sm:$0xff]
      %v2099 = vld [vmem:[%s2 + $0x1268] sm:$0xff]
      %v2100 = vld [vmem:[%s2 + $0x1278] sm:$0xff]
      %v2101 = vld [vmem:[%s2 + $0x1280] sm:$0xff]
      %v2102 = vld [vmem:[%s2 + $0x1290] sm:$0xff]
      %v2103 = vld [vmem:[%s2 + $0x1298] sm:$0xff]
      %v2104 = vld [vmem:[%s2 + $0x12a8] sm:$0xff]
      %v2105 = vld [vmem:[%s2 + $0x12b0] sm:$0xff]
      %v2106 = vld [vmem:[%s2 + $0x12c0] sm:$0xff]
      %v2107 = vld [vmem:[%s2 + $0x12c8] sm:$0xff]
      %v2108 = vld [vmem:[%s2 + $0x12d8] sm:$0xff]
      %v2109 = vld [vmem:[%s2 + $0x12e0] sm:$0xff]
      %v2110 = vld [vmem:[%s2 + $0x12f0] sm:$0xff]
      %v2111 = vld [vmem:[%s2 + $0x12f8] sm:$0xff]
      %v2112 = vld [vmem:[%s2 + $0x1308] sm:$0xff]
      %v2113 = vld [vmem:[%s2 + $0x1310] sm:$0xff]
      %v2114 = vld [vmem:[%s2 + $0x1320] sm:$0xff]
      %v2115 = vld [vmem:[%s2 + $0x1328] sm:$0xff]
      %v2116 = vld [vmem:[%s2 + $0x1338] sm:$0xff]
      %v2117 = vld [vmem:[%s2 + $0x1340] sm:$0xff]
      %v2118 = vld [vmem:[%s2 + $0x1350] sm:$0xff]
      %v2119 = vld [vmem:[%s2 + $0x1358] sm:$0xff]
      %v2120 = vld [vmem:[%s2 + $0x1368] sm:$0xff]
      %v2121 = vld [vmem:[%s2 + $0x1370] sm:$0xff]
      %v2122 = vld [vmem:[%s2 + $0x1380] sm:$0xff]
      %v2123 = vld [vmem:[%s2 + $0x1388] sm:$0xff]
      %v2124 = vld [vmem:[%s2 + $0x1398] sm:$0xff]
      %v2125 = vld [vmem:[%s2 + $0x13a0] sm:$0xff]
      %v2126 = vld [vmem:[%s2 + $0x13b0] sm:$0xff]
      %v2127 = vld [vmem:[%s2 + $0x13b8] sm:$0xff]
      %v2128 = vld [vmem:[%s2 + $0x13c8] sm:$0xff]
      %v2129 = vld [vmem:[%s2 + $0x13d0] sm:$0xff]
      %v2130 = vld [vmem:[%s2 + $0x13e0] sm:$0xff]
      %v2131 = vld [vmem:[%s2 + $0x13e8] sm:$0xff]
      %v2132 = vld [vmem:[%s2 + $0x13f8] sm:$0xff]
      %v2133 = vld [vmem:[%s2 + $0x1400] sm:$0xff]
      %v2134 = vld [vmem:[%s2 + $0x1410] sm:$0xff]
      %v2135 = vld [vmem:[%s2 + $0x1418] sm:$0xff]
      %v2136 = vld [vmem:[%s2 + $0x1428] sm:$0xff]
      %v2137 = vld [vmem:[%s2 + $0x1430] sm:$0xff]
      %v2138 = vsel %vm770, %v2063, 0
      %2140 = vmatpush.msra.mxu0 %v2096
      %2141 = vmatpush.msra.mxu0 %v2094
      %2142 = vmatpush.msra.mxu0 %v2092
      %2143 = vmatpush.msra.mxu0 %v2090
      %2144 = vmatpush.msra.mxu0 %v2088
      %2145 = vmatpush.msra.mxu0 %v2086
      %2146 = vmatpush.msra.mxu0 %v2084
      %2147 = vmatpush.msra.mxu0 %v2082
      %2148 = vmatpush.msra.mxu0 %v2080
      %2149 = vmatpush.msra.mxu0 %v2078
      %2150 = vmatpush.msra.mxu0 %v2076
      %2151 = vmatpush.msra.mxu0 %v2074
      %2152 = vmatpush.msra.mxu0 %v2072
      %2153 = vmatpush.msra.mxu0 %v2070
      %2154 = vmatpush.msra.mxu0 %v2068
      %2155 = vmatpush.msra.mxu0 %v2066
      %2156 = vmatmul.f32.gmra.mxu0 %v1943
      %v2157 = vpop.f32.mrf.mxu0
      %v2158 = vadd.f32 0.0, %v2157
      %2159 = vdwg.mxu0
      %2160 = vmatpush.msra.mxu0 %v2128
      %2161 = vmatpush.msra.mxu0 %v2126
      %2162 = vmatpush.msra.mxu0 %v2124
      %2163 = vmatpush.msra.mxu0 %v2122
      %2164 = vmatpush.msra.mxu0 %v2120
      %2165 = vmatpush.msra.mxu0 %v2118
      %2166 = vmatpush.msra.mxu0 %v2116
      %2167 = vmatpush.msra.mxu0 %v2114
      %2168 = vmatpush.msra.mxu0 %v2112
      %2169 = vmatpush.msra.mxu0 %v2110
      %2170 = vmatpush.msra.mxu0 %v2108
      %2171 = vmatpush.msra.mxu0 %v2106
      %2172 = vmatpush.msra.mxu0 %v2104
      %2173 = vmatpush.msra.mxu0 %v2102
      %2174 = vmatpush.msra.mxu0 %v2100
      %2175 = vmatpush.msra.mxu0 %v2098
      %2176 = vmatmul.f32.gmra.mxu0 %v2065
      %v2177 = vpop.f32.mrf.mxu0
      %v2178 = vadd.f32 %v2158, %v2177
      %2179 = vdwg.mxu0
      %2180 = vmatpush.msra.mxu0 0.0
      %2181 = vmatpush.msra.mxu0 0.0
      %2182 = vmatpush.msra.mxu0 0.0
      %2183 = vmatpush.msra.mxu0 0.0
      %2184 = vmatpush.msra.mxu0 0.0
      %2185 = vmatpush.msra.mxu0 0.0
      %2186 = vmatpush.msra.mxu0 0.0
      %2187 = vmatpush.msra.mxu0 0.0
      %2188 = vmatpush.msra.mxu0 0.0
      %2189 = vmatpush.msra.mxu0 0.0
      %2190 = vmatpush.msra.mxu0 0.0
      %2191 = vmatpush.msra.mxu0 0.0
      %2192 = vmatpush.msra.mxu0 %v2136
      %2193 = vmatpush.msra.mxu0 %v2134
      %2194 = vmatpush.msra.mxu0 %v2132
      %2195 = vmatpush.msra.mxu0 %v2130
      %2196 = vmatmul.f32.gmra.mxu0 %v2138
      %v2197 = vpop.f32.mrf.mxu0
      %v2198 = vadd.f32 %v2178, %v2197
      %2199 = vdwg.mxu0
      %2200 = vmatpush.msra.mxu0 %v2097
      %2201 = vmatpush.msra.mxu0 %v2095
      %2202 = vmatpush.msra.mxu0 %v2093
      %2203 = vmatpush.msra.mxu0 %v2091
      %2204 = vmatpush.msra.mxu0 %v2089
      %2205 = vmatpush.msra.mxu0 %v2087
      %2206 = vmatpush.msra.mxu0 %v2085
      %2207 = vmatpush.msra.mxu0 %v2083
      %2208 = vmatpush.msra.mxu0 %v2081
      %2209 = vmatpush.msra.mxu0 %v2079
      %2210 = vmatpush.msra.mxu0 %v2077
      %2211 = vmatpush.msra.mxu0 %v2075
      %2212 = vmatpush.msra.mxu0 %v2073
      %2213 = vmatpush.msra.mxu0 %v2071
      %2214 = vmatpush.msra.mxu0 %v2069
      %2215 = vmatpush.msra.mxu0 %v2067
      %2216 = vmatmul.f32.gmra.mxu0 %v1943
      %v2217 = vpop.f32.mrf.mxu0
      %v2218 = vadd.f32 0.0, %v2217
      %2219 = vdwg.mxu0
      %2220 = vmatpush.msra.mxu0 %v2129
      %2221 = vmatpush.msra.mxu0 %v2127
      %2222 = vmatpush.msra.mxu0 %v2125
      %2223 = vmatpush.msra.mxu0 %v2123
      %2224 = vmatpush.msra.mxu0 %v2121
      %2225 = vmatpush.msra.mxu0 %v2119
      %2226 = vmatpush.msra.mxu0 %v2117
      %2227 = vmatpush.msra.mxu0 %v2115
      %2228 = vmatpush.msra.mxu0 %v2113
      %2229 = vmatpush.msra.mxu0 %v2111
      %2230 = vmatpush.msra.mxu0 %v2109
      %2231 = vmatpush.msra.mxu0 %v2107
      %2232 = vmatpush.msra.mxu0 %v2105
      %2233 = vmatpush.msra.mxu0 %v2103
      %2234 = vmatpush.msra.mxu0 %v2101
      %2235 = vmatpush.msra.mxu0 %v2099
      %2236 = vmatmul.f32.gmra.mxu0 %v2065
      %v2237 = vpop.f32.mrf.mxu0
      %v2238 = vadd.f32 %v2218, %v2237
      %2239 = vdwg.mxu0
      %2240 = vmatpush.msra.mxu0 0.0
      %2241 = vmatpush.msra.mxu0 0.0
      %2242 = vmatpush.msra.mxu0 0.0
      %2243 = vmatpush.msra.mxu0 0.0
      %2244 = vmatpush.msra.mxu0 0.0
      %2245 = vmatpush.msra.mxu0 0.0
      %2246 = vmatpush.msra.mxu0 0.0
      %2247 = vmatpush.msra.mxu0 0.0
      %2248 = vmatpush.msra.mxu0 0.0
      %2249 = vmatpush.msra.mxu0 0.0
      %2250 = vmatpush.msra.mxu0 0.0
      %2251 = vmatpush.msra.mxu0 0.0
      %2252 = vmatpush.msra.mxu0 %v2137
      %2253 = vmatpush.msra.mxu0 %v2135
      %2254 = vmatpush.msra.mxu0 %v2133
      %2255 = vmatpush.msra.mxu0 %v2131
      %2256 = vmatmul.f32.gmra.mxu0 %v2138
      %v2257 = vpop.f32.mrf.mxu0
      %v2258 = vadd.f32 %v2238, %v2257
      %2259 = vdwg.mxu0
      %v2260 = vadd.f32 %v1606, %v2198
      %v2261 = vadd.f32 %v1607, %v2258
      %s2262 = scalar_lea.vmem %s3, 4
      %v2263 = vld [vmem:[%s2262] ss:$8 sm:$0x3]
      %v2264 = vmul.f32 %v2260, %v2260
      %v2265 = vmul.f32 %v2261, %v2261
      %v2266 = vmul.f32 %v2264, %v228
      %v2267 = vmul.f32 %v2265, %v229
      %v2268 = vsel %vm244, %v2267, 0.0
      %v2269 = vadd.f32 %v2266, %v2268
      %2270 = vadd.xlane.f32.xlu0 %v2269
      %v2271 = vpop.xlane.xlu0 %2270
      %v2272 = vadd.f32 %v2271, 1e-06
      %v2273 = vrsqrt.pop %v2272
      %v2274 = vmul.f32 %v2273, %v2272
      %v2275 = vmul.f32 %v2274, %v2273
      %v2276 = vmul.f32 0.5, %v2275
      %v2277 = vsub.f32 1.5, %v2276
      %v2278 = vmul.f32 %v2273, %v2277
      %vm2279 = vweird.f32 %v2272
      %vm2280 = vweird.f32 %v2273
      %vm2281 = vmor %vm2279, %vm2280
      %v2282 = vsel %vm2281, %v2273, %v2278
      %v2283 = vmul.f32 %v2260, %v2282
      %v2284 = vmul.f32 %v2261, %v2282
      %v2286 = vperm.slane %v2263, 0
      %v2287 = vperm.slane %v2263, 1
      %v2290 = vmul.f32 %v2283, %v2286
      %v2291 = vmul.f32 %v2284, %v2287
      %v2292 = vld [vmem:[%s2 + $0x1440] sm:$0xff]
      %v2293 = vld [vmem:[%s2 + $0x1448] sm:$0xff]
      %v2294 = vld [vmem:[%s2 + $0x1450] sm:$0xff]
      %v2295 = vld [vmem:[%s2 + $0x1458] sm:$0xff]
      %v2296 = vld [vmem:[%s2 + $0x1460] sm:$0xff]
      %v2297 = vld [vmem:[%s2 + $0x1468] sm:$0xff]
      %v2298 = vld [vmem:[%s2 + $0x1470] sm:$0xff]
      %v2299 = vld [vmem:[%s2 + $0x1478] sm:$0xff]
      %v2300 = vld [vmem:[%s2 + $0x1480] sm:$0xff]
      %v2301 = vld [vmem:[%s2 + $0x1488] sm:$0xff]
      %v2302 = vld [vmem:[%s2 + $0x1490] sm:$0xff]
      %v2303 = vld [vmem:[%s2 + $0x1498] sm:$0xff]
      %v2304 = vld [vmem:[%s2 + $0x14a0] sm:$0xff]
      %v2305 = vld [vmem:[%s2 + $0x14a8] sm:$0xff]
      %v2306 = vld [vmem:[%s2 + $0x14b0] sm:$0xff]
      %v2307 = vld [vmem:[%s2 + $0x14b8] sm:$0xff]
      %v2308 = vld [vmem:[%s2 + $0x14c0] sm:$0xff]
      %v2309 = vld [vmem:[%s2 + $0x14c8] sm:$0xff]
      %v2310 = vld [vmem:[%s2 + $0x14d0] sm:$0xff]
      %v2311 = vld [vmem:[%s2 + $0x14d8] sm:$0xff]
      %v2312 = vld [vmem:[%s2 + $0x14e0] sm:$0xff]
      %v2313 = vld [vmem:[%s2 + $0x14e8] sm:$0xff]
      %v2314 = vld [vmem:[%s2 + $0x14f0] sm:$0xff]
      %v2315 = vld [vmem:[%s2 + $0x14f8] sm:$0xff]
      %v2316 = vld [vmem:[%s2 + $0x1500] sm:$0xff]
      %v2317 = vld [vmem:[%s2 + $0x1508] sm:$0xff]
      %v2318 = vld [vmem:[%s2 + $0x1510] sm:$0xff]
      %v2319 = vld [vmem:[%s2 + $0x1518] sm:$0xff]
      %v2320 = vld [vmem:[%s2 + $0x1520] sm:$0xff]
      %v2321 = vld [vmem:[%s2 + $0x1528] sm:$0xff]
      %v2322 = vld [vmem:[%s2 + $0x1530] sm:$0xff]
      %v2323 = vld [vmem:[%s2 + $0x1538] sm:$0xff]
      %v2324 = vld [vmem:[%s2 + $0x1540] sm:$0xff]
      %v2325 = vld [vmem:[%s2 + $0x1548] sm:$0xff]
      %v2326 = vld [vmem:[%s2 + $0x1550] sm:$0xff]
      %v2327 = vld [vmem:[%s2 + $0x1558] sm:$0xff]
      %v2328 = vld [vmem:[%s2 + $0x1560] sm:$0xff]
      %v2329 = vld [vmem:[%s2 + $0x1568] sm:$0xff]
      %v2330 = vld [vmem:[%s2 + $0x1570] sm:$0xff]
      %v2331 = vld [vmem:[%s2 + $0x1578] sm:$0xff]
      %v2332 = vld [vmem:[%s2 + $0x1580] sm:$0xff]
      %v2333 = vld [vmem:[%s2 + $0x1588] sm:$0xff]
      %v2334 = vld [vmem:[%s2 + $0x1590] sm:$0xff]
      %v2335 = vld [vmem:[%s2 + $0x1598] sm:$0xff]
      %v2336 = vld [vmem:[%s2 + $0x15a0] sm:$0xff]
      %v2337 = vld [vmem:[%s2 + $0x15a8] sm:$0xff]
      %v2338 = vld [vmem:[%s2 + $0x15b0] sm:$0xff]
      %v2339 = vld [vmem:[%s2 + $0x15b8] sm:$0xff]
      %v2340 = vld [vmem:[%s2 + $0x15c0] sm:$0xff]
      %v2341 = vld [vmem:[%s2 + $0x15c8] sm:$0xff]
      %v2342 = vld [vmem:[%s2 + $0x15d0] sm:$0xff]
      %v2343 = vld [vmem:[%s2 + $0x15d8] sm:$0xff]
      %v2344 = vld [vmem:[%s2 + $0x15e0] sm:$0xff]
      %v2345 = vld [vmem:[%s2 + $0x15e8] sm:$0xff]
      %v2347 = vsel %vm244, %v2291, 0
      %2349 = vmatpush.msra.mxu0 %v2337
      %2350 = vmatpush.msra.mxu0 %v2334
      %2351 = vmatpush.msra.mxu0 %v2331
      %2352 = vmatpush.msra.mxu0 %v2328
      %2353 = vmatpush.msra.mxu0 %v2325
      %2354 = vmatpush.msra.mxu0 %v2322
      %2355 = vmatpush.msra.mxu0 %v2319
      %2356 = vmatpush.msra.mxu0 %v2316
      %2357 = vmatpush.msra.mxu0 %v2313
      %2358 = vmatpush.msra.mxu0 %v2310
      %2359 = vmatpush.msra.mxu0 %v2307
      %2360 = vmatpush.msra.mxu0 %v2304
      %2361 = vmatpush.msra.mxu0 %v2301
      %2362 = vmatpush.msra.mxu0 %v2298
      %2363 = vmatpush.msra.mxu0 %v2295
      %2364 = vmatpush.msra.mxu0 %v2292
      %2365 = vmatmul.f32.gmra.mxu0 %v2290
      %v2366 = vpop.f32.mrf.mxu0
      %v2367 = vadd.f32 0.0, %v2366
      %2368 = vdwg.mxu0
      %2369 = vmatpush.msra.mxu0 0.0
      %2370 = vmatpush.msra.mxu0 0.0
      %2371 = vmatpush.msra.mxu0 0.0
      %2372 = vmatpush.msra.mxu0 0.0
      %2373 = vmatpush.msra.mxu0 0.0
      %2374 = vmatpush.msra.mxu0 0.0
      %2375 = vmatpush.msra.mxu0 0.0
      %2376 = vmatpush.msra.mxu0 0.0
      %2377 = vmatpush.msra.mxu0 0.0
      %2378 = vmatpush.msra.mxu0 0.0
      %2379 = vmatpush.msra.mxu0 0.0
      %2380 = vmatpush.msra.mxu0 0.0
      %2381 = vmatpush.msra.mxu0 0.0
      %2382 = vmatpush.msra.mxu0 0.0
      %2383 = vmatpush.msra.mxu0 %v2343
      %2384 = vmatpush.msra.mxu0 %v2340
      %2385 = vmatmul.f32.gmra.mxu0 %v2347
      %v2386 = vpop.f32.mrf.mxu0
      %v2387 = vadd.f32 %v2367, %v2386
      %2388 = vdwg.mxu0
      %2389 = vmatpush.msra.mxu0 %v2338
      %2390 = vmatpush.msra.mxu0 %v2335
      %2391 = vmatpush.msra.mxu0 %v2332
      %2392 = vmatpush.msra.mxu0 %v2329
      %2393 = vmatpush.msra.mxu0 %v2326
      %2394 = vmatpush.msra.mxu0 %v2323
      %2395 = vmatpush.msra.mxu0 %v2320
      %2396 = vmatpush.msra.mxu0 %v2317
      %2397 = vmatpush.msra.mxu0 %v2314
      %2398 = vmatpush.msra.mxu0 %v2311
      %2399 = vmatpush.msra.mxu0 %v2308
      %2400 = vmatpush.msra.mxu0 %v2305
      %2401 = vmatpush.msra.mxu0 %v2302
      %2402 = vmatpush.msra.mxu0 %v2299
      %2403 = vmatpush.msra.mxu0 %v2296
      %2404 = vmatpush.msra.mxu0 %v2293
      %2405 = vmatmul.f32.gmra.mxu0 %v2290
      %v2406 = vpop.f32.mrf.mxu0
      %v2407 = vadd.f32 0.0, %v2406
      %2408 = vdwg.mxu0
      %2409 = vmatpush.msra.mxu0 0.0
      %2410 = vmatpush.msra.mxu0 0.0
      %2411 = vmatpush.msra.mxu0 0.0
      %2412 = vmatpush.msra.mxu0 0.0
      %2413 = vmatpush.msra.mxu0 0.0
      %2414 = vmatpush.msra.mxu0 0.0
      %2415 = vmatpush.msra.mxu0 0.0
      %2416 = vmatpush.msra.mxu0 0.0
      %2417 = vmatpush.msra.mxu0 0.0
      %2418 = vmatpush.msra.mxu0 0.0
      %2419 = vmatpush.msra.mxu0 0.0
      %2420 = vmatpush.msra.mxu0 0.0
      %2421 = vmatpush.msra.mxu0 0.0
      %2422 = vmatpush.msra.mxu0 0.0
      %2423 = vmatpush.msra.mxu0 %v2344
      %2424 = vmatpush.msra.mxu0 %v2341
      %2425 = vmatmul.f32.gmra.mxu0 %v2347
      %v2426 = vpop.f32.mrf.mxu0
      %v2427 = vadd.f32 %v2407, %v2426
      %2428 = vdwg.mxu0
      %2429 = vmatpush.msra.mxu0 %v2339
      %2430 = vmatpush.msra.mxu0 %v2336
      %2431 = vmatpush.msra.mxu0 %v2333
      %2432 = vmatpush.msra.mxu0 %v2330
      %2433 = vmatpush.msra.mxu0 %v2327
      %2434 = vmatpush.msra.mxu0 %v2324
      %2435 = vmatpush.msra.mxu0 %v2321
      %2436 = vmatpush.msra.mxu0 %v2318
      %2437 = vmatpush.msra.mxu0 %v2315
      %2438 = vmatpush.msra.mxu0 %v2312
      %2439 = vmatpush.msra.mxu0 %v2309
      %2440 = vmatpush.msra.mxu0 %v2306
      %2441 = vmatpush.msra.mxu0 %v2303
      %2442 = vmatpush.msra.mxu0 %v2300
      %2443 = vmatpush.msra.mxu0 %v2297
      %2444 = vmatpush.msra.mxu0 %v2294
      %2445 = vmatmul.f32.gmra.mxu0 %v2290
      %v2446 = vpop.f32.mrf.mxu0
      %v2447 = vadd.f32 0.0, %v2446
      %2448 = vdwg.mxu0
      %2449 = vmatpush.msra.mxu0 0.0
      %2450 = vmatpush.msra.mxu0 0.0
      %2451 = vmatpush.msra.mxu0 0.0
      %2452 = vmatpush.msra.mxu0 0.0
      %2453 = vmatpush.msra.mxu0 0.0
      %2454 = vmatpush.msra.mxu0 0.0
      %2455 = vmatpush.msra.mxu0 0.0
      %2456 = vmatpush.msra.mxu0 0.0
      %2457 = vmatpush.msra.mxu0 0.0
      %2458 = vmatpush.msra.mxu0 0.0
      %2459 = vmatpush.msra.mxu0 0.0
      %2460 = vmatpush.msra.mxu0 0.0
      %2461 = vmatpush.msra.mxu0 0.0
      %2462 = vmatpush.msra.mxu0 0.0
      %2463 = vmatpush.msra.mxu0 %v2345
      %2464 = vmatpush.msra.mxu0 %v2342
      %2465 = vmatmul.f32.gmra.mxu0 %v2347
      %v2466 = vpop.f32.mrf.mxu0
      %v2467 = vadd.f32 %v2447, %v2466
      %2468 = vdwg.mxu0
      %v2469 = vld [vmem:[%s2 + $0x15f0] sm:$0xff]
      %v2470 = vld [vmem:[%s2 + $0x15f8] sm:$0xff]
      %v2471 = vld [vmem:[%s2 + $0x1600] sm:$0xff]
      %v2472 = vld [vmem:[%s2 + $0x1608] sm:$0xff]
      %v2473 = vld [vmem:[%s2 + $0x1610] sm:$0xff]
      %v2474 = vld [vmem:[%s2 + $0x1618] sm:$0xff]
      %v2475 = vld [vmem:[%s2 + $0x1620] sm:$0xff]
      %v2476 = vld [vmem:[%s2 + $0x1628] sm:$0xff]
      %v2477 = vld [vmem:[%s2 + $0x1630] sm:$0xff]
      %v2478 = vld [vmem:[%s2 + $0x1638] sm:$0xff]
      %v2479 = vld [vmem:[%s2 + $0x1640] sm:$0xff]
      %v2480 = vld [vmem:[%s2 + $0x1648] sm:$0xff]
      %v2481 = vld [vmem:[%s2 + $0x1650] sm:$0xff]
      %v2482 = vld [vmem:[%s2 + $0x1658] sm:$0xff]
      %v2483 = vld [vmem:[%s2 + $0x1660] sm:$0xff]
      %v2484 = vld [vmem:[%s2 + $0x1668] sm:$0xff]
      %v2485 = vld [vmem:[%s2 + $0x1670] sm:$0xff]
      %v2486 = vld [vmem:[%s2 + $0x1678] sm:$0xff]
      %v2487 = vld [vmem:[%s2 + $0x1680] sm:$0xff]
      %v2488 = vld [vmem:[%s2 + $0x1688] sm:$0xff]
      %v2489 = vld [vmem:[%s2 + $0x1690] sm:$0xff]
      %v2490 = vld [vmem:[%s2 + $0x1698] sm:$0xff]
      %v2491 = vld [vmem:[%s2 + $0x16a0] sm:$0xff]
      %v2492 = vld [vmem:[%s2 + $0x16a8] sm:$0xff]
      %v2493 = vld [vmem:[%s2 + $0x16b0] sm:$0xff]
      %v2494 = vld [vmem:[%s2 + $0x16b8] sm:$0xff]
      %v2495 = vld [vmem:[%s2 + $0x16c0] sm:$0xff]
      %v2496 = vld [vmem:[%s2 + $0x16c8] sm:$0xff]
      %v2497 = vld [vmem:[%s2 + $0x16d0] sm:$0xff]
      %v2498 = vld [vmem:[%s2 + $0x16d8] sm:$0xff]
      %v2499 = vld [vmem:[%s2 + $0x16e0] sm:$0xff]
      %v2500 = vld [vmem:[%s2 + $0x16e8] sm:$0xff]
      %v2501 = vld [vmem:[%s2 + $0x16f0] sm:$0xff]
      %v2502 = vld [vmem:[%s2 + $0x16f8] sm:$0xff]
      %v2503 = vld [vmem:[%s2 + $0x1700] sm:$0xff]
      %v2504 = vld [vmem:[%s2 + $0x1708] sm:$0xff]
      %v2505 = vld [vmem:[%s2 + $0x1710] sm:$0xff]
      %v2506 = vld [vmem:[%s2 + $0x1718] sm:$0xff]
      %v2507 = vld [vmem:[%s2 + $0x1720] sm:$0xff]
      %v2508 = vld [vmem:[%s2 + $0x1728] sm:$0xff]
      %v2509 = vld [vmem:[%s2 + $0x1730] sm:$0xff]
      %v2510 = vld [vmem:[%s2 + $0x1738] sm:$0xff]
      %v2511 = vld [vmem:[%s2 + $0x1740] sm:$0xff]
      %v2512 = vld [vmem:[%s2 + $0x1748] sm:$0xff]
      %v2513 = vld [vmem:[%s2 + $0x1750] sm:$0xff]
      %v2514 = vld [vmem:[%s2 + $0x1758] sm:$0xff]
      %v2515 = vld [vmem:[%s2 + $0x1760] sm:$0xff]
      %v2516 = vld [vmem:[%s2 + $0x1768] sm:$0xff]
      %v2517 = vld [vmem:[%s2 + $0x1770] sm:$0xff]
      %v2518 = vld [vmem:[%s2 + $0x1778] sm:$0xff]
      %v2519 = vld [vmem:[%s2 + $0x1780] sm:$0xff]
      %v2520 = vld [vmem:[%s2 + $0x1788] sm:$0xff]
      %v2521 = vld [vmem:[%s2 + $0x1790] sm:$0xff]
      %v2522 = vld [vmem:[%s2 + $0x1798] sm:$0xff]
      %2523 = vmatpush.msra.mxu0 %v2514
      %2524 = vmatpush.msra.mxu0 %v2511
      %2525 = vmatpush.msra.mxu0 %v2508
      %2526 = vmatpush.msra.mxu0 %v2505
      %2527 = vmatpush.msra.mxu0 %v2502
      %2528 = vmatpush.msra.mxu0 %v2499
      %2529 = vmatpush.msra.mxu0 %v2496
      %2530 = vmatpush.msra.mxu0 %v2493
      %2531 = vmatpush.msra.mxu0 %v2490
      %2532 = vmatpush.msra.mxu0 %v2487
      %2533 = vmatpush.msra.mxu0 %v2484
      %2534 = vmatpush.msra.mxu0 %v2481
      %2535 = vmatpush.msra.mxu0 %v2478
      %2536 = vmatpush.msra.mxu0 %v2475
      %2537 = vmatpush.msra.mxu0 %v2472
      %2538 = vmatpush.msra.mxu0 %v2469
      %2539 = vmatmul.f32.gmra.mxu0 %v2290
      %v2540 = vpop.f32.mrf.mxu0
      %v2541 = vadd.f32 0.0, %v2540
      %2542 = vdwg.mxu0
      %2543 = vmatpush.msra.mxu0 0.0
      %2544 = vmatpush.msra.mxu0 0.0
      %2545 = vmatpush.msra.mxu0 0.0
      %2546 = vmatpush.msra.mxu0 0.0
      %2547 = vmatpush.msra.mxu0 0.0
      %2548 = vmatpush.msra.mxu0 0.0
      %2549 = vmatpush.msra.mxu0 0.0
      %2550 = vmatpush.msra.mxu0 0.0
      %2551 = vmatpush.msra.mxu0 0.0
      %2552 = vmatpush.msra.mxu0 0.0
      %2553 = vmatpush.msra.mxu0 0.0
      %2554 = vmatpush.msra.mxu0 0.0
      %2555 = vmatpush.msra.mxu0 0.0
      %2556 = vmatpush.msra.mxu0 0.0
      %2557 = vmatpush.msra.mxu0 %v2520
      %2558 = vmatpush.msra.mxu0 %v2517
      %2559 = vmatmul.f32.gmra.mxu0 %v2347
      %v2560 = vpop.f32.mrf.mxu0
      %v2561 = vadd.f32 %v2541, %v2560
      %2562 = vdwg.mxu0
      %2563 = vmatpush.msra.mxu0 %v2515
      %2564 = vmatpush.msra.mxu0 %v2512
      %2565 = vmatpush.msra.mxu0 %v2509
      %2566 = vmatpush.msra.mxu0 %v2506
      %2567 = vmatpush.msra.mxu0 %v2503
      %2568 = vmatpush.msra.mxu0 %v2500
      %2569 = vmatpush.msra.mxu0 %v2497
      %2570 = vmatpush.msra.mxu0 %v2494
      %2571 = vmatpush.msra.mxu0 %v2491
      %2572 = vmatpush.msra.mxu0 %v2488
      %2573 = vmatpush.msra.mxu0 %v2485
      %2574 = vmatpush.msra.mxu0 %v2482
      %2575 = vmatpush.msra.mxu0 %v2479
      %2576 = vmatpush.msra.mxu0 %v2476
      %2577 = vmatpush.msra.mxu0 %v2473
      %2578 = vmatpush.msra.mxu0 %v2470
      %2579 = vmatmul.f32.gmra.mxu0 %v2290
      %v2580 = vpop.f32.mrf.mxu0
      %v2581 = vadd.f32 0.0, %v2580
      %2582 = vdwg.mxu0
      %2583 = vmatpush.msra.mxu0 0.0
      %2584 = vmatpush.msra.mxu0 0.0
      %2585 = vmatpush.msra.mxu0 0.0
      %2586 = vmatpush.msra.mxu0 0.0
      %2587 = vmatpush.msra.mxu0 0.0
      %2588 = vmatpush.msra.mxu0 0.0
      %2589 = vmatpush.msra.mxu0 0.0
      %2590 = vmatpush.msra.mxu0 0.0
      %2591 = vmatpush.msra.mxu0 0.0
      %2592 = vmatpush.msra.mxu0 0.0
      %2593 = vmatpush.msra.mxu0 0.0
      %2594 = vmatpush.msra.mxu0 0.0
      %2595 = vmatpush.msra.mxu0 0.0
      %2596 = vmatpush.msra.mxu0 0.0
      %2597 = vmatpush.msra.mxu0 %v2521
      %2598 = vmatpush.msra.mxu0 %v2518
      %2599 = vmatmul.f32.gmra.mxu0 %v2347
      %v2600 = vpop.f32.mrf.mxu0
      %v2601 = vadd.f32 %v2581, %v2600
      %2602 = vdwg.mxu0
      %2603 = vmatpush.msra.mxu0 %v2516
      %2604 = vmatpush.msra.mxu0 %v2513
      %2605 = vmatpush.msra.mxu0 %v2510
      %2606 = vmatpush.msra.mxu0 %v2507
      %2607 = vmatpush.msra.mxu0 %v2504
      %2608 = vmatpush.msra.mxu0 %v2501
      %2609 = vmatpush.msra.mxu0 %v2498
      %2610 = vmatpush.msra.mxu0 %v2495
      %2611 = vmatpush.msra.mxu0 %v2492
      %2612 = vmatpush.msra.mxu0 %v2489
      %2613 = vmatpush.msra.mxu0 %v2486
      %2614 = vmatpush.msra.mxu0 %v2483
      %2615 = vmatpush.msra.mxu0 %v2480
      %2616 = vmatpush.msra.mxu0 %v2477
      %2617 = vmatpush.msra.mxu0 %v2474
      %2618 = vmatpush.msra.mxu0 %v2471
      %2619 = vmatmul.f32.gmra.mxu0 %v2290
      %v2620 = vpop.f32.mrf.mxu0
      %v2621 = vadd.f32 0.0, %v2620
      %2622 = vdwg.mxu0
      %2623 = vmatpush.msra.mxu0 0.0
      %2624 = vmatpush.msra.mxu0 0.0
      %2625 = vmatpush.msra.mxu0 0.0
      %2626 = vmatpush.msra.mxu0 0.0
      %2627 = vmatpush.msra.mxu0 0.0
      %2628 = vmatpush.msra.mxu0 0.0
      %2629 = vmatpush.msra.mxu0 0.0
      %2630 = vmatpush.msra.mxu0 0.0
      %2631 = vmatpush.msra.mxu0 0.0
      %2632 = vmatpush.msra.mxu0 0.0
      %2633 = vmatpush.msra.mxu0 0.0
      %2634 = vmatpush.msra.mxu0 0.0
      %2635 = vmatpush.msra.mxu0 0.0
      %2636 = vmatpush.msra.mxu0 0.0
      %2637 = vmatpush.msra.mxu0 %v2522
      %2638 = vmatpush.msra.mxu0 %v2519
      %2639 = vmatmul.f32.gmra.mxu0 %v2347
      %v2640 = vpop.f32.mrf.mxu0
      %v2641 = vadd.f32 %v2621, %v2640
      %2642 = vdwg.mxu0
      %v2643 = vxor.u32 %v2561, 2147483648
      %v2644 = vxor.u32 %v2601, 2147483648
      %v2645 = vxor.u32 %v2641, 2147483648
      %v2646 = vmul.f32 %v2643, 1.442695
      %v2647 = vpow.pop %v2646
      %v2648 = vmul.f32 %v2644, 1.442695
      %v2649 = vpow.pop %v2648
      %v2650 = vmul.f32 %v2645, 1.442695
      %v2651 = vpow.pop %v2650
      %v2652 = vadd.f32 %v2647, 1.0
      %v2653 = vadd.f32 %v2649, 1.0
      %v2654 = vadd.f32 %v2651, 1.0
      %v2655 = vrcp.pop %v2652
      %v2656 = vmul.f32 %v2652, %v2655
      %v2657 = vsub.f32 1.0, %v2656
      %v2658 = vmul.f32 %v2655, %v2657
      %v2659 = vadd.f32 %v2655, %v2658
      %vm2660 = vweird.f32 %v2652
      %vm2661 = vweird.f32 %v2655
      %vm2662 = vmor %vm2660, %vm2661
      %v2663 = vsel %vm2662, %v2655, %v2659
      %v2664 = vand.u32 2147483647, %v2652
      %vm2665 = vcmp.eq.f32.partialorder %v2664, 8.507059e+37
      %v2666 = vand.u32 %v2652, 2147483648
      %v2667 = vor.u32 1.1754944e-38, %v2666
      %v2668 = vsel %vm2665, %v2667, %v2663
      %v2669 = vmul.f32 1.0, %v2668
      %v2670 = vrcp.pop %v2653
      %v2671 = vmul.f32 %v2653, %v2670
      %v2672 = vsub.f32 1.0, %v2671
      %v2673 = vmul.f32 %v2670, %v2672
      %v2674 = vadd.f32 %v2670, %v2673
      %vm2675 = vweird.f32 %v2653
      %vm2676 = vweird.f32 %v2670
      %vm2677 = vmor %vm2675, %vm2676
      %v2678 = vsel %vm2677, %v2670, %v2674
      %v2679 = vand.u32 2147483647, %v2653
      %vm2680 = vcmp.eq.f32.partialorder %v2679, 8.507059e+37
      %v2681 = vand.u32 %v2653, 2147483648
      %v2682 = vor.u32 1.1754944e-38, %v2681
      %v2683 = vsel %vm2680, %v2682, %v2678
      %v2684 = vmul.f32 1.0, %v2683
      %v2685 = vrcp.pop %v2654
      %v2686 = vmul.f32 %v2654, %v2685
      %v2687 = vsub.f32 1.0, %v2686
      %v2688 = vmul.f32 %v2685, %v2687
      %v2689 = vadd.f32 %v2685, %v2688
      %vm2690 = vweird.f32 %v2654
      %vm2691 = vweird.f32 %v2685
      %vm2692 = vmor %vm2690, %vm2691
      %v2693 = vsel %vm2692, %v2685, %v2689
      %v2694 = vand.u32 2147483647, %v2654
      %vm2695 = vcmp.eq.f32.partialorder %v2694, 8.507059e+37
      %v2696 = vand.u32 %v2654, 2147483648
      %v2697 = vor.u32 1.1754944e-38, %v2696
      %v2698 = vsel %vm2695, %v2697, %v2693
      %v2699 = vmul.f32 1.0, %v2698
      %s2700 = scalar_lea.vmem %s3, 5
      %v2701 = vld [vmem:[%s2700] ss:$8 sm:$0x7]
      %v2703 = vperm.slane %v2701, 0
      %v2704 = vperm.slane %v2701, 1
      %v2705 = vperm.slane %v2701, 2
      %v2709 = vadd.f32 %v2387, %v2703
      %v2710 = vadd.f32 %v2427, %v2704
      %v2711 = vadd.f32 %v2467, %v2705
      %v2712 = vxor.u32 %v2709, 2147483648
      %v2713 = vxor.u32 %v2710, 2147483648
      %v2714 = vxor.u32 %v2711, 2147483648
      %v2715 = vmul.f32 %v2712, 1.442695
      %v2716 = vpow.pop %v2715
      %v2717 = vmul.f32 %v2713, 1.442695
      %v2718 = vpow.pop %v2717
      %v2719 = vmul.f32 %v2714, 1.442695
      %v2720 = vpow.pop %v2719
      %v2721 = vadd.f32 %v2716, 1.0
      %v2722 = vadd.f32 %v2718, 1.0
      %v2723 = vadd.f32 %v2720, 1.0
      %v2724 = vrcp.pop %v2721
      %v2725 = vmul.f32 %v2721, %v2724
      %v2726 = vsub.f32 1.0, %v2725
      %v2727 = vmul.f32 %v2724, %v2726
      %v2728 = vadd.f32 %v2724, %v2727
      %vm2729 = vweird.f32 %v2721
      %vm2730 = vweird.f32 %v2724
      %vm2731 = vmor %vm2729, %vm2730
      %v2732 = vsel %vm2731, %v2724, %v2728
      %v2733 = vand.u32 2147483647, %v2721
      %vm2734 = vcmp.eq.f32.partialorder %v2733, 8.507059e+37
      %v2735 = vand.u32 %v2721, 2147483648
      %v2736 = vor.u32 1.1754944e-38, %v2735
      %v2737 = vsel %vm2734, %v2736, %v2732
      %v2738 = vmul.f32 1.0, %v2737
      %v2739 = vrcp.pop %v2722
      %v2740 = vmul.f32 %v2722, %v2739
      %v2741 = vsub.f32 1.0, %v2740
      %v2742 = vmul.f32 %v2739, %v2741
      %v2743 = vadd.f32 %v2739, %v2742
      %vm2744 = vweird.f32 %v2722
      %vm2745 = vweird.f32 %v2739
      %vm2746 = vmor %vm2744, %vm2745
      %v2747 = vsel %vm2746, %v2739, %v2743
      %v2748 = vand.u32 2147483647, %v2722
      %vm2749 = vcmp.eq.f32.partialorder %v2748, 8.507059e+37
      %v2750 = vand.u32 %v2722, 2147483648
      %v2751 = vor.u32 1.1754944e-38, %v2750
      %v2752 = vsel %vm2749, %v2751, %v2747
      %v2753 = vmul.f32 1.0, %v2752
      %v2754 = vrcp.pop %v2723
      %v2755 = vmul.f32 %v2723, %v2754
      %v2756 = vsub.f32 1.0, %v2755
      %v2757 = vmul.f32 %v2754, %v2756
      %v2758 = vadd.f32 %v2754, %v2757
      %vm2759 = vweird.f32 %v2723
      %vm2760 = vweird.f32 %v2754
      %vm2761 = vmor %vm2759, %vm2760
      %v2762 = vsel %vm2761, %v2754, %v2758
      %v2763 = vand.u32 2147483647, %v2723
      %vm2764 = vcmp.eq.f32.partialorder %v2763, 8.507059e+37
      %v2765 = vand.u32 %v2723, 2147483648
      %v2766 = vor.u32 1.1754944e-38, %v2765
      %v2767 = vsel %vm2764, %v2766, %v2762
      %v2768 = vmul.f32 1.0, %v2767
      %v2769 = vmul.f32 %v2709, %v2738
      %v2770 = vmul.f32 %v2710, %v2753
      %v2771 = vmul.f32 %v2711, %v2768
      %v2772 = vmul.f32 %v2387, %v2669
      %v2773 = vmul.f32 %v2427, %v2684
      %v2774 = vmul.f32 %v2467, %v2699
      %v2775 = vsel %vm236, %v2769, %v2772
      %v2776 = vsel %vm237, %v2770, %v2773
      %v2777 = vsel %vm238, %v2771, %v2774
      %v2778 = vld [vmem:[%s2 + $0x17a0] sm:$0xff]
      %v2779 = vld [vmem:[%s2 + $0x17a8] sm:$0xff]
      %v2780 = vld [vmem:[%s2 + $0x17b8] sm:$0xff]
      %v2781 = vld [vmem:[%s2 + $0x17c0] sm:$0xff]
      %v2782 = vld [vmem:[%s2 + $0x17d0] sm:$0xff]
      %v2783 = vld [vmem:[%s2 + $0x17d8] sm:$0xff]
      %v2784 = vld [vmem:[%s2 + $0x17e8] sm:$0xff]
      %v2785 = vld [vmem:[%s2 + $0x17f0] sm:$0xff]
      %v2786 = vld [vmem:[%s2 + $0x1800] sm:$0xff]
      %v2787 = vld [vmem:[%s2 + $0x1808] sm:$0xff]
      %v2788 = vld [vmem:[%s2 + $0x1818] sm:$0xff]
      %v2789 = vld [vmem:[%s2 + $0x1820] sm:$0xff]
      %v2790 = vld [vmem:[%s2 + $0x1830] sm:$0xff]
      %v2791 = vld [vmem:[%s2 + $0x1838] sm:$0xff]
      %v2792 = vld [vmem:[%s2 + $0x1848] sm:$0xff]
      %v2793 = vld [vmem:[%s2 + $0x1850] sm:$0xff]
      %v2794 = vld [vmem:[%s2 + $0x1860] sm:$0xff]
      %v2795 = vld [vmem:[%s2 + $0x1868] sm:$0xff]
      %v2796 = vld [vmem:[%s2 + $0x1878] sm:$0xff]
      %v2797 = vld [vmem:[%s2 + $0x1880] sm:$0xff]
      %v2798 = vld [vmem:[%s2 + $0x1890] sm:$0xff]
      %v2799 = vld [vmem:[%s2 + $0x1898] sm:$0xff]
      %v2800 = vld [vmem:[%s2 + $0x18a8] sm:$0xff]
      %v2801 = vld [vmem:[%s2 + $0x18b0] sm:$0xff]
      %v2802 = vld [vmem:[%s2 + $0x18c0] sm:$0xff]
      %v2803 = vld [vmem:[%s2 + $0x18c8] sm:$0xff]
      %v2804 = vld [vmem:[%s2 + $0x18d8] sm:$0xff]
      %v2805 = vld [vmem:[%s2 + $0x18e0] sm:$0xff]
      %v2806 = vld [vmem:[%s2 + $0x18f0] sm:$0xff]
      %v2807 = vld [vmem:[%s2 + $0x18f8] sm:$0xff]
      %v2808 = vld [vmem:[%s2 + $0x1908] sm:$0xff]
      %v2809 = vld [vmem:[%s2 + $0x1910] sm:$0xff]
      %v2810 = vld [vmem:[%s2 + $0x1920] sm:$0xff]
      %v2811 = vld [vmem:[%s2 + $0x1928] sm:$0xff]
      %v2812 = vld [vmem:[%s2 + $0x1938] sm:$0xff]
      %v2813 = vld [vmem:[%s2 + $0x1940] sm:$0xff]
      %v2814 = vld [vmem:[%s2 + $0x1950] sm:$0xff]
      %v2815 = vld [vmem:[%s2 + $0x1958] sm:$0xff]
      %v2816 = vld [vmem:[%s2 + $0x1968] sm:$0xff]
      %v2817 = vld [vmem:[%s2 + $0x1970] sm:$0xff]
      %v2818 = vld [vmem:[%s2 + $0x1980] sm:$0xff]
      %v2819 = vld [vmem:[%s2 + $0x1988] sm:$0xff]
      %v2820 = vld [vmem:[%s2 + $0x1998] sm:$0xff]
      %v2821 = vld [vmem:[%s2 + $0x19a0] sm:$0xff]
      %v2822 = vld [vmem:[%s2 + $0x19b0] sm:$0xff]
      %v2823 = vld [vmem:[%s2 + $0x19b8] sm:$0xff]
      %v2824 = vld [vmem:[%s2 + $0x19c8] sm:$0xff]
      %v2825 = vld [vmem:[%s2 + $0x19d0] sm:$0xff]
      %v2826 = vld [vmem:[%s2 + $0x19e0] sm:$0xff]
      %v2827 = vld [vmem:[%s2 + $0x19e8] sm:$0xff]
      %v2828 = vld [vmem:[%s2 + $0x19f8] sm:$0xff]
      %v2829 = vld [vmem:[%s2 + $0x1a00] sm:$0xff]
      %v2830 = vld [vmem:[%s2 + $0x1a10] sm:$0xff]
      %v2831 = vld [vmem:[%s2 + $0x1a18] sm:$0xff]
      %v2832 = vld [vmem:[%s2 + $0x1a28] sm:$0xff]
      %v2833 = vld [vmem:[%s2 + $0x1a30] sm:$0xff]
      %v2834 = vld [vmem:[%s2 + $0x1a40] sm:$0xff]
      %v2835 = vld [vmem:[%s2 + $0x1a48] sm:$0xff]
      %v2836 = vld [vmem:[%s2 + $0x1a58] sm:$0xff]
      %v2837 = vld [vmem:[%s2 + $0x1a60] sm:$0xff]
      %v2838 = vld [vmem:[%s2 + $0x1a70] sm:$0xff]
      %v2839 = vld [vmem:[%s2 + $0x1a78] sm:$0xff]
      %v2840 = vld [vmem:[%s2 + $0x1a88] sm:$0xff]
      %v2841 = vld [vmem:[%s2 + $0x1a90] sm:$0xff]
      %v2842 = vld [vmem:[%s2 + $0x1aa0] sm:$0xff]
      %v2843 = vld [vmem:[%s2 + $0x1aa8] sm:$0xff]
      %v2844 = vld [vmem:[%s2 + $0x1ab8] sm:$0xff]
      %v2845 = vld [vmem:[%s2 + $0x1ac0] sm:$0xff]
      %v2846 = vld [vmem:[%s2 + $0x1ad0] sm:$0xff]
      %v2847 = vld [vmem:[%s2 + $0x1ad8] sm:$0xff]
      %v2848 = vld [vmem:[%s2 + $0x1ae8] sm:$0xff]
      %v2849 = vld [vmem:[%s2 + $0x1af0] sm:$0xff]
      %v2851 = vsel %vm770, %v2777, 0
      %2853 = vmatpush.msra.mxu0 %v2808
      %2854 = vmatpush.msra.mxu0 %v2806
      %2855 = vmatpush.msra.mxu0 %v2804
      %2856 = vmatpush.msra.mxu0 %v2802
      %2857 = vmatpush.msra.mxu0 %v2800
      %2858 = vmatpush.msra.mxu0 %v2798
      %2859 = vmatpush.msra.mxu0 %v2796
      %2860 = vmatpush.msra.mxu0 %v2794
      %2861 = vmatpush.msra.mxu0 %v2792
      %2862 = vmatpush.msra.mxu0 %v2790
      %2863 = vmatpush.msra.mxu0 %v2788
      %2864 = vmatpush.msra.mxu0 %v2786
      %2865 = vmatpush.msra.mxu0 %v2784
      %2866 = vmatpush.msra.mxu0 %v2782
      %2867 = vmatpush.msra.mxu0 %v2780
      %2868 = vmatpush.msra.mxu0 %v2778
      %2869 = vmatmul.f32.gmra.mxu0 %v2775
      %v2870 = vpop.f32.mrf.mxu0
      %v2871 = vadd.f32 0.0, %v2870
      %2872 = vdwg.mxu0
      %2873 = vmatpush.msra.mxu0 %v2840
      %2874 = vmatpush.msra.mxu0 %v2838
      %2875 = vmatpush.msra.mxu0 %v2836
      %2876 = vmatpush.msra.mxu0 %v2834
      %2877 = vmatpush.msra.mxu0 %v2832
      %2878 = vmatpush.msra.mxu0 %v2830
      %2879 = vmatpush.msra.mxu0 %v2828
      %2880 = vmatpush.msra.mxu0 %v2826
      %2881 = vmatpush.msra.mxu0 %v2824
      %2882 = vmatpush.msra.mxu0 %v2822
      %2883 = vmatpush.msra.mxu0 %v2820
      %2884 = vmatpush.msra.mxu0 %v2818
      %2885 = vmatpush.msra.mxu0 %v2816
      %2886 = vmatpush.msra.mxu0 %v2814
      %2887 = vmatpush.msra.mxu0 %v2812
      %2888 = vmatpush.msra.mxu0 %v2810
      %2889 = vmatmul.f32.gmra.mxu0 %v2776
      %v2890 = vpop.f32.mrf.mxu0
      %v2891 = vadd.f32 %v2871, %v2890
      %2892 = vdwg.mxu0
      %2893 = vmatpush.msra.mxu0 0.0
      %2894 = vmatpush.msra.mxu0 0.0
      %2895 = vmatpush.msra.mxu0 0.0
      %2896 = vmatpush.msra.mxu0 0.0
      %2897 = vmatpush.msra.mxu0 0.0
      %2898 = vmatpush.msra.mxu0 0.0
      %2899 = vmatpush.msra.mxu0 0.0
      %2900 = vmatpush.msra.mxu0 0.0
      %2901 = vmatpush.msra.mxu0 0.0
      %2902 = vmatpush.msra.mxu0 0.0
      %2903 = vmatpush.msra.mxu0 0.0
      %2904 = vmatpush.msra.mxu0 0.0
      %2905 = vmatpush.msra.mxu0 %v2848
      %2906 = vmatpush.msra.mxu0 %v2846
      %2907 = vmatpush.msra.mxu0 %v2844
      %2908 = vmatpush.msra.mxu0 %v2842
      %2909 = vmatmul.f32.gmra.mxu0 %v2851
      %v2910 = vpop.f32.mrf.mxu0
      %v2911 = vadd.f32 %v2891, %v2910
      %2912 = vdwg.mxu0
      %2913 = vmatpush.msra.mxu0 %v2809
      %2914 = vmatpush.msra.mxu0 %v2807
      %2915 = vmatpush.msra.mxu0 %v2805
      %2916 = vmatpush.msra.mxu0 %v2803
      %2917 = vmatpush.msra.mxu0 %v2801
      %2918 = vmatpush.msra.mxu0 %v2799
      %2919 = vmatpush.msra.mxu0 %v2797
      %2920 = vmatpush.msra.mxu0 %v2795
      %2921 = vmatpush.msra.mxu0 %v2793
      %2922 = vmatpush.msra.mxu0 %v2791
      %2923 = vmatpush.msra.mxu0 %v2789
      %2924 = vmatpush.msra.mxu0 %v2787
      %2925 = vmatpush.msra.mxu0 %v2785
      %2926 = vmatpush.msra.mxu0 %v2783
      %2927 = vmatpush.msra.mxu0 %v2781
      %2928 = vmatpush.msra.mxu0 %v2779
      %2929 = vmatmul.f32.gmra.mxu0 %v2775
      %v2930 = vpop.f32.mrf.mxu0
      %v2931 = vadd.f32 0.0, %v2930
      %2932 = vdwg.mxu0
      %2933 = vmatpush.msra.mxu0 %v2841
      %2934 = vmatpush.msra.mxu0 %v2839
      %2935 = vmatpush.msra.mxu0 %v2837
      %2936 = vmatpush.msra.mxu0 %v2835
      %2937 = vmatpush.msra.mxu0 %v2833
      %2938 = vmatpush.msra.mxu0 %v2831
      %2939 = vmatpush.msra.mxu0 %v2829
      %2940 = vmatpush.msra.mxu0 %v2827
      %2941 = vmatpush.msra.mxu0 %v2825
      %2942 = vmatpush.msra.mxu0 %v2823
      %2943 = vmatpush.msra.mxu0 %v2821
      %2944 = vmatpush.msra.mxu0 %v2819
      %2945 = vmatpush.msra.mxu0 %v2817
      %2946 = vmatpush.msra.mxu0 %v2815
      %2947 = vmatpush.msra.mxu0 %v2813
      %2948 = vmatpush.msra.mxu0 %v2811
      %2949 = vmatmul.f32.gmra.mxu0 %v2776
      %v2950 = vpop.f32.mrf.mxu0
      %v2951 = vadd.f32 %v2931, %v2950
      %2952 = vdwg.mxu0
      %2953 = vmatpush.msra.mxu0 0.0
      %2954 = vmatpush.msra.mxu0 0.0
      %2955 = vmatpush.msra.mxu0 0.0
      %2956 = vmatpush.msra.mxu0 0.0
      %2957 = vmatpush.msra.mxu0 0.0
      %2958 = vmatpush.msra.mxu0 0.0
      %2959 = vmatpush.msra.mxu0 0.0
      %2960 = vmatpush.msra.mxu0 0.0
      %2961 = vmatpush.msra.mxu0 0.0
      %2962 = vmatpush.msra.mxu0 0.0
      %2963 = vmatpush.msra.mxu0 0.0
      %2964 = vmatpush.msra.mxu0 0.0
      %2965 = vmatpush.msra.mxu0 %v2849
      %2966 = vmatpush.msra.mxu0 %v2847
      %2967 = vmatpush.msra.mxu0 %v2845
      %2968 = vmatpush.msra.mxu0 %v2843
      %2969 = vmatmul.f32.gmra.mxu0 %v2851
      %v2970 = vpop.f32.mrf.mxu0
      %v2971 = vadd.f32 %v2951, %v2970
      %2972 = vdwg.mxu0
      %v2973 = vadd.f32 %v2260, %v2911
      %v2974 = vadd.f32 %v2261, %v2971
      %s2975 = scalar_lea.vmem %s3, 6
      %v2976 = vld [vmem:[%s2975] ss:$8 sm:$0x3]
      %v2977 = vmul.f32 %v2973, %v2973
      %v2978 = vmul.f32 %v2974, %v2974
      %v2979 = vmul.f32 %v2977, %v228
      %v2980 = vmul.f32 %v2978, %v229
      %v2981 = vsel %vm244, %v2980, 0.0
      %v2982 = vadd.f32 %v2979, %v2981
      %2983 = vadd.xlane.f32.xlu0 %v2982
      %v2984 = vpop.xlane.xlu0 %2983
      %v2985 = vadd.f32 %v2984, 1e-06
      %v2986 = vrsqrt.pop %v2985
      %v2987 = vmul.f32 %v2986, %v2985
      %v2988 = vmul.f32 %v2987, %v2986
      %v2989 = vmul.f32 0.5, %v2988
      %v2990 = vsub.f32 1.5, %v2989
      %v2991 = vmul.f32 %v2986, %v2990
      %vm2992 = vweird.f32 %v2985
      %vm2993 = vweird.f32 %v2986
      %vm2994 = vmor %vm2992, %vm2993
      %v2995 = vsel %vm2994, %v2986, %v2991
      %v2996 = vmul.f32 %v2973, %v2995
      %v2997 = vmul.f32 %v2974, %v2995
      %v2999 = vperm.slane %v2976, 0
      %v3000 = vperm.slane %v2976, 1
      %v3003 = vmul.f32 %v2996, %v2999
      %v3004 = vmul.f32 %v2997, %v3000
      %3005 = vst [vmem:[%s217] sm:$0xff] %v3003
      %3006 = vst.msk [vmem:[%s217 + $0x8] sm:$0xff] %vm244, %v3004
      %p3007 = scmp.lt.s32.totalorder %s15, 3
      %s3008 = scalar_select %p3007, %s15, 3
      %s3009 = smul.addr %s3008, 2
      %s3010 = smul.addr %s3009, 8
      %s3011 = scalar_lea.vmem %s4, %s3010
      // Predicated region
      $region37: #{equivariant_mpflow_forward_batched.1} parent=35 // pred_check
        %p3012 = pneg %p127
      $region38: #{equivariant_mpflow_forward_batched.1} parent=35 // pred_check_branch
        %3014 = sbr.rel (%p3012) target = $region40
      $region39: #{equivariant_mpflow_forward_batched.1} parent=35 // pred_region
        _
      $region40: #{equivariant_mpflow_forward_batched.1} parent=35 // pred_fallthru
        _
    $region36: #{equivariant_mpflow_forward_batched.1} parent=5 // pred_fallthru
      _
    %p3015 = scmp.le.s32.totalorder 2, %s10
    // Predicated region
    $region41: #{equivariant_mpflow_forward_batched.1} parent=5 // pred_check
      %p3016 = pneg %p3015
    $region42: #{equivariant_mpflow_forward_batched.1} parent=5 // pred_check_branch
      %3018 = sbr.rel (%p3016) target = $region44
    $region43: #{equivariant_mpflow_forward_batched.1} parent=5 // pred_region
      %s3019 = ssub.s32 %s10, 2
      // Predicated region
      $region45: #{equivariant_mpflow_forward_batched.1} parent=43 // pred_check
        %p3020 = pneg %p133
      $region46: #{equivariant_mpflow_forward_batched.1} parent=43 // pred_check_branch
        %3022 = sbr.rel (%p3020) target = $region48
      $region47: #{equivariant_mpflow_forward_batched.1} parent=43 // pred_region
        %p3023 = scmp.lt.s32.totalorder %s16, 3
        %s3024 = scalar_select %p3023, %s16, 3
        %s3025 = smul.addr %s3024, 2
        %s3026 = smul.addr %s3025, 8
        %s3027 = scalar_lea.vmem %s4, %s3026
      $region48: #{equivariant_mpflow_forward_batched.1} parent=43 // pred_fallthru
        _
    $region44: #{equivariant_mpflow_forward_batched.1} parent=5 // pred_fallthru
      _
  $region6: #{equivariant_mpflow_forward_batched.1} parent=0 // loop_footer
    %s14 = sadd.s32 1, %s10
  $region7: #{equivariant_mpflow_forward_batched.1} parent=0 // loop_footer_branch
    %9 = sbr.rel target = $region3
  $region8: #{equivariant_mpflow_forward_batched.1} parent=0 // loop_exit
    _

</llo_original>
